<compile_context>
chip_gen: v7x
topology: tpu7x:2x2x1
jax: 0.10.0
libtpu: 0.0.40
codegen_flags: <defaults>
</compile_context>

<pallas_src>
import numpy as np

import jax
import jax.numpy as jnp
from jax import lax
from jax.experimental import pallas as pl
from jax.experimental.pallas import tpu as pltpu


def _round_up(x, m):
    return -(-x // m) * m


# ---------------------------------------------------------------------------
# Kernel
# ---------------------------------------------------------------------------
def make_rescnn_kernel(*, L, Cpad, kmax, base, layer_dils, n_blocks, has_init):
    """Fused ResCNN1D forward for one batch element (channel-last, padded)."""

    def kernel(lens_ref, x_ref, w_ref, aff_ref, out_ref, xpad_ref, cols_ref):
        b = pl.program_id(0)
        length = lens_ref[b]
        # Sequence mask rebuilt in-kernel, lane-dense (L, Cpad).
        mask = (lax.broadcasted_iota(jnp.int32, (L, Cpad), 0) < length
                ).astype(jnp.float32)

        # Zero the padded-activation slab once per batch element: the halo rows
        # stay zero for every layer; the interior [base, base+L) is overwritten
        # by each layer's input.
        xpad_ref[...] = jnp.zeros_like(xpad_ref)

        def run_layer(cur, li):
            d = layer_dils[li]
            pad = (kmax - 1) // 2 * d          # embedded "same" halo for this layer
            xpad_ref[base:base + L, :] = cur
            # im2col: k cheap shifted copies -> one deep (L, kmax*Cpad) matmul.
            for t in range(kmax):
                s = base - pad + t * d
                cols_ref[:, t * Cpad:(t + 1) * Cpad] = xpad_ref[s:s + L, :]
            acc = jnp.dot(cols_ref[...], w_ref[li],
                          preferred_element_type=jnp.float32)
            bias = aff_ref[3 * li + 0:3 * li + 1, :]
            scale = aff_ref[3 * li + 1:3 * li + 2, :]
            shift = aff_ref[3 * li + 2:3 * li + 3, :]
            # conv bias -> ReLU -> eval-mode BatchNorm (fused affine) -> mask.
            # TODO(synk): nn.Dropout is identity in eval mode; no stochastic dropout.
            return (jnp.maximum(acc + bias, 0.0) * scale + shift) * mask

        cur = x_ref[0]
        li = 0
        if has_init:                           # 1x1 conv layer (input_dim != conv_dim)
            cur = run_layer(cur, 0)
            li = 1
        res = cur
        for _ in range(n_blocks):              # residual blocks (2 layers each)
            h = run_layer(res, li)
            h = run_layer(h, li + 1)
            res = res + h
            li += 2
        out_ref[0] = res.astype(out_ref.dtype)

    return kernel


# ---------------------------------------------------------------------------
# Host-side parameter packing (channel padding, kernel-tap embedding, BN fusion)
# ---------------------------------------------------------------------------
def pack_params(layers, Cpad, kmax, eps=1e-5):
    n_layers = len(layers)
    w_stk = np.zeros((n_layers, kmax, Cpad, Cpad), np.float32)
    aff_rows = _round_up(3 * n_layers, 8)
    aff = np.zeros((aff_rows, Cpad), np.float32)
    for i, p in enumerate(layers):
        w = np.asarray(p["w"])                 # (k, Cin, Cout), tap-major
        k, cin, cout = w.shape
        # Embed a k-tap kernel into a centered kmax-tap kernel (exact for the
        # PyTorch padding = (k-1)//2 * d convention; as in PyTorch, truly
        # length-preserving only for odd k).
        off = (kmax - 1) // 2 - (k - 1) // 2
        w_stk[i, off:off + k, :cin, :cout] = w
        scale = np.asarray(p["gamma"]) / np.sqrt(np.asarray(p["running_var"]) + eps)
        shift = np.asarray(p["beta"]) - np.asarray(p["running_mean"]) * scale
        aff[3 * i + 0, :cout] = np.asarray(p["bias"])
        aff[3 * i + 1, :cout] = scale
        aff[3 * i + 2, :cout] = shift          # padded channels: 0*x+0 -> stay zero
    w_stk = w_stk.reshape(n_layers, kmax * Cpad, Cpad)
    return jnp.asarray(w_stk), jnp.asarray(aff), aff_rows


# ---------------------------------------------------------------------------
# Public wrapper (PyTorch NCL layout)
# ---------------------------------------------------------------------------
def rescnn1d_forward(x_bcl, seq_mask_b1l, cfg, layers, eps=1e-5):
    """x: (B, C, L), seq_mask: (B, 1, L) prefix mask. Returns (B, conv_dim, L)."""
    B, Cin0, L = x_bcl.shape
    n_layers = len(layers)
    kmax = max(p["kernel_size"] for p in layers)
    max_c = max(cfg["input_dim"], cfg["conv_dim"], cfg["btneck"])
    Cpad = max(128, _round_up(max_c, 128))     # lane-dense channels
    layer_dils = tuple(p["dilation"] for p in layers)
    pad_max = max((kmax - 1) // 2 * d for d in layer_dils)
    base = _round_up(max(pad_max, 1), 8)       # sublane-aligned interior offset
    Lp_scr = _round_up(base + L + pad_max, 8)

    w_stacked, aff_stacked, aff_rows = pack_params(layers, Cpad, kmax, eps)

    # seq_mask is a prefix mask (derived from lengths) -> pass lengths via SMEM.
    lengths = jnp.sum(seq_mask_b1l[:, 0, :] > 0, axis=-1).astype(jnp.int32)

    x_blc = jnp.transpose(x_bcl, (0, 2, 1)).astype(jnp.float32)      # (B, L, C)
    x_p = jnp.pad(x_blc, ((0, 0), (0, 0), (0, Cpad - Cin0)))         # channel pad (once)

    kern = make_rescnn_kernel(L=L, Cpad=Cpad, kmax=kmax, base=base,
                              layer_dils=layer_dils,
                              n_blocks=cfg["n_blocks"], has_init=cfg["has_init"])

    out = pl.pallas_call(
        kern,
        out_shape=jax.ShapeDtypeStruct((B, L, Cpad), jnp.float32),
        grid_spec=pltpu.PrefetchScalarGridSpec(
            num_scalar_prefetch=1,
            grid=(B,),
            in_specs=[
                pl.BlockSpec((1, L, Cpad), lambda b, lens: (b, 0, 0)),
                pl.BlockSpec((n_layers, kmax * Cpad, Cpad),
                             lambda b, lens: (0, 0, 0)),
                pl.BlockSpec((aff_rows, Cpad), lambda b, lens: (0, 0)),
            ],
            out_specs=pl.BlockSpec((1, L, Cpad), lambda b, lens: (b, 0, 0)),
            scratch_shapes=[
                pltpu.VMEM((Lp_scr, Cpad), jnp.float32),       # padded activation
                pltpu.VMEM((L, kmax * Cpad), jnp.float32),     # im2col slab
            ],
        ),
        compiler_params=pltpu.CompilerParams(
            dimension_semantics=("parallel",)),
    )(lengths, x_p, w_stacked, aff_stacked)

    cout = cfg["conv_dim"]
    return jnp.transpose(out[:, :, :cout], (0, 2, 1))          # back to (B, C, L)


# ---------------------------------------------------------------------------
# Pure-JAX reference (lax conv) for validation
# ---------------------------------------------------------------------------
def reference_forward(x_bcl, seq_mask_b1l, cfg, layers, eps=1e-5):
    def cnn_layer(x, p):
        w_oik = jnp.transpose(p["w"], (2, 1, 0))               # (Cout, Cin, k)
        k, d = p["kernel_size"], p["dilation"]
        pad = (k - 1) // 2 * d
        y = lax.conv_general_dilated(
            x, w_oik, window_strides=(1,), padding=[(pad, pad)],
            rhs_dilation=(d,), dimension_numbers=("NCH", "OIH", "NCH"))
        y = y + p["bias"][None, :, None]
        y = jnp.maximum(y, 0.0)
        scale = p["gamma"] / jnp.sqrt(p["running_var"] + eps)
        shift = p["beta"] - p["running_mean"] * scale
        y = y * scale[None, :, None] + shift[None, :, None]
        return y * seq_mask_b1l

    x = x_bcl
    li = 0
    if cfg["has_init"]:
        x = cnn_layer(x, layers[0])
        li = 1
    res = x
    for _ in range(cfg["n_blocks"]):
        h = cnn_layer(res, layers[li])
        h = cnn_layer(h, layers[li + 1])
        res = h + res
        li += 2
    return res


# ---------------------------------------------------------------------------
# Parameter init matching the ResCNN1D constructor
# ---------------------------------------------------------------------------
def init_rescnn_params(key, input_dim, channel_dims, kernel_sizes, dilations):
    btneck, conv_dim = channel_dims[0], channel_dims[1]
    has_init = input_dim != conv_dim
    layer_shapes = []
    if has_init:
        layer_shapes.append((input_dim, conv_dim, 1, 1))       # 1x1 init conv
    for k, d in zip(kernel_sizes, dilations):                  # residual blocks
        layer_shapes.append((conv_dim, btneck, k, d))
        layer_shapes.append((btneck, conv_dim, k, d))

    layers = []
    for (m, n, k, d) in layer_shapes:
        key, kw, kb, kg, kbt, km, kv = jax.random.split(key, 7)
        layers.append(dict(
            w=0.1 * jax.random.normal(kw, (k, m, n), jnp.float32),   # (k, Cin, Cout)
            bias=0.1 * jax.random.normal(kb, (n,), jnp.float32),
            gamma=jax.random.uniform(kg, (n,), jnp.float32, 0.5, 1.5),
            beta=0.1 * jax.random.normal(kbt, (n,), jnp.float32),
            running_mean=0.1 * jax.random.normal(km, (n,), jnp.float32),
            running_var=jax.random.uniform(kv, (n,), jnp.float32, 0.5, 1.5),
            kernel_size=k, dilation=d,
        ))
    cfg = dict(has_init=has_init, n_blocks=len(kernel_sizes),
               input_dim=input_dim, conv_dim=conv_dim, btneck=btneck)
    return cfg, layers


if __name__ == "__main__":
    key = jax.random.PRNGKey(0)
    kx, kp = jax.random.split(key)

    # Small shapes consistent with the module (scaled-down dims).
    B, L = 4, 64
    input_dim = 48                     # != conv_dim -> exercises the initial 1x1 conv
    channel_dims = [16, 32, 16, 32]    # btneck=16, conv_dim=32
    kernel_sizes = [5, 5]
    dilations = [1, 2]

    cfg, layers = init_rescnn_params(kp, input_dim, channel_dims,
                                     kernel_sizes, dilations)

    x = jax.random.normal(kx, (B, input_dim, L), jnp.float32)          # (B, C, L)
    lengths = np.array([64, 40, 33, 9], np.int32)
    seq_mask = (np.arange(L)[None, :] < lengths[:, None]).astype(np.float32)
    seq_mask = jnp.asarray(seq_mask)[:, None, :]                       # (B, 1, L)

    out = rescnn1d_forward(x, seq_mask, cfg, layers)
    out = jax.block_until_ready(out)

    ref = reference_forward(x, seq_mask, cfg, layers)
    np.testing.assert_allclose(np.asarray(out), np.asarray(ref),
                               rtol=1e-4, atol=1e-4)
    assert out.shape == (B, channel_dims[1], L)

    print("KERNEL_OK")
</pallas_src>

<mosaic_0001>
module attributes {stable_mosaic.version = 11 : i64} {
  func.func @kernel(%arg0: i32, %arg1: memref<4xi32, #tpu.memory_space<smem>>, %arg2: memref<1x64x128xf32, #tpu.memory_space<vmem>>, %arg3: memref<5x640x128xf32, #tpu.memory_space<vmem>>, %arg4: memref<16x128xf32, #tpu.memory_space<vmem>>, %arg5: memref<1x64x128xf32, #tpu.memory_space<vmem>>, %arg6: memref<80x128xf32, #tpu.memory_space<vmem>>, %arg7: memref<64x640xf32, #tpu.memory_space<vmem>>) attributes {dimension_semantics = [#tpu.dimension_semantics<parallel>], iteration_bounds = array<i64: 4>, scalar_prefetch = 1 : i64, scratch_operands = 2 : i64, tpu.core_type = #tpu.core_type<tc>, window_params = [{transform_indices = @transform_0, window_bounds = array<i64: 1, 64, 128>}, {pipeline_mode = #tpu.pipeline_mode<synchronous>, transform_indices = @transform_1, window_bounds = array<i64: 5, 640, 128>}, {pipeline_mode = #tpu.pipeline_mode<synchronous>, transform_indices = @transform_2, window_bounds = array<i64: 16, 128>}, {transform_indices = @transform_3, window_bounds = array<i64: 1, 64, 128>}]} {
    %0 = arith.index_cast %arg0 : i32 to index
    %1 = memref.load %arg1[%0] : memref<4xi32, #tpu.memory_space<smem>>
    %2 = tpu.iota {dimensions = array<i32: 0>} : vector<64x128xi32>
    %3 = vector.broadcast %1 : i32 to vector<64x128xi32>
    %4 = arith.cmpi slt, %2, %3 : vector<64x128xi32>
    %5 = arith.extui %4 : vector<64x128xi1> to vector<64x128xi32>
    %6 = arith.sitofp %5 : vector<64x128xi32> to vector<64x128xf32>
    %cst = arith.constant 0.000000e+00 : f32
    %7 = vector.broadcast %cst : f32 to vector<80x128xf32>
    %c0 = arith.constant 0 : index
    %c0_0 = arith.constant 0 : index
    %8 = vector.load %arg6[%c0, %c0_0] : memref<80x128xf32, #tpu.memory_space<vmem>>, vector<80x128xf32>
    tpu.vector_store %arg6[%c0, %c0_0], %7 {strides = array<i32>} : memref<80x128xf32, #tpu.memory_space<vmem>>, vector<80x128xf32>,
    %c0_1 = arith.constant 0 : index
    %c0_2 = arith.constant 0 : index
    %c0_3 = arith.constant 0 : index
    %9 = vector.load %arg2[%c0_1, %c0_2, %c0_3] : memref<1x64x128xf32, #tpu.memory_space<vmem>>, vector<1x64x128xf32>
    %10 = vector.shape_cast %9 : vector<1x64x128xf32> to vector<64x128xf32>
    %c8 = arith.constant 8 : index
    %c0_4 = arith.constant 0 : index
    %11 = vector.load %arg6[%c8, %c0_4] : memref<80x128xf32, #tpu.memory_space<vmem>>, vector<64x128xf32>
    tpu.vector_store %arg6[%c8, %c0_4], %10 {strides = array<i32>} : memref<80x128xf32, #tpu.memory_space<vmem>>, vector<64x128xf32>,
    %c6 = arith.constant 6 : index
    %c0_5 = arith.constant 0 : index
    %12 = vector.load %arg6[%c6, %c0_5] : memref<80x128xf32, #tpu.memory_space<vmem>>, vector<64x128xf32>
    %c0_6 = arith.constant 0 : index
    %c0_7 = arith.constant 0 : index
    %13 = vector.load %arg7[%c0_6, %c0_7] : memref<64x640xf32, #tpu.memory_space<vmem>>, vector<64x128xf32>
    tpu.vector_store %arg7[%c0_6, %c0_7], %12 {strides = array<i32>} : memref<64x640xf32, #tpu.memory_space<vmem>>, vector<64x128xf32>,
    %c7 = arith.constant 7 : index
    %c0_8 = arith.constant 0 : index
    %14 = vector.load %arg6[%c7, %c0_8] : memref<80x128xf32, #tpu.memory_space<vmem>>, vector<64x128xf32>
    %c0_9 = arith.constant 0 : index
    %c128 = arith.constant 128 : index
    %15 = vector.load %arg7[%c0_9, %c128] : memref<64x640xf32, #tpu.memory_space<vmem>>, vector<64x128xf32>
    tpu.vector_store %arg7[%c0_9, %c128], %14 {strides = array<i32>} : memref<64x640xf32, #tpu.memory_space<vmem>>, vector<64x128xf32>,
    %c8_10 = arith.constant 8 : index
    %c0_11 = arith.constant 0 : index
    %16 = vector.load %arg6[%c8_10, %c0_11] : memref<80x128xf32, #tpu.memory_space<vmem>>, vector<64x128xf32>
    %c0_12 = arith.constant 0 : index
    %c256 = arith.constant 256 : index
    %17 = vector.load %arg7[%c0_12, %c256] : memref<64x640xf32, #tpu.memory_space<vmem>>, vector<64x128xf32>
    tpu.vector_store %arg7[%c0_12, %c256], %16 {strides = array<i32>} : memref<64x640xf32, #tpu.memory_space<vmem>>, vector<64x128xf32>,
    %c9 = arith.constant 9 : index
    %c0_13 = arith.constant 0 : index
    %18 = vector.load %arg6[%c9, %c0_13] : memref<80x128xf32, #tpu.memory_space<vmem>>, vector<64x128xf32>
    %c0_14 = arith.constant 0 : index
    %c384 = arith.constant 384 : index
    %19 = vector.load %arg7[%c0_14, %c384] : memref<64x640xf32, #tpu.memory_space<vmem>>, vector<64x128xf32>
    tpu.vector_store %arg7[%c0_14, %c384], %18 {strides = array<i32>} : memref<64x640xf32, #tpu.memory_space<vmem>>, vector<64x128xf32>,
    %c10 = arith.constant 10 : index
    %c0_15 = arith.constant 0 : index
    %20 = vector.load %arg6[%c10, %c0_15] : memref<80x128xf32, #tpu.memory_space<vmem>>, vector<64x128xf32>
    %c0_16 = arith.constant 0 : index
    %c512 = arith.constant 512 : index
    %21 = vector.load %arg7[%c0_16, %c512] : memref<64x640xf32, #tpu.memory_space<vmem>>, vector<64x128xf32>
    tpu.vector_store %arg7[%c0_16, %c512], %20 {strides = array<i32>} : memref<64x640xf32, #tpu.memory_space<vmem>>, vector<64x128xf32>,
    %c0_17 = arith.constant 0 : index
    %c0_18 = arith.constant 0 : index
    %22 = vector.load %arg7[%c0_17, %c0_18] : memref<64x640xf32, #tpu.memory_space<vmem>>, vector<64x640xf32>
    %c0_19 = arith.constant 0 : index
    %c0_20 = arith.constant 0 : index
    %c0_21 = arith.constant 0 : index
    %23 = vector.load %arg3[%c0_19, %c0_20, %c0_21] : memref<5x640x128xf32, #tpu.memory_space<vmem>>, vector<1x640x128xf32>
    %24 = vector.shape_cast %23 : vector<1x640x128xf32> to vector<640x128xf32>
    %cst_22 = arith.constant dense<0.000000e+00> : vector<64x128xf32>
    %25 = tpu.matmul %22, %24, %cst_22 {dimension_numbers = #tpu.dot_dimension_numbers<[1], [0], [0], [1], [0, 0, 1, 1], [], []>} : vector<64x640xf32>, vector<640x128xf32>, vector<64x128xf32> -> vector<64x128xf32>
    %c0_23 = arith.constant 0 : index
    %c0_24 = arith.constant 0 : index
    %26 = vector.load %arg4[%c0_23, %c0_24] : memref<16x128xf32, #tpu.memory_space<vmem>>, vector<1x128xf32>
    %c1 = arith.constant 1 : index
    %c0_25 = arith.constant 0 : index
    %27 = vector.load %arg4[%c1, %c0_25] : memref<16x128xf32, #tpu.memory_space<vmem>>, vector<1x128xf32>
    %c2 = arith.constant 2 : index
    %c0_26 = arith.constant 0 : index
    %28 = vector.load %arg4[%c2, %c0_26] : memref<16x128xf32, #tpu.memory_space<vmem>>, vector<1x128xf32>
    %29 = vector.broadcast %26 : vector<1x128xf32> to vector<64x128xf32>
    %30 = arith.addf %25, %29 : vector<64x128xf32>
    %cst_27 = arith.constant 0.000000e+00 : f32
    %31 = vector.broadcast %cst_27 : f32 to vector<64x128xf32>
    %32 = arith.maximumf %30, %31 : vector<64x128xf32>
    %33 = vector.broadcast %27 : vector<1x128xf32> to vector<64x128xf32>
    %34 = arith.mulf %32, %33 : vector<64x128xf32>
    %35 = vector.broadcast %28 : vector<1x128xf32> to vector<64x128xf32>
    %36 = arith.addf %34, %35 : vector<64x128xf32>
    %37 = arith.mulf %36, %6 : vector<64x128xf32>
    %c8_28 = arith.constant 8 : index
    %c0_29 = arith.constant 0 : index
    %38 = vector.load %arg6[%c8_28, %c0_29] : memref<80x128xf32, #tpu.memory_space<vmem>>, vector<64x128xf32>
    tpu.vector_store %arg6[%c8_28, %c0_29], %37 {strides = array<i32>} : memref<80x128xf32, #tpu.memory_space<vmem>>, vector<64x128xf32>,
    %c6_30 = arith.constant 6 : index
    %c0_31 = arith.constant 0 : index
    %39 = vector.load %arg6[%c6_30, %c0_31] : memref<80x128xf32, #tpu.memory_space<vmem>>, vector<64x128xf32>
    %c0_32 = arith.constant 0 : index
    %c0_33 = arith.constant 0 : index
    %40 = vector.load %arg7[%c0_32, %c0_33] : memref<64x640xf32, #tpu.memory_space<vmem>>, vector<64x128xf32>
    tpu.vector_store %arg7[%c0_32, %c0_33], %39 {strides = array<i32>} : memref<64x640xf32, #tpu.memory_space<vmem>>, vector<64x128xf32>,
    %c7_34 = arith.constant 7 : index
    %c0_35 = arith.constant 0 : index
    %41 = vector.load %arg6[%c7_34, %c0_35] : memref<80x128xf32, #tpu.memory_space<vmem>>, vector<64x128xf32>
    %c0_36 = arith.constant 0 : index
    %c128_37 = arith.constant 128 : index
    %42 = vector.load %arg7[%c0_36, %c128_37] : memref<64x640xf32, #tpu.memory_space<vmem>>, vector<64x128xf32>
    tpu.vector_store %arg7[%c0_36, %c128_37], %41 {strides = array<i32>} : memref<64x640xf32, #tpu.memory_space<vmem>>, vector<64x128xf32>,
    %c8_38 = arith.constant 8 : index
    %c0_39 = arith.constant 0 : index
    %43 = vector.load %arg6[%c8_38, %c0_39] : memref<80x128xf32, #tpu.memory_space<vmem>>, vector<64x128xf32>
    %c0_40 = arith.constant 0 : index
    %c256_41 = arith.constant 256 : index
    %44 = vector.load %arg7[%c0_40, %c256_41] : memref<64x640xf32, #tpu.memory_space<vmem>>, vector<64x128xf32>
    tpu.vector_store %arg7[%c0_40, %c256_41], %43 {strides = array<i32>} : memref<64x640xf32, #tpu.memory_space<vmem>>, vector<64x128xf32>,
    %c9_42 = arith.constant 9 : index
    %c0_43 = arith.constant 0 : index
    %45 = vector.load %arg6[%c9_42, %c0_43] : memref<80x128xf32, #tpu.memory_space<vmem>>, vector<64x128xf32>
    %c0_44 = arith.constant 0 : index
    %c384_45 = arith.constant 384 : index
    %46 = vector.load %arg7[%c0_44, %c384_45] : memref<64x640xf32, #tpu.memory_space<vmem>>, vector<64x128xf32>
    tpu.vector_store %arg7[%c0_44, %c384_45], %45 {strides = array<i32>} : memref<64x640xf32, #tpu.memory_space<vmem>>, vector<64x128xf32>,
    %c10_46 = arith.constant 10 : index
    %c0_47 = arith.constant 0 : index
    %47 = vector.load %arg6[%c10_46, %c0_47] : memref<80x128xf32, #tpu.memory_space<vmem>>, vector<64x128xf32>
    %c0_48 = arith.constant 0 : index
    %c512_49 = arith.constant 512 : index
    %48 = vector.load %arg7[%c0_48, %c512_49] : memref<64x640xf32, #tpu.memory_space<vmem>>, vector<64x128xf32>
    tpu.vector_store %arg7[%c0_48, %c512_49], %47 {strides = array<i32>} : memref<64x640xf32, #tpu.memory_space<vmem>>, vector<64x128xf32>,
    %c0_50 = arith.constant 0 : index
    %c0_51 = arith.constant 0 : index
    %49 = vector.load %arg7[%c0_50, %c0_51] : memref<64x640xf32, #tpu.memory_space<vmem>>, vector<64x640xf32>
    %c1_52 = arith.constant 1 : index
    %c0_53 = arith.constant 0 : index
    %c0_54 = arith.constant 0 : index
    %50 = vector.load %arg3[%c1_52, %c0_53, %c0_54] : memref<5x640x128xf32, #tpu.memory_space<vmem>>, vector<1x640x128xf32>
    %51 = vector.shape_cast %50 : vector<1x640x128xf32> to vector<640x128xf32>
    %cst_55 = arith.constant dense<0.000000e+00> : vector<64x128xf32>
    %52 = tpu.matmul %49, %51, %cst_55 {dimension_numbers = #tpu.dot_dimension_numbers<[1], [0], [0], [1], [0, 0, 1, 1], [], []>} : vector<64x640xf32>, vector<640x128xf32>, vector<64x128xf32> -> vector<64x128xf32>
    %c3 = arith.constant 3 : index
    %c0_56 = arith.constant 0 : index
    %53 = vector.load %arg4[%c3, %c0_56] : memref<16x128xf32, #tpu.memory_space<vmem>>, vector<1x128xf32>
    %c4 = arith.constant 4 : index
    %c0_57 = arith.constant 0 : index
    %54 = vector.load %arg4[%c4, %c0_57] : memref<16x128xf32, #tpu.memory_space<vmem>>, vector<1x128xf32>
    %c5 = arith.constant 5 : index
    %c0_58 = arith.constant 0 : index
    %55 = vector.load %arg4[%c5, %c0_58] : memref<16x128xf32, #tpu.memory_space<vmem>>, vector<1x128xf32>
    %56 = vector.broadcast %53 : vector<1x128xf32> to vector<64x128xf32>
    %57 = arith.addf %52, %56 : vector<64x128xf32>
    %cst_59 = arith.constant 0.000000e+00 : f32
    %58 = vector.broadcast %cst_59 : f32 to vector<64x128xf32>
    %59 = arith.maximumf %57, %58 : vector<64x128xf32>
    %60 = vector.broadcast %54 : vector<1x128xf32> to vector<64x128xf32>
    %61 = arith.mulf %59, %60 : vector<64x128xf32>
    %62 = vector.broadcast %55 : vector<1x128xf32> to vector<64x128xf32>
    %63 = arith.addf %61, %62 : vector<64x128xf32>
    %64 = arith.mulf %63, %6 : vector<64x128xf32>
    %c8_60 = arith.constant 8 : index
    %c0_61 = arith.constant 0 : index
    %65 = vector.load %arg6[%c8_60, %c0_61] : memref<80x128xf32, #tpu.memory_space<vmem>>, vector<64x128xf32>
    tpu.vector_store %arg6[%c8_60, %c0_61], %64 {strides = array<i32>} : memref<80x128xf32, #tpu.memory_space<vmem>>, vector<64x128xf32>,
    %c6_62 = arith.constant 6 : index
    %c0_63 = arith.constant 0 : index
    %66 = vector.load %arg6[%c6_62, %c0_63] : memref<80x128xf32, #tpu.memory_space<vmem>>, vector<64x128xf32>
    %c0_64 = arith.constant 0 : index
    %c0_65 = arith.constant 0 : index
    %67 = vector.load %arg7[%c0_64, %c0_65] : memref<64x640xf32, #tpu.memory_space<vmem>>, vector<64x128xf32>
    tpu.vector_store %arg7[%c0_64, %c0_65], %66 {strides = array<i32>} : memref<64x640xf32, #tpu.memory_space<vmem>>, vector<64x128xf32>,
    %c7_66 = arith.constant 7 : index
    %c0_67 = arith.constant 0 : index
    %68 = vector.load %arg6[%c7_66, %c0_67] : memref<80x128xf32, #tpu.memory_space<vmem>>, vector<64x128xf32>
    %c0_68 = arith.constant 0 : index
    %c128_69 = arith.constant 128 : index
    %69 = vector.load %arg7[%c0_68, %c128_69] : memref<64x640xf32, #tpu.memory_space<vmem>>, vector<64x128xf32>
    tpu.vector_store %arg7[%c0_68, %c128_69], %68 {strides = array<i32>} : memref<64x640xf32, #tpu.memory_space<vmem>>, vector<64x128xf32>,
    %c8_70 = arith.constant 8 : index
    %c0_71 = arith.constant 0 : index
    %70 = vector.load %arg6[%c8_70, %c0_71] : memref<80x128xf32, #tpu.memory_space<vmem>>, vector<64x128xf32>
    %c0_72 = arith.constant 0 : index
    %c256_73 = arith.constant 256 : index
    %71 = vector.load %arg7[%c0_72, %c256_73] : memref<64x640xf32, #tpu.memory_space<vmem>>, vector<64x128xf32>
    tpu.vector_store %arg7[%c0_72, %c256_73], %70 {strides = array<i32>} : memref<64x640xf32, #tpu.memory_space<vmem>>, vector<64x128xf32>,
    %c9_74 = arith.constant 9 : index
    %c0_75 = arith.constant 0 : index
    %72 = vector.load %arg6[%c9_74, %c0_75] : memref<80x128xf32, #tpu.memory_space<vmem>>, vector<64x128xf32>
    %c0_76 = arith.constant 0 : index
    %c384_77 = arith.constant 384 : index
    %73 = vector.load %arg7[%c0_76, %c384_77] : memref<64x640xf32, #tpu.memory_space<vmem>>, vector<64x128xf32>
    tpu.vector_store %arg7[%c0_76, %c384_77], %72 {strides = array<i32>} : memref<64x640xf32, #tpu.memory_space<vmem>>, vector<64x128xf32>,
    %c10_78 = arith.constant 10 : index
    %c0_79 = arith.constant 0 : index
    %74 = vector.load %arg6[%c10_78, %c0_79] : memref<80x128xf32, #tpu.memory_space<vmem>>, vector<64x128xf32>
    %c0_80 = arith.constant 0 : index
    %c512_81 = arith.constant 512 : index
    %75 = vector.load %arg7[%c0_80, %c512_81] : memref<64x640xf32, #tpu.memory_space<vmem>>, vector<64x128xf32>
    tpu.vector_store %arg7[%c0_80, %c512_81], %74 {strides = array<i32>} : memref<64x640xf32, #tpu.memory_space<vmem>>, vector<64x128xf32>,
    %c0_82 = arith.constant 0 : index
    %c0_83 = arith.constant 0 : index
    %76 = vector.load %arg7[%c0_82, %c0_83] : memref<64x640xf32, #tpu.memory_space<vmem>>, vector<64x640xf32>
    %c2_84 = arith.constant 2 : index
    %c0_85 = arith.constant 0 : index
    %c0_86 = arith.constant 0 : index
    %77 = vector.load %arg3[%c2_84, %c0_85, %c0_86] : memref<5x640x128xf32, #tpu.memory_space<vmem>>, vector<1x640x128xf32>
    %78 = vector.shape_cast %77 : vector<1x640x128xf32> to vector<640x128xf32>
    %cst_87 = arith.constant dense<0.000000e+00> : vector<64x128xf32>
    %79 = tpu.matmul %76, %78, %cst_87 {dimension_numbers = #tpu.dot_dimension_numbers<[1], [0], [0], [1], [0, 0, 1, 1], [], []>} : vector<64x640xf32>, vector<640x128xf32>, vector<64x128xf32> -> vector<64x128xf32>
    %c6_88 = arith.constant 6 : index
    %c0_89 = arith.constant 0 : index
    %80 = vector.load %arg4[%c6_88, %c0_89] : memref<16x128xf32, #tpu.memory_space<vmem>>, vector<1x128xf32>
    %c7_90 = arith.constant 7 : index
    %c0_91 = arith.constant 0 : index
    %81 = vector.load %arg4[%c7_90, %c0_91] : memref<16x128xf32, #tpu.memory_space<vmem>>, vector<1x128xf32>
    %c8_92 = arith.constant 8 : index
    %c0_93 = arith.constant 0 : index
    %82 = vector.load %arg4[%c8_92, %c0_93] : memref<16x128xf32, #tpu.memory_space<vmem>>, vector<1x128xf32>
    %83 = vector.broadcast %80 : vector<1x128xf32> to vector<64x128xf32>
    %84 = arith.addf %79, %83 : vector<64x128xf32>
    %cst_94 = arith.constant 0.000000e+00 : f32
    %85 = vector.broadcast %cst_94 : f32 to vector<64x128xf32>
    %86 = arith.maximumf %84, %85 : vector<64x128xf32>
    %87 = vector.broadcast %81 : vector<1x128xf32> to vector<64x128xf32>
    %88 = arith.mulf %86, %87 : vector<64x128xf32>
    %89 = vector.broadcast %82 : vector<1x128xf32> to vector<64x128xf32>
    %90 = arith.addf %88, %89 : vector<64x128xf32>
    %91 = arith.mulf %90, %6 : vector<64x128xf32>
    %92 = arith.addf %37, %91 : vector<64x128xf32>
    %c8_95 = arith.constant 8 : index
    %c0_96 = arith.constant 0 : index
    %93 = vector.load %arg6[%c8_95, %c0_96] : memref<80x128xf32, #tpu.memory_space<vmem>>, vector<64x128xf32>
    tpu.vector_store %arg6[%c8_95, %c0_96], %92 {strides = array<i32>} : memref<80x128xf32, #tpu.memory_space<vmem>>, vector<64x128xf32>,
    %c4_97 = arith.constant 4 : index
    %c0_98 = arith.constant 0 : index
    %94 = vector.load %arg6[%c4_97, %c0_98] : memref<80x128xf32, #tpu.memory_space<vmem>>, vector<64x128xf32>
    %c0_99 = arith.constant 0 : index
    %c0_100 = arith.constant 0 : index
    %95 = vector.load %arg7[%c0_99, %c0_100] : memref<64x640xf32, #tpu.memory_space<vmem>>, vector<64x128xf32>
    tpu.vector_store %arg7[%c0_99, %c0_100], %94 {strides = array<i32>} : memref<64x640xf32, #tpu.memory_space<vmem>>, vector<64x128xf32>,
    %c6_101 = arith.constant 6 : index
    %c0_102 = arith.constant 0 : index
    %96 = vector.load %arg6[%c6_101, %c0_102] : memref<80x128xf32, #tpu.memory_space<vmem>>, vector<64x128xf32>
    %c0_103 = arith.constant 0 : index
    %c128_104 = arith.constant 128 : index
    %97 = vector.load %arg7[%c0_103, %c128_104] : memref<64x640xf32, #tpu.memory_space<vmem>>, vector<64x128xf32>
    tpu.vector_store %arg7[%c0_103, %c128_104], %96 {strides = array<i32>} : memref<64x640xf32, #tpu.memory_space<vmem>>, vector<64x128xf32>,
    %c8_105 = arith.constant 8 : index
    %c0_106 = arith.constant 0 : index
    %98 = vector.load %arg6[%c8_105, %c0_106] : memref<80x128xf32, #tpu.memory_space<vmem>>, vector<64x128xf32>
    %c0_107 = arith.constant 0 : index
    %c256_108 = arith.constant 256 : index
    %99 = vector.load %arg7[%c0_107, %c256_108] : memref<64x640xf32, #tpu.memory_space<vmem>>, vector<64x128xf32>
    tpu.vector_store %arg7[%c0_107, %c256_108], %98 {strides = array<i32>} : memref<64x640xf32, #tpu.memory_space<vmem>>, vector<64x128xf32>,
    %c10_109 = arith.constant 10 : index
    %c0_110 = arith.constant 0 : index
    %100 = vector.load %arg6[%c10_109, %c0_110] : memref<80x128xf32, #tpu.memory_space<vmem>>, vector<64x128xf32>
    %c0_111 = arith.constant 0 : index
    %c384_112 = arith.constant 384 : index
    %101 = vector.load %arg7[%c0_111, %c384_112] : memref<64x640xf32, #tpu.memory_space<vmem>>, vector<64x128xf32>
    tpu.vector_store %arg7[%c0_111, %c384_112], %100 {strides = array<i32>} : memref<64x640xf32, #tpu.memory_space<vmem>>, vector<64x128xf32>,
    %c12 = arith.constant 12 : index
    %c0_113 = arith.constant 0 : index
    %102 = vector.load %arg6[%c12, %c0_113] : memref<80x128xf32, #tpu.memory_space<vmem>>, vector<64x128xf32>
    %c0_114 = arith.constant 0 : index
    %c512_115 = arith.constant 512 : index
    %103 = vector.load %arg7[%c0_114, %c512_115] : memref<64x640xf32, #tpu.memory_space<vmem>>, vector<64x128xf32>
    tpu.vector_store %arg7[%c0_114, %c512_115], %102 {strides = array<i32>} : memref<64x640xf32, #tpu.memory_space<vmem>>, vector<64x128xf32>,
    %c0_116 = arith.constant 0 : index
    %c0_117 = arith.constant 0 : index
    %104 = vector.load %arg7[%c0_116, %c0_117] : memref<64x640xf32, #tpu.memory_space<vmem>>, vector<64x640xf32>
    %c3_118 = arith.constant 3 : index
    %c0_119 = arith.constant 0 : index
    %c0_120 = arith.constant 0 : index
    %105 = vector.load %arg3[%c3_118, %c0_119, %c0_120] : memref<5x640x128xf32, #tpu.memory_space<vmem>>, vector<1x640x128xf32>
    %106 = vector.shape_cast %105 : vector<1x640x128xf32> to vector<640x128xf32>
    %cst_121 = arith.constant dense<0.000000e+00> : vector<64x128xf32>
    %107 = tpu.matmul %104, %106, %cst_121 {dimension_numbers = #tpu.dot_dimension_numbers<[1], [0], [0], [1], [0, 0, 1, 1], [], []>} : vector<64x640xf32>, vector<640x128xf32>, vector<64x128xf32> -> vector<64x128xf32>
    %c9_122 = arith.constant 9 : index
    %c0_123 = arith.constant 0 : index
    %108 = vector.load %arg4[%c9_122, %c0_123] : memref<16x128xf32, #tpu.memory_space<vmem>>, vector<1x128xf32>
    %c10_124 = arith.constant 10 : index
    %c0_125 = arith.constant 0 : index
    %109 = vector.load %arg4[%c10_124, %c0_125] : memref<16x128xf32, #tpu.memory_space<vmem>>, vector<1x128xf32>
    %c11 = arith.constant 11 : index
    %c0_126 = arith.constant 0 : index
    %110 = vector.load %arg4[%c11, %c0_126] : memref<16x128xf32, #tpu.memory_space<vmem>>, vector<1x128xf32>
    %111 = vector.broadcast %108 : vector<1x128xf32> to vector<64x128xf32>
    %112 = arith.addf %107, %111 : vector<64x128xf32>
    %cst_127 = arith.constant 0.000000e+00 : f32
    %113 = vector.broadcast %cst_127 : f32 to vector<64x128xf32>
    %114 = arith.maximumf %112, %113 : vector<64x128xf32>
    %115 = vector.broadcast %109 : vector<1x128xf32> to vector<64x128xf32>
    %116 = arith.mulf %114, %115 : vector<64x128xf32>
    %117 = vector.broadcast %110 : vector<1x128xf32> to vector<64x128xf32>
    %118 = arith.addf %116, %117 : vector<64x128xf32>
    %119 = arith.mulf %118, %6 : vector<64x128xf32>
    %c8_128 = arith.constant 8 : index
    %c0_129 = arith.constant 0 : index
    %120 = vector.load %arg6[%c8_128, %c0_129] : memref<80x128xf32, #tpu.memory_space<vmem>>, vector<64x128xf32>
    tpu.vector_store %arg6[%c8_128, %c0_129], %119 {strides = array<i32>} : memref<80x128xf32, #tpu.memory_space<vmem>>, vector<64x128xf32>,
    %c4_130 = arith.constant 4 : index
    %c0_131 = arith.constant 0 : index
    %121 = vector.load %arg6[%c4_130, %c0_131] : memref<80x128xf32, #tpu.memory_space<vmem>>, vector<64x128xf32>
    %c0_132 = arith.constant 0 : index
    %c0_133 = arith.constant 0 : index
    %122 = vector.load %arg7[%c0_132, %c0_133] : memref<64x640xf32, #tpu.memory_space<vmem>>, vector<64x128xf32>
    tpu.vector_store %arg7[%c0_132, %c0_133], %121 {strides = array<i32>} : memref<64x640xf32, #tpu.memory_space<vmem>>, vector<64x128xf32>,
    %c6_134 = arith.constant 6 : index
    %c0_135 = arith.constant 0 : index
    %123 = vector.load %arg6[%c6_134, %c0_135] : memref<80x128xf32, #tpu.memory_space<vmem>>, vector<64x128xf32>
    %c0_136 = arith.constant 0 : index
    %c128_137 = arith.constant 128 : index
    %124 = vector.load %arg7[%c0_136, %c128_137] : memref<64x640xf32, #tpu.memory_space<vmem>>, vector<64x128xf32>
    tpu.vector_store %arg7[%c0_136, %c128_137], %123 {strides = array<i32>} : memref<64x640xf32, #tpu.memory_space<vmem>>, vector<64x128xf32>,
    %c8_138 = arith.constant 8 : index
    %c0_139 = arith.constant 0 : index
    %125 = vector.load %arg6[%c8_138, %c0_139] : memref<80x128xf32, #tpu.memory_space<vmem>>, vector<64x128xf32>
    %c0_140 = arith.constant 0 : index
    %c256_141 = arith.constant 256 : index
    %126 = vector.load %arg7[%c0_140, %c256_141] : memref<64x640xf32, #tpu.memory_space<vmem>>, vector<64x128xf32>
    tpu.vector_store %arg7[%c0_140, %c256_141], %125 {strides = array<i32>} : memref<64x640xf32, #tpu.memory_space<vmem>>, vector<64x128xf32>,
    %c10_142 = arith.constant 10 : index
    %c0_143 = arith.constant 0 : index
    %127 = vector.load %arg6[%c10_142, %c0_143] : memref<80x128xf32, #tpu.memory_space<vmem>>, vector<64x128xf32>
    %c0_144 = arith.constant 0 : index
    %c384_145 = arith.constant 384 : index
    %128 = vector.load %arg7[%c0_144, %c384_145] : memref<64x640xf32, #tpu.memory_space<vmem>>, vector<64x128xf32>
    tpu.vector_store %arg7[%c0_144, %c384_145], %127 {strides = array<i32>} : memref<64x640xf32, #tpu.memory_space<vmem>>, vector<64x128xf32>,
    %c12_146 = arith.constant 12 : index
    %c0_147 = arith.constant 0 : index
    %129 = vector.load %arg6[%c12_146, %c0_147] : memref<80x128xf32, #tpu.memory_space<vmem>>, vector<64x128xf32>
    %c0_148 = arith.constant 0 : index
    %c512_149 = arith.constant 512 : index
    %130 = vector.load %arg7[%c0_148, %c512_149] : memref<64x640xf32, #tpu.memory_space<vmem>>, vector<64x128xf32>
    tpu.vector_store %arg7[%c0_148, %c512_149], %129 {strides = array<i32>} : memref<64x640xf32, #tpu.memory_space<vmem>>, vector<64x128xf32>,
    %c0_150 = arith.constant 0 : index
    %c0_151 = arith.constant 0 : index
    %131 = vector.load %arg7[%c0_150, %c0_151] : memref<64x640xf32, #tpu.memory_space<vmem>>, vector<64x640xf32>
    %c4_152 = arith.constant 4 : index
    %c0_153 = arith.constant 0 : index
    %c0_154 = arith.constant 0 : index
    %132 = vector.load %arg3[%c4_152, %c0_153, %c0_154] : memref<5x640x128xf32, #tpu.memory_space<vmem>>, vector<1x640x128xf32>
    %133 = vector.shape_cast %132 : vector<1x640x128xf32> to vector<640x128xf32>
    %cst_155 = arith.constant dense<0.000000e+00> : vector<64x128xf32>
    %134 = tpu.matmul %131, %133, %cst_155 {dimension_numbers = #tpu.dot_dimension_numbers<[1], [0], [0], [1], [0, 0, 1, 1], [], []>} : vector<64x640xf32>, vector<640x128xf32>, vector<64x128xf32> -> vector<64x128xf32>
    %c12_156 = arith.constant 12 : index
    %c0_157 = arith.constant 0 : index
    %135 = vector.load %arg4[%c12_156, %c0_157] : memref<16x128xf32, #tpu.memory_space<vmem>>, vector<1x128xf32>
    %c13 = arith.constant 13 : index
    %c0_158 = arith.constant 0 : index
    %136 = vector.load %arg4[%c13, %c0_158] : memref<16x128xf32, #tpu.memory_space<vmem>>, vector<1x128xf32>
    %c14 = arith.constant 14 : index
    %c0_159 = arith.constant 0 : index
    %137 = vector.load %arg4[%c14, %c0_159] : memref<16x128xf32, #tpu.memory_space<vmem>>, vector<1x128xf32>
    %138 = vector.broadcast %135 : vector<1x128xf32> to vector<64x128xf32>
    %139 = arith.addf %134, %138 : vector<64x128xf32>
    %cst_160 = arith.constant 0.000000e+00 : f32
    %140 = vector.broadcast %cst_160 : f32 to vector<64x128xf32>
    %141 = arith.maximumf %139, %140 : vector<64x128xf32>
    %142 = vector.broadcast %136 : vector<1x128xf32> to vector<64x128xf32>
    %143 = arith.mulf %141, %142 : vector<64x128xf32>
    %144 = vector.broadcast %137 : vector<1x128xf32> to vector<64x128xf32>
    %145 = arith.addf %143, %144 : vector<64x128xf32>
    %146 = arith.mulf %145, %6 : vector<64x128xf32>
    %147 = arith.addf %92, %146 : vector<64x128xf32>
    %c0_161 = arith.constant 0 : index
    %c0_162 = arith.constant 0 : index
    %c0_163 = arith.constant 0 : index
    %148 = vector.load %arg5[%c0_161, %c0_162, %c0_163] : memref<1x64x128xf32, #tpu.memory_space<vmem>>, vector<1x64x128xf32>
    %149 = vector.shape_cast %148 : vector<1x64x128xf32> to vector<64x128xf32>
    %150 = vector.shape_cast %147 : vector<64x128xf32> to vector<1x64x128xf32>
    tpu.vector_store %arg5[%c0_161, %c0_162, %c0_163], %150 {strides = array<i32>} : memref<1x64x128xf32, #tpu.memory_space<vmem>>, vector<1x64x128xf32>,
    return
  }
  func.func @transform_0(%arg0: i32, %arg1: memref<4xi32, #tpu.memory_space<smem>>) -> (i32, i32, i32) {
    %c0_i32 = arith.constant 0 : i32
    %c0_i32_0 = arith.constant 0 : i32
    %c0_i32_1 = arith.constant 0 : i32
    return %arg0, %c0_i32, %c0_i32_0 : i32, i32, i32
  }
  func.func @transform_1(%arg0: i32, %arg1: memref<4xi32, #tpu.memory_space<smem>>) -> (i32, i32, i32) {
    %c0_i32 = arith.constant 0 : i32
    %c0_i32_0 = arith.constant 0 : i32
    %c0_i32_1 = arith.constant 0 : i32
    %c0_i32_2 = arith.constant 0 : i32
    return %c0_i32, %c0_i32_0, %c0_i32_1 : i32, i32, i32
  }
  func.func @transform_2(%arg0: i32, %arg1: memref<4xi32, #tpu.memory_space<smem>>) -> (i32, i32) {
    %c0_i32 = arith.constant 0 : i32
    %c0_i32_0 = arith.constant 0 : i32
    %c0_i32_1 = arith.constant 0 : i32
    return %c0_i32, %c0_i32_0 : i32, i32
  }
  func.func @transform_3(%arg0: i32, %arg1: memref<4xi32, #tpu.memory_space<smem>>) -> (i32, i32, i32) {
    %c0_i32 = arith.constant 0 : i32
    %c0_i32_0 = arith.constant 0 : i32
    %c0_i32_1 = arith.constant 0 : i32
    return %arg0, %c0_i32, %c0_i32_0 : i32, i32, i32
  }
}

</mosaic_0001>

<llo_original>
// kernel: tpu_custom_call.1
$region0: #{tpu_custom_call.1}
  #allocation0 [shape = 'u32[]', space=smem, size = 0x4, offset = 0x4, fixed_abs, tag = 'smem constant byte address 0x4 - core index']
  #allocation1 [shape = 'u32[144,128]{1,0:T(1,128)}', space=vmem, size = 0x12000, scoped, tag = 'internal scratch']
  #allocation2 [shape = 'f32[80,128]{1,0:T(8,128)}', space=vmem, size = 0xa000, scoped, tag = 'scratch operand']
  #allocation3 [shape = 'f32[64,640]{1,0:T(8,128)}', space=vmem, size = 0x28000, scoped, tag = 'scratch operand']
  #allocation4 [shape = 's32[1]{0}', space=sflag, size = 0x4, scoped, tag = 'scoped memory for tpu_custom_call.1']
  #allocation5 [shape = 'u8[512]{0}', space=smem, size = 0x200, scoped, tag = 'prefetched SMEM operand 0']
  %s0 = inlined_call_operand.hbm [shape: s32[4], index: 0, kind: input, shape index: {}]
  %s1 = inlined_call_operand.hbm [shape: f32[4,64,128], index: 1, kind: input, shape index: {}]
  %s2 = inlined_call_operand.hbm [shape: f32[5,640,128], index: 2, kind: input, shape index: {}]
  %s3 = inlined_call_operand.hbm [shape: f32[16,128], index: 3, kind: input, shape index: {}]
  %s4 = inlined_call_operand.hbm [shape: f32[4,64,128], index: 4, kind: output, shape index: {}]
  %s5 = sld [smem:[#allocation0]]
  $region57: #{tpu_custom_call.1} parent=0
    _
  %s7 = ssub.s32 1, %s5
  %s8 = scalar_select 0, %s7, %s5
  %10 = dma.hbm_to_smem %s0, 16, [#allocation5], [#allocation4]
  %11 = dma.done [#allocation4], 16
  %12 = sfence
  $region1: #{tpu_custom_call.1} parent=0
    #allocation6 [shape = 'u8[65536]{0}', space=vmem, size = 0x10000, scoped, tag = 'input window, operand 1']
    #allocation7 [shape = 's32[2]{0}', space=sflag, size = 0x8, scoped, tag = 'scoped memory for tpu_custom_call.1']
    #allocation8 [shape = 's32[2]{0}', space=sflag, size = 0x8, scoped, tag = 'scoped memory for tpu_custom_call.1']
    #allocation9 [shape = 'u8[1638400]{0}', space=vmem, size = 0x190000, scoped, tag = 'input window, operand 2, single buffered']
    #allocation10 [shape = 's32[1]{0}', space=sflag, size = 0x4, scoped, tag = 'scoped memory for tpu_custom_call.1']
    #allocation11 [shape = 'u8[8192]{0}', space=vmem, size = 0x2000, scoped, tag = 'input window, operand 3, single buffered']
    #allocation12 [shape = 'u8[65536]{0}', space=vmem, size = 0x10000, scoped, tag = 'output window, operand 0']
    %13 = vsyncpa [#allocation7], 0
    %s14 = scalar_lea.sflag [#allocation7], 1
    %15 = vsyncpa %s14, 0
    %16 = vsyncpa [#allocation10], 0
    %17 = vsyncpa [#allocation8], 0
    %s18 = scalar_lea.sflag [#allocation8], 1
    %19 = vsyncpa %s18, 0
    loop: start=0, step=1, limit=6
    $region2: #{tpu_custom_call.1} parent=1 // loop_pre_header
      _
    $region3: #{tpu_custom_call.1} parent=1 // loop_header
      %s21 = sphi 0, %s25
      %p22 = scmp.ge.s32.totalorder %s21, 6
      %s31 = sphi 0, %s33
      %s34 = sphi 0, %s31
      %s35 = sphi 0, %s34
      %s51 = sphi 0, %s35
      %s55 = sphi 0, %s55
      %s57 = sphi 0, %s55
      %s58 = sphi 0, %s57
      %s72 = sphi 0, %s58
      %s76 = sphi 0, %s76
      %s78 = sphi 0, %s76
      %s79 = sphi 0, %s78
      %s93 = sphi 0, %s79
      %s99 = sphi 0, %s101
      %s102 = sphi 0, %s99
      %s103 = sphi 0, %s102
      %s119 = sphi 0, %s103
    $region4: #{tpu_custom_call.1} parent=1 // loop_header_branch
      %24 = sbr.rel (%p22) target = $region8
    $region5: #{tpu_custom_call.1} parent=1 // loop_body
      %s26 = ssub.s32 %s21, 1
      %s27 = ssub.s32 %s21, 2
      %s28 = sadd.s32 %s21, 1
      %s29 = ssub.s32 %s21, %s28
      %p30 = scmp.eq.s32.totalorder %s29, 0
      %s32 = sadd.s32 %s31, 1
      %s33 = scalar_select %p30, %s31, %s32
      %p36 = pneg %p30
      %p37 = scmp.eq.s32.totalorder %s21, 3
      %p38 = por %p36, %p37
      %p39 = scmp.ne.s32.totalorder %s31, %s34
      %p40 = scmp.eq.s32.totalorder %s21, 0
      %p41 = por %p39, %p40
      %p42 = scmp.ne.s32.totalorder %s31, %s34
      %p43 = scmp.eq.s32.totalorder %s26, 3
      %p44 = por %p42, %p43
      %p45 = scmp.ne.s32.totalorder %s34, %s35
      %p46 = scmp.eq.s32.totalorder %s26, 0
      %p47 = por %p45, %p46
      %p48 = scmp.ne.s32.totalorder %s34, %s35
      %p49 = scmp.eq.s32.totalorder %s27, 3
      %p50 = por %p48, %p49
      %p52 = scmp.ne.s32.totalorder %s35, %s51
      %p53 = scmp.eq.s32.totalorder %s27, 0
      %p54 = por %p52, %p53
      %s56 = sadd.s32 %s55, 1
      %p59 = scmp.eq.s32.totalorder %s21, 3
      %p60 = scmp.ne.s32.totalorder %s55, %s57
      %p61 = scmp.eq.s32.totalorder %s21, 0
      %p62 = por %p60, %p61
      %p63 = scmp.ne.s32.totalorder %s55, %s57
      %p64 = scmp.eq.s32.totalorder %s26, 3
      %p65 = por %p63, %p64
      %p66 = scmp.ne.s32.totalorder %s57, %s58
      %p67 = scmp.eq.s32.totalorder %s26, 0
      %p68 = por %p66, %p67
      %p69 = scmp.ne.s32.totalorder %s57, %s58
      %p70 = scmp.eq.s32.totalorder %s27, 3
      %p71 = por %p69, %p70
      %p73 = scmp.ne.s32.totalorder %s58, %s72
      %p74 = scmp.eq.s32.totalorder %s27, 0
      %p75 = por %p73, %p74
      %s77 = sadd.s32 %s76, 1
      %p80 = scmp.eq.s32.totalorder %s21, 3
      %p81 = scmp.ne.s32.totalorder %s76, %s78
      %p82 = scmp.eq.s32.totalorder %s21, 0
      %p83 = por %p81, %p82
      %p84 = scmp.ne.s32.totalorder %s76, %s78
      %p85 = scmp.eq.s32.totalorder %s26, 3
      %p86 = por %p84, %p85
      %p87 = scmp.ne.s32.totalorder %s78, %s79
      %p88 = scmp.eq.s32.totalorder %s26, 0
      %p89 = por %p87, %p88
      %p90 = scmp.ne.s32.totalorder %s78, %s79
      %p91 = scmp.eq.s32.totalorder %s27, 3
      %p92 = por %p90, %p91
      %p94 = scmp.ne.s32.totalorder %s79, %s93
      %p95 = scmp.eq.s32.totalorder %s27, 0
      %p96 = por %p94, %p95
      %s97 = ssub.s32 %s21, %s28
      %p98 = scmp.eq.s32.totalorder %s97, 0
      %s100 = sadd.s32 %s99, 1
      %s101 = scalar_select %p98, %s99, %s100
      %p104 = pneg %p98
      %p105 = scmp.eq.s32.totalorder %s21, 3
      %p106 = por %p104, %p105
      %p107 = scmp.ne.s32.totalorder %s99, %s102
      %p108 = scmp.eq.s32.totalorder %s21, 0
      %p109 = por %p107, %p108
      %p110 = scmp.ne.s32.totalorder %s99, %s102
      %p111 = scmp.eq.s32.totalorder %s26, 3
      %p112 = por %p110, %p111
      %p113 = scmp.ne.s32.totalorder %s102, %s103
      %p114 = scmp.eq.s32.totalorder %s26, 0
      %p115 = por %p113, %p114
      %p116 = scmp.ne.s32.totalorder %s102, %s103
      %p117 = scmp.eq.s32.totalorder %s27, 3
      %p118 = por %p116, %p117
      %p120 = scmp.ne.s32.totalorder %s103, %s119
      %p121 = scmp.eq.s32.totalorder %s27, 0
      %p122 = por %p120, %p121
      %p123 = scmp.le.s32.totalorder 1, %s21
      %p124 = scmp.lt.s32.totalorder %s21, 5
      %p125 = pnand %p123, %p124
      %p126 = pneg %p125
      // Predicated region
      $region9: #{tpu_custom_call.1} parent=5 // pred_check
        _
      $region10: #{tpu_custom_call.1} parent=5 // pred_check_branch
        %128 = sbr.rel (%p125) target = $region12
      $region11: #{tpu_custom_call.1} parent=5 // pred_region
        %s129 = ssub.s32 %s21, 1
        // Predicated region
        $region13: #{tpu_custom_call.1} parent=11 // pred_check
          %p130 = pneg %p68
        $region14: #{tpu_custom_call.1} parent=11 // pred_check_branch
          %132 = sbr.rel (%p130) target = $region16
        $region15: #{tpu_custom_call.1} parent=11 // pred_region
          %s134 = ssub.s32 51200, 51200
          %135 = vsyncadd [#allocation10], %s134
          %s136 = sshll.u32 [#allocation9], 4
          %s137 = int_to_ptr.vmem [resolvable:$true] %s136
          %142 = dma.hbm_to_vmem [thread:$0]  %s2, 51200, %s137, [#allocation10], 128, 128, 8
        $region16: #{tpu_custom_call.1} parent=11 // pred_fallthru
          _
        // Predicated region
        $region17: #{tpu_custom_call.1} parent=11 // pred_check
          %p143 = pneg %p89
        $region18: #{tpu_custom_call.1} parent=11 // pred_check_branch
          %145 = sbr.rel (%p143) target = $region20
        $region19: #{tpu_custom_call.1} parent=11 // pred_region
          %s147 = ssub.s32 256, 256
          %148 = vsyncadd [#allocation10], %s147
          %s149 = sshll.u32 [#allocation11], 4
          %s150 = int_to_ptr.vmem [resolvable:$true] %s149
          %155 = dma.hbm_to_vmem [thread:$0]  %s3, 256, %s150, [#allocation10], 128, 128, 8
        $region20: #{tpu_custom_call.1} parent=11 // pred_fallthru
          _
      $region12: #{tpu_custom_call.1} parent=5 // pred_fallthru
        _
      %p156 = scmp.lt.s32.totalorder %s21, 4
      // Predicated region
      $region21: #{tpu_custom_call.1} parent=5 // pred_check
        %p157 = pneg %p156
      $region22: #{tpu_custom_call.1} parent=5 // pred_check_branch
        %159 = sbr.rel (%p157) target = $region24
      $region23: #{tpu_custom_call.1} parent=5 // pred_region
        // Predicated region
        $region25: #{tpu_custom_call.1} parent=23 // pred_check
          %p160 = pneg %p41
        $region26: #{tpu_custom_call.1} parent=23 // pred_check_branch
          %162 = sbr.rel (%p160) target = $region28
        $region27: #{tpu_custom_call.1} parent=23 // pred_region
          %s163 = sand.u32 %s31, 1
          %s164 = scalar_lea.sflag [#allocation7], %s163
          %s165 = sand.u32 %s31, 1
          %s166 = smul.addr %s165, 64
          %s167 = scalar_lea.vmem [#allocation6], %s166
          %s169 = ssub.s32 1024, 1024
          %170 = vsyncadd %s164, %s169
          %s171 = smul.addr %s21, 8
          %s172 = smul.addr %s171, 128
          %s173 = scalar_lea.hbm %s1, %s172
          %s174 = sshll.u32 %s167, 4
          %s175 = int_to_ptr.vmem [resolvable:$true] %s174
          %180 = dma.hbm_to_vmem [thread:$0]  %s173, 1024, %s175, %s164, 128, 128, 8
        $region28: #{tpu_custom_call.1} parent=23 // pred_fallthru
          _
      $region24: #{tpu_custom_call.1} parent=5 // pred_fallthru
        _
      %p181 = scmp.le.s32.totalorder 1, %s21
      %p182 = scmp.lt.s32.totalorder %s21, 5
      %p183 = pnand %p181, %p182
      %p184 = pneg %p183
      // Predicated region
      $region29: #{tpu_custom_call.1} parent=5 // pred_check
        _
      $region30: #{tpu_custom_call.1} parent=5 // pred_check_branch
        %186 = sbr.rel (%p183) target = $region32
      $region31: #{tpu_custom_call.1} parent=5 // pred_region
        %s187 = ssub.s32 %s21, 1
        %s188 = sand.u32 %s34, 1
        %s189 = scalar_lea.sflag [#allocation7], %s188
        %s190 = sand.u32 %s34, 1
        %s191 = smul.addr %s190, 64
        %s192 = scalar_lea.vmem [#allocation6], %s191
        // Predicated region
        $region33: #{tpu_custom_call.1} parent=31 // pred_check
          %p193 = pneg %p47
        $region34: #{tpu_custom_call.1} parent=31 // pred_check_branch
          %195 = sbr.rel (%p193) target = $region36
        $region35: #{tpu_custom_call.1} parent=31 // pred_region
          %196 = dma.done %s189, 1024
        $region36: #{tpu_custom_call.1} parent=31 // pred_fallthru
          _
        // Predicated region
        $region37: #{tpu_custom_call.1} parent=31 // pred_check
          %p197 = pneg %p68
        $region38: #{tpu_custom_call.1} parent=31 // pred_check_branch
          %199 = sbr.rel (%p197) target = $region40
        $region39: #{tpu_custom_call.1} parent=31 // pred_region
          %200 = dma.done [#allocation10], 51200
        $region40: #{tpu_custom_call.1} parent=31 // pred_fallthru
          _
        // Predicated region
        $region41: #{tpu_custom_call.1} parent=31 // pred_check
          %p201 = pneg %p89
        $region42: #{tpu_custom_call.1} parent=31 // pred_check_branch
          %203 = sbr.rel (%p201) target = $region44
        $region43: #{tpu_custom_call.1} parent=31 // pred_region
          %204 = dma.done [#allocation10], 256
        $region44: #{tpu_custom_call.1} parent=31 // pred_fallthru
          _
        %s205 = sand.u32 %s34, 1
        %s206 = scalar_lea.sflag [#allocation7], %s205
        %s207 = sand.u32 %s34, 1
        %s208 = smul.addr %s207, 64
        %s209 = scalar_lea.vmem [#allocation6], %s208
        %p210 = pneg %p47
        %p211 = pneg %p44
        %p212 = pneg %p68
        %p213 = pneg %p65
        %p214 = pneg %p89
        %p215 = pneg %p86
        %p216 = pneg %p115
        %p217 = pneg %p112
        %s218 = sand.u32 %s102, 1
        %s219 = scalar_lea.sflag [#allocation8], %s218
        %s220 = sand.u32 %s102, 1
        %s221 = smul.addr %s220, 64
        %s222 = scalar_lea.vmem [#allocation12], %s221
        %s223 = sld [smem:[#allocation5 + %s26]]
        %v224 = vlaneseq
        %v225 = vshrl.u32 %v224, 7
        %v226 = vadd.s32 %v225, 8
        %v227 = vadd.s32 %v225, 16
        %v228 = vadd.s32 %v225, 24
        %v229 = vadd.s32 %v225, 32
        %v230 = vadd.s32 %v225, 40
        %v231 = vadd.s32 %v225, 48
        %v232 = vadd.s32 %v225, 56
        %v233 = vstv %s223
        %vm234 = vcmp.lt.s32.totalorder %v225, %v233
        %vm235 = vcmp.lt.s32.totalorder %v226, %v233
        %vm236 = vcmp.lt.s32.totalorder %v227, %v233
        %vm237 = vcmp.lt.s32.totalorder %v228, %v233
        %vm238 = vcmp.lt.s32.totalorder %v229, %v233
        %vm239 = vcmp.lt.s32.totalorder %v230, %v233
        %vm240 = vcmp.lt.s32.totalorder %v231, %v233
        %vm241 = vcmp.lt.s32.totalorder %v232, %v233
        %v242 = vsel %vm234, 1, 0
        %v243 = vsel %vm235, 1, 0
        %v244 = vsel %vm236, 1, 0
        %v245 = vsel %vm237, 1, 0
        %v246 = vsel %vm238, 1, 0
        %v247 = vsel %vm239, 1, 0
        %v248 = vsel %vm240, 1, 0
        %v249 = vsel %vm241, 1, 0
        %v250 = vcvt.s32.f32 %v242
        %v251 = vcvt.s32.f32 %v243
        %v252 = vcvt.s32.f32 %v244
        %v253 = vcvt.s32.f32 %v245
        %v254 = vcvt.s32.f32 %v246
        %v255 = vcvt.s32.f32 %v247
        %v256 = vcvt.s32.f32 %v248
        %v257 = vcvt.s32.f32 %v249
        %258 = vst [vmem:[#allocation2] sm:$0xff] 0.0
        %259 = vst [vmem:[#allocation2 + $0x8] sm:$0xff] 0.0
        %260 = vst [vmem:[#allocation2 + $0x10] sm:$0xff] 0.0
        %261 = vst [vmem:[#allocation2 + $0x18] sm:$0xff] 0.0
        %262 = vst [vmem:[#allocation2 + $0x20] sm:$0xff] 0.0
        %263 = vst [vmem:[#allocation2 + $0x28] sm:$0xff] 0.0
        %264 = vst [vmem:[#allocation2 + $0x30] sm:$0xff] 0.0
        %265 = vst [vmem:[#allocation2 + $0x38] sm:$0xff] 0.0
        %266 = vst [vmem:[#allocation2 + $0x40] sm:$0xff] 0.0
        %267 = vst [vmem:[#allocation2 + $0x48] sm:$0xff] 0.0
        %v268 = vld [vmem:[%s192] sm:$0xff]
        %v269 = vld [vmem:[%s192 + $0x8] sm:$0xff]
        %v270 = vld [vmem:[%s192 + $0x10] sm:$0xff]
        %v271 = vld [vmem:[%s192 + $0x18] sm:$0xff]
        %v272 = vld [vmem:[%s192 + $0x20] sm:$0xff]
        %v273 = vld [vmem:[%s192 + $0x28] sm:$0xff]
        %v274 = vld [vmem:[%s192 + $0x30] sm:$0xff]
        %v275 = vld [vmem:[%s192 + $0x38] sm:$0xff]
        %276 = vst [vmem:[#allocation2 + $0x8] sm:$0xff] %v268
        %277 = vst [vmem:[#allocation2 + $0x10] sm:$0xff] %v269
        %278 = vst [vmem:[#allocation2 + $0x18] sm:$0xff] %v270
        %279 = vst [vmem:[#allocation2 + $0x20] sm:$0xff] %v271
        %280 = vst [vmem:[#allocation2 + $0x28] sm:$0xff] %v272
        %281 = vst [vmem:[#allocation2 + $0x30] sm:$0xff] %v273
        %282 = vst [vmem:[#allocation2 + $0x38] sm:$0xff] %v274
        %283 = vst [vmem:[#allocation2 + $0x40] sm:$0xff] %v275
        %v284 = vld [vmem:[#allocation2 + $0x6] sm:$0xff]
        %v285 = vld [vmem:[#allocation2 + $0xe] sm:$0xff]
        %v286 = vld [vmem:[#allocation2 + $0x16] sm:$0xff]
        %v287 = vld [vmem:[#allocation2 + $0x1e] sm:$0xff]
        %v288 = vld [vmem:[#allocation2 + $0x26] sm:$0xff]
        %v289 = vld [vmem:[#allocation2 + $0x2e] sm:$0xff]
        %v290 = vld [vmem:[#allocation2 + $0x36] sm:$0xff]
        %v291 = vld [vmem:[#allocation2 + $0x3e] sm:$0xff]
        %292 = vst [vmem:[#allocation3] sm:$0xff] %v284
        %293 = vst [vmem:[#allocation3 + $0x28] sm:$0xff] %v285
        %294 = vst [vmem:[#allocation3 + $0x50] sm:$0xff] %v286
        %295 = vst [vmem:[#allocation3 + $0x78] sm:$0xff] %v287
        %296 = vst [vmem:[#allocation3 + $0xa0] sm:$0xff] %v288
        %297 = vst [vmem:[#allocation3 + $0xc8] sm:$0xff] %v289
        %298 = vst [vmem:[#allocation3 + $0xf0] sm:$0xff] %v290
        %299 = vst [vmem:[#allocation3 + $0x118] sm:$0xff] %v291
        %v300 = vld [vmem:[#allocation2 + $0x7] sm:$0xff]
        %v301 = vld [vmem:[#allocation2 + $0xf] sm:$0xff]
        %v302 = vld [vmem:[#allocation2 + $0x17] sm:$0xff]
        %v303 = vld [vmem:[#allocation2 + $0x1f] sm:$0xff]
        %v304 = vld [vmem:[#allocation2 + $0x27] sm:$0xff]
        %v305 = vld [vmem:[#allocation2 + $0x2f] sm:$0xff]
        %v306 = vld [vmem:[#allocation2 + $0x37] sm:$0xff]
        %v307 = vld [vmem:[#allocation2 + $0x3f] sm:$0xff]
        %308 = vst [vmem:[#allocation3 + $0x8] sm:$0xff] %v300
        %309 = vst [vmem:[#allocation3 + $0x30] sm:$0xff] %v301
        %310 = vst [vmem:[#allocation3 + $0x58] sm:$0xff] %v302
        %311 = vst [vmem:[#allocation3 + $0x80] sm:$0xff] %v303
        %312 = vst [vmem:[#allocation3 + $0xa8] sm:$0xff] %v304
        %313 = vst [vmem:[#allocation3 + $0xd0] sm:$0xff] %v305
        %314 = vst [vmem:[#allocation3 + $0xf8] sm:$0xff] %v306
        %315 = vst [vmem:[#allocation3 + $0x120] sm:$0xff] %v307
        %v316 = vld [vmem:[#allocation2 + $0x8] sm:$0xff]
        %v317 = vld [vmem:[#allocation2 + $0x10] sm:$0xff]
        %v318 = vld [vmem:[#allocation2 + $0x18] sm:$0xff]
        %v319 = vld [vmem:[#allocation2 + $0x20] sm:$0xff]
        %v320 = vld [vmem:[#allocation2 + $0x28] sm:$0xff]
        %v321 = vld [vmem:[#allocation2 + $0x30] sm:$0xff]
        %v322 = vld [vmem:[#allocation2 + $0x38] sm:$0xff]
        %v323 = vld [vmem:[#allocation2 + $0x40] sm:$0xff]
        %324 = vst [vmem:[#allocation3 + $0x10] sm:$0xff] %v316
        %325 = vst [vmem:[#allocation3 + $0x38] sm:$0xff] %v317
        %326 = vst [vmem:[#allocation3 + $0x60] sm:$0xff] %v318
        %327 = vst [vmem:[#allocation3 + $0x88] sm:$0xff] %v319
        %328 = vst [vmem:[#allocation3 + $0xb0] sm:$0xff] %v320
        %329 = vst [vmem:[#allocation3 + $0xd8] sm:$0xff] %v321
        %330 = vst [vmem:[#allocation3 + $0x100] sm:$0xff] %v322
        %331 = vst [vmem:[#allocation3 + $0x128] sm:$0xff] %v323
        %v332 = vld [vmem:[#allocation2 + $0x9] sm:$0xff]
        %v333 = vld [vmem:[#allocation2 + $0x11] sm:$0xff]
        %v334 = vld [vmem:[#allocation2 + $0x19] sm:$0xff]
        %v335 = vld [vmem:[#allocation2 + $0x21] sm:$0xff]
        %v336 = vld [vmem:[#allocation2 + $0x29] sm:$0xff]
        %v337 = vld [vmem:[#allocation2 + $0x31] sm:$0xff]
        %v338 = vld [vmem:[#allocation2 + $0x39] sm:$0xff]
        %v339 = vld [vmem:[#allocation2 + $0x41] sm:$0xff]
        %340 = vst [vmem:[#allocation3 + $0x18] sm:$0xff] %v332
        %341 = vst [vmem:[#allocation3 + $0x40] sm:$0xff] %v333
        %342 = vst [vmem:[#allocation3 + $0x68] sm:$0xff] %v334
        %343 = vst [vmem:[#allocation3 + $0x90] sm:$0xff] %v335
        %344 = vst [vmem:[#allocation3 + $0xb8] sm:$0xff] %v336
        %345 = vst [vmem:[#allocation3 + $0xe0] sm:$0xff] %v337
        %346 = vst [vmem:[#allocation3 + $0x108] sm:$0xff] %v338
        %347 = vst [vmem:[#allocation3 + $0x130] sm:$0xff] %v339
        %v348 = vld [vmem:[#allocation2 + $0xa] sm:$0xff]
        %v349 = vld [vmem:[#allocation2 + $0x12] sm:$0xff]
        %v350 = vld [vmem:[#allocation2 + $0x1a] sm:$0xff]
        %v351 = vld [vmem:[#allocation2 + $0x22] sm:$0xff]
        %v352 = vld [vmem:[#allocation2 + $0x2a] sm:$0xff]
        %v353 = vld [vmem:[#allocation2 + $0x32] sm:$0xff]
        %v354 = vld [vmem:[#allocation2 + $0x3a] sm:$0xff]
        %v355 = vld [vmem:[#allocation2 + $0x42] sm:$0xff]
        %356 = vst [vmem:[#allocation3 + $0x20] sm:$0xff] %v348
        %357 = vst [vmem:[#allocation3 + $0x48] sm:$0xff] %v349
        %358 = vst [vmem:[#allocation3 + $0x70] sm:$0xff] %v350
        %359 = vst [vmem:[#allocation3 + $0x98] sm:$0xff] %v351
        %360 = vst [vmem:[#allocation3 + $0xc0] sm:$0xff] %v352
        %361 = vst [vmem:[#allocation3 + $0xe8] sm:$0xff] %v353
        %362 = vst [vmem:[#allocation3 + $0x110] sm:$0xff] %v354
        %363 = vst [vmem:[#allocation3 + $0x138] sm:$0xff] %v355
        %v364 = vld [vmem:[#allocation3] sm:$0xff]
        %v365 = vld [vmem:[#allocation3 + $0x8] sm:$0xff]
        %v366 = vld [vmem:[#allocation3 + $0x10] sm:$0xff]
        %v367 = vld [vmem:[#allocation3 + $0x18] sm:$0xff]
        %v368 = vld [vmem:[#allocation3 + $0x20] sm:$0xff]
        %v369 = vld [vmem:[#allocation3 + $0x28] sm:$0xff]
        %v370 = vld [vmem:[#allocation3 + $0x30] sm:$0xff]
        %v371 = vld [vmem:[#allocation3 + $0x38] sm:$0xff]
        %v372 = vld [vmem:[#allocation3 + $0x40] sm:$0xff]
        %v373 = vld [vmem:[#allocation3 + $0x48] sm:$0xff]
        %v374 = vld [vmem:[#allocation3 + $0x50] sm:$0xff]
        %v375 = vld [vmem:[#allocation3 + $0x58] sm:$0xff]
        %v376 = vld [vmem:[#allocation3 + $0x60] sm:$0xff]
        %v377 = vld [vmem:[#allocation3 + $0x68] sm:$0xff]
        %v378 = vld [vmem:[#allocation3 + $0x70] sm:$0xff]
        %v379 = vld [vmem:[#allocation3 + $0x78] sm:$0xff]
        %v380 = vld [vmem:[#allocation3 + $0x80] sm:$0xff]
        %v381 = vld [vmem:[#allocation3 + $0x88] sm:$0xff]
        %v382 = vld [vmem:[#allocation3 + $0x90] sm:$0xff]
        %v383 = vld [vmem:[#allocation3 + $0x98] sm:$0xff]
        %v384 = vld [vmem:[#allocation3 + $0xa0] sm:$0xff]
        %v385 = vld [vmem:[#allocation3 + $0xa8] sm:$0xff]
        %v386 = vld [vmem:[#allocation3 + $0xb0] sm:$0xff]
        %v387 = vld [vmem:[#allocation3 + $0xb8] sm:$0xff]
        %v388 = vld [vmem:[#allocation3 + $0xc0] sm:$0xff]
        %v389 = vld [vmem:[#allocation3 + $0xc8] sm:$0xff]
        %v390 = vld [vmem:[#allocation3 + $0xd0] sm:$0xff]
        %v391 = vld [vmem:[#allocation3 + $0xd8] sm:$0xff]
        %v392 = vld [vmem:[#allocation3 + $0xe0] sm:$0xff]
        %v393 = vld [vmem:[#allocation3 + $0xe8] sm:$0xff]
        %v394 = vld [vmem:[#allocation3 + $0xf0] sm:$0xff]
        %v395 = vld [vmem:[#allocation3 + $0xf8] sm:$0xff]
        %v396 = vld [vmem:[#allocation3 + $0x100] sm:$0xff]
        %v397 = vld [vmem:[#allocation3 + $0x108] sm:$0xff]
        %v398 = vld [vmem:[#allocation3 + $0x110] sm:$0xff]
        %v399 = vld [vmem:[#allocation3 + $0x118] sm:$0xff]
        %v400 = vld [vmem:[#allocation3 + $0x120] sm:$0xff]
        %v401 = vld [vmem:[#allocation3 + $0x128] sm:$0xff]
        %v402 = vld [vmem:[#allocation3 + $0x130] sm:$0xff]
        %v403 = vld [vmem:[#allocation3 + $0x138] sm:$0xff]
        %v404 = vld [vmem:[#allocation9] sm:$0xff]
        %v405 = vld [vmem:[#allocation9 + $0x8] sm:$0xff]
        %v406 = vld [vmem:[#allocation9 + $0x10] sm:$0xff]
        %v407 = vld [vmem:[#allocation9 + $0x18] sm:$0xff]
        %v408 = vld [vmem:[#allocation9 + $0x20] sm:$0xff]
        %v409 = vld [vmem:[#allocation9 + $0x28] sm:$0xff]
        %v410 = vld [vmem:[#allocation9 + $0x30] sm:$0xff]
        %v411 = vld [vmem:[#allocation9 + $0x38] sm:$0xff]
        %v412 = vld [vmem:[#allocation9 + $0x40] sm:$0xff]
        %v413 = vld [vmem:[#allocation9 + $0x48] sm:$0xff]
        %v414 = vld [vmem:[#allocation9 + $0x50] sm:$0xff]
        %v415 = vld [vmem:[#allocation9 + $0x58] sm:$0xff]
        %v416 = vld [vmem:[#allocation9 + $0x60] sm:$0xff]
        %v417 = vld [vmem:[#allocation9 + $0x68] sm:$0xff]
        %v418 = vld [vmem:[#allocation9 + $0x70] sm:$0xff]
        %v419 = vld [vmem:[#allocation9 + $0x78] sm:$0xff]
        %v420 = vld [vmem:[#allocation9 + $0x80] sm:$0xff]
        %v421 = vld [vmem:[#allocation9 + $0x88] sm:$0xff]
        %v422 = vld [vmem:[#allocation9 + $0x90] sm:$0xff]
        %v423 = vld [vmem:[#allocation9 + $0x98] sm:$0xff]
        %v424 = vld [vmem:[#allocation9 + $0xa0] sm:$0xff]
        %v425 = vld [vmem:[#allocation9 + $0xa8] sm:$0xff]
        %v426 = vld [vmem:[#allocation9 + $0xb0] sm:$0xff]
        %v427 = vld [vmem:[#allocation9 + $0xb8] sm:$0xff]
        %v428 = vld [vmem:[#allocation9 + $0xc0] sm:$0xff]
        %v429 = vld [vmem:[#allocation9 + $0xc8] sm:$0xff]
        %v430 = vld [vmem:[#allocation9 + $0xd0] sm:$0xff]
        %v431 = vld [vmem:[#allocation9 + $0xd8] sm:$0xff]
        %v432 = vld [vmem:[#allocation9 + $0xe0] sm:$0xff]
        %v433 = vld [vmem:[#allocation9 + $0xe8] sm:$0xff]
        %v434 = vld [vmem:[#allocation9 + $0xf0] sm:$0xff]
        %v435 = vld [vmem:[#allocation9 + $0xf8] sm:$0xff]
        %v436 = vld [vmem:[#allocation9 + $0x100] sm:$0xff]
        %v437 = vld [vmem:[#allocation9 + $0x108] sm:$0xff]
        %v438 = vld [vmem:[#allocation9 + $0x110] sm:$0xff]
        %v439 = vld [vmem:[#allocation9 + $0x118] sm:$0xff]
        %v440 = vld [vmem:[#allocation9 + $0x120] sm:$0xff]
        %v441 = vld [vmem:[#allocation9 + $0x128] sm:$0xff]
        %v442 = vld [vmem:[#allocation9 + $0x130] sm:$0xff]
        %v443 = vld [vmem:[#allocation9 + $0x138] sm:$0xff]
        %v444 = vld [vmem:[#allocation9 + $0x140] sm:$0xff]
        %v445 = vld [vmem:[#allocation9 + $0x148] sm:$0xff]
        %v446 = vld [vmem:[#allocation9 + $0x150] sm:$0xff]
        %v447 = vld [vmem:[#allocation9 + $0x158] sm:$0xff]
        %v448 = vld [vmem:[#allocation9 + $0x160] sm:$0xff]
        %v449 = vld [vmem:[#allocation9 + $0x168] sm:$0xff]
        %v450 = vld [vmem:[#allocation9 + $0x170] sm:$0xff]
        %v451 = vld [vmem:[#allocation9 + $0x178] sm:$0xff]
        %v452 = vld [vmem:[#allocation9 + $0x180] sm:$0xff]
        %v453 = vld [vmem:[#allocation9 + $0x188] sm:$0xff]
        %v454 = vld [vmem:[#allocation9 + $0x190] sm:$0xff]
        %v455 = vld [vmem:[#allocation9 + $0x198] sm:$0xff]
        %v456 = vld [vmem:[#allocation9 + $0x1a0] sm:$0xff]
        %v457 = vld [vmem:[#allocation9 + $0x1a8] sm:$0xff]
        %v458 = vld [vmem:[#allocation9 + $0x1b0] sm:$0xff]
        %v459 = vld [vmem:[#allocation9 + $0x1b8] sm:$0xff]
        %v460 = vld [vmem:[#allocation9 + $0x1c0] sm:$0xff]
        %v461 = vld [vmem:[#allocation9 + $0x1c8] sm:$0xff]
        %v462 = vld [vmem:[#allocation9 + $0x1d0] sm:$0xff]
        %v463 = vld [vmem:[#allocation9 + $0x1d8] sm:$0xff]
        %v464 = vld [vmem:[#allocation9 + $0x1e0] sm:$0xff]
        %v465 = vld [vmem:[#allocation9 + $0x1e8] sm:$0xff]
        %v466 = vld [vmem:[#allocation9 + $0x1f0] sm:$0xff]
        %v467 = vld [vmem:[#allocation9 + $0x1f8] sm:$0xff]
        %v468 = vld [vmem:[#allocation9 + $0x200] sm:$0xff]
        %v469 = vld [vmem:[#allocation9 + $0x208] sm:$0xff]
        %v470 = vld [vmem:[#allocation9 + $0x210] sm:$0xff]
        %v471 = vld [vmem:[#allocation9 + $0x218] sm:$0xff]
        %v472 = vld [vmem:[#allocation9 + $0x220] sm:$0xff]
        %v473 = vld [vmem:[#allocation9 + $0x228] sm:$0xff]
        %v474 = vld [vmem:[#allocation9 + $0x230] sm:$0xff]
        %v475 = vld [vmem:[#allocation9 + $0x238] sm:$0xff]
        %v476 = vld [vmem:[#allocation9 + $0x240] sm:$0xff]
        %v477 = vld [vmem:[#allocation9 + $0x248] sm:$0xff]
        %v478 = vld [vmem:[#allocation9 + $0x250] sm:$0xff]
        %v479 = vld [vmem:[#allocation9 + $0x258] sm:$0xff]
        %v480 = vld [vmem:[#allocation9 + $0x260] sm:$0xff]
        %v481 = vld [vmem:[#allocation9 + $0x268] sm:$0xff]
        %v482 = vld [vmem:[#allocation9 + $0x270] sm:$0xff]
        %v483 = vld [vmem:[#allocation9 + $0x278] sm:$0xff]
        %v484 = vld [vmem:[#allocation11] sm:$0x1]
        %v485 = vld [vmem:[#allocation11 + $0x1] sm:$0x1]
        %v486 = vld [vmem:[#allocation11 + $0x2] sm:$0x1]
        %v487 = vlaneseq
        %v488 = vshrl.u32 %v487, 7
        %v489 = vsub.s32 0, %v488
        %v490 = vrot.slane %v484, %v489
        %491 = vmatprep.subr.mxu0 0.0
        %492 = vmatpush1.msra.mxu0 %v404
        %493 = vmatprep.subr.mxu0 0.0
        %494 = vmatpush1.msra.mxu0 %v405
        %495 = vmatprep.subr.mxu0 0.0
        %496 = vmatpush1.msra.mxu0 %v406
        %497 = vmatprep.subr.mxu0 0.0
        %498 = vmatpush1.msra.mxu0 %v407
        %499 = vmatprep.subr.mxu0 0.0
        %500 = vmatpush1.msra.mxu0 %v408
        %501 = vmatprep.subr.mxu0 0.0
        %502 = vmatpush1.msra.mxu0 %v409
        %503 = vmatprep.subr.mxu0 0.0
        %504 = vmatpush1.msra.mxu0 %v410
        %505 = vmatprep.subr.mxu0 0.0
        %506 = vmatpush1.msra.mxu0 %v411
        %507 = vmatprep.subr.mxu0 0.0
        %508 = vmatpush1.msra.mxu0 %v412
        %509 = vmatprep.subr.mxu0 0.0
        %510 = vmatpush1.msra.mxu0 %v413
        %511 = vmatprep.subr.mxu0 0.0
        %512 = vmatpush1.msra.mxu0 %v414
        %513 = vmatprep.subr.mxu0 0.0
        %514 = vmatpush1.msra.mxu0 %v415
        %515 = vmatprep.subr.mxu0 0.0
        %516 = vmatpush1.msra.mxu0 %v416
        %517 = vmatprep.subr.mxu0 0.0
        %518 = vmatpush1.msra.mxu0 %v417
        %519 = vmatprep.subr.mxu0 0.0
        %520 = vmatpush1.msra.mxu0 %v418
        %521 = vmatprep.subr.mxu0 0.0
        %522 = vmatpush1.msra.mxu0 %v419
        %523 = vmatprep.subr.mxu0 0.0
        %524 = vmatpush1.msra.mxu0 %v420
        %525 = vmatprep.subr.mxu0 0.0
        %526 = vmatpush1.msra.mxu0 %v421
        %527 = vmatprep.subr.mxu0 0.0
        %528 = vmatpush1.msra.mxu0 %v422
        %529 = vmatprep.subr.mxu0 0.0
        %530 = vmatpush1.msra.mxu0 %v423
        %531 = vmatprep.subr.mxu0 0.0
        %532 = vmatpush1.msra.mxu0 %v424
        %533 = vmatprep.subr.mxu0 0.0
        %534 = vmatpush1.msra.mxu0 %v425
        %535 = vmatprep.subr.mxu0 0.0
        %536 = vmatpush1.msra.mxu0 %v426
        %537 = vmatprep.subr.mxu0 0.0
        %538 = vmatpush1.msra.mxu0 %v427
        %539 = vmatprep.subr.mxu0 0.0
        %540 = vmatpush1.msra.mxu0 %v428
        %541 = vmatprep.subr.mxu0 0.0
        %542 = vmatpush1.msra.mxu0 %v429
        %543 = vmatprep.subr.mxu0 0.0
        %544 = vmatpush1.msra.mxu0 %v430
        %545 = vmatprep.subr.mxu0 0.0
        %546 = vmatpush1.msra.mxu0 %v431
        %547 = vmatprep.subr.mxu0 0.0
        %548 = vmatpush1.msra.mxu0 %v432
        %549 = vmatprep.subr.mxu0 0.0
        %550 = vmatpush1.msra.mxu0 %v433
        %551 = vmatprep.subr.mxu0 0.0
        %552 = vmatpush1.msra.mxu0 %v434
        %553 = vmatprep.subr.mxu0 0.0
        %554 = vmatpush1.msra.mxu0 %v435
        %555 = vmatprep.mubr.f32.mxu0 %v365
        %556 = vmatmul.mubr.f32.gmra.mrb[0].mxu0 %v364
        %v557 = vpop.f32.mrb[0].mxu0
        %v558 = vadd.f32 %v490, %v557
        %v559 = vpop.f32.mrb[0].mxu0
        %560 = vmatprep.mubr.f32.mxu0 %v370
        %561 = vmatmul.mubr.f32.gmra.mrb[0].mxu0 %v369
        %v562 = vpop.f32.mrb[0].mxu0
        %v563 = vadd.f32 %v490, %v562
        %v564 = vpop.f32.mrb[0].mxu0
        %565 = vmatprep.mubr.f32.mxu0 %v375
        %566 = vmatmul.mubr.f32.gmra.mrb[0].mxu0 %v374
        %v567 = vpop.f32.mrb[0].mxu0
        %v568 = vadd.f32 %v490, %v567
        %v569 = vpop.f32.mrb[0].mxu0
        %570 = vmatprep.mubr.f32.mxu0 %v380
        %571 = vmatmul.mubr.f32.gmra.mrb[0].mxu0 %v379
        %v572 = vpop.f32.mrb[0].mxu0
        %v573 = vadd.f32 %v490, %v572
        %v574 = vpop.f32.mrb[0].mxu0
        %575 = vmatprep.mubr.f32.mxu0 %v385
        %576 = vmatmul.mubr.f32.gmra.mrb[0].mxu0 %v384
        %v577 = vpop.f32.mrb[0].mxu0
        %v578 = vadd.f32 %v490, %v577
        %v579 = vpop.f32.mrb[0].mxu0
        %580 = vmatprep.mubr.f32.mxu0 %v390
        %581 = vmatmul.mubr.f32.gmra.mrb[0].mxu0 %v389
        %v582 = vpop.f32.mrb[0].mxu0
        %v583 = vadd.f32 %v490, %v582
        %v584 = vpop.f32.mrb[0].mxu0
        %585 = vmatprep.mubr.f32.mxu0 %v395
        %586 = vmatmul.mubr.f32.gmra.mrb[0].mxu0 %v394
        %v587 = vpop.f32.mrb[0].mxu0
        %v588 = vadd.f32 %v490, %v587
        %v589 = vpop.f32.mrb[0].mxu0
        %590 = vmatprep.mubr.f32.mxu0 %v400
        %591 = vmatmul.mubr.f32.gmra.mrb[0].mxu0 %v399
        %v592 = vpop.f32.mrb[0].mxu0
        %v593 = vadd.f32 %v490, %v592
        %v594 = vpop.f32.mrb[0].mxu0
        %595 = vdwg.mxu0
        %596 = vmatprep.subr.mxu0 0.0
        %597 = vmatpush1.msra.mxu0 %v436
        %598 = vmatprep.subr.mxu0 0.0
        %599 = vmatpush1.msra.mxu0 %v437
        %600 = vmatprep.subr.mxu0 0.0
        %601 = vmatpush1.msra.mxu0 %v438
        %602 = vmatprep.subr.mxu0 0.0
        %603 = vmatpush1.msra.mxu0 %v439
        %604 = vmatprep.subr.mxu0 0.0
        %605 = vmatpush1.msra.mxu0 %v440
        %606 = vmatprep.subr.mxu0 0.0
        %607 = vmatpush1.msra.mxu0 %v441
        %608 = vmatprep.subr.mxu0 0.0
        %609 = vmatpush1.msra.mxu0 %v442
        %610 = vmatprep.subr.mxu0 0.0
        %611 = vmatpush1.msra.mxu0 %v443
        %612 = vmatprep.subr.mxu0 0.0
        %613 = vmatpush1.msra.mxu0 %v444
        %614 = vmatprep.subr.mxu0 0.0
        %615 = vmatpush1.msra.mxu0 %v445
        %616 = vmatprep.subr.mxu0 0.0
        %617 = vmatpush1.msra.mxu0 %v446
        %618 = vmatprep.subr.mxu0 0.0
        %619 = vmatpush1.msra.mxu0 %v447
        %620 = vmatprep.subr.mxu0 0.0
        %621 = vmatpush1.msra.mxu0 %v448
        %622 = vmatprep.subr.mxu0 0.0
        %623 = vmatpush1.msra.mxu0 %v449
        %624 = vmatprep.subr.mxu0 0.0
        %625 = vmatpush1.msra.mxu0 %v450
        %626 = vmatprep.subr.mxu0 0.0
        %627 = vmatpush1.msra.mxu0 %v451
        %628 = vmatprep.subr.mxu0 0.0
        %629 = vmatpush1.msra.mxu0 %v452
        %630 = vmatprep.subr.mxu0 0.0
        %631 = vmatpush1.msra.mxu0 %v453
        %632 = vmatprep.subr.mxu0 0.0
        %633 = vmatpush1.msra.mxu0 %v454
        %634 = vmatprep.subr.mxu0 0.0
        %635 = vmatpush1.msra.mxu0 %v455
        %636 = vmatprep.subr.mxu0 0.0
        %637 = vmatpush1.msra.mxu0 %v456
        %638 = vmatprep.subr.mxu0 0.0
        %639 = vmatpush1.msra.mxu0 %v457
        %640 = vmatprep.subr.mxu0 0.0
        %641 = vmatpush1.msra.mxu0 %v458
        %642 = vmatprep.subr.mxu0 0.0
        %643 = vmatpush1.msra.mxu0 %v459
        %644 = vmatprep.subr.mxu0 0.0
        %645 = vmatpush1.msra.mxu0 %v460
        %646 = vmatprep.subr.mxu0 0.0
        %647 = vmatpush1.msra.mxu0 %v461
        %648 = vmatprep.subr.mxu0 0.0
        %649 = vmatpush1.msra.mxu0 %v462
        %650 = vmatprep.subr.mxu0 0.0
        %651 = vmatpush1.msra.mxu0 %v463
        %652 = vmatprep.subr.mxu0 0.0
        %653 = vmatpush1.msra.mxu0 %v464
        %654 = vmatprep.subr.mxu0 0.0
        %655 = vmatpush1.msra.mxu0 %v465
        %656 = vmatprep.subr.mxu0 0.0
        %657 = vmatpush1.msra.mxu0 %v466
        %658 = vmatprep.subr.mxu0 0.0
        %659 = vmatpush1.msra.mxu0 %v467
        %660 = vmatprep.mubr.f32.mxu0 %v367
        %661 = vmatmul.mubr.f32.gmra.mrb[0].mxu0 %v366
        %v662 = vpop.f32.mrb[0].mxu0
        %v663 = vadd.f32 %v558, %v662
        %v664 = vpop.f32.mrb[0].mxu0
        %665 = vmatprep.mubr.f32.mxu0 %v372
        %666 = vmatmul.mubr.f32.gmra.mrb[0].mxu0 %v371
        %v667 = vpop.f32.mrb[0].mxu0
        %v668 = vadd.f32 %v563, %v667
        %v669 = vpop.f32.mrb[0].mxu0
        %670 = vmatprep.mubr.f32.mxu0 %v377
        %671 = vmatmul.mubr.f32.gmra.mrb[0].mxu0 %v376
        %v672 = vpop.f32.mrb[0].mxu0
        %v673 = vadd.f32 %v568, %v672
        %v674 = vpop.f32.mrb[0].mxu0
        %675 = vmatprep.mubr.f32.mxu0 %v382
        %676 = vmatmul.mubr.f32.gmra.mrb[0].mxu0 %v381
        %v677 = vpop.f32.mrb[0].mxu0
        %v678 = vadd.f32 %v573, %v677
        %v679 = vpop.f32.mrb[0].mxu0
        %680 = vmatprep.mubr.f32.mxu0 %v387
        %681 = vmatmul.mubr.f32.gmra.mrb[0].mxu0 %v386
        %v682 = vpop.f32.mrb[0].mxu0
        %v683 = vadd.f32 %v578, %v682
        %v684 = vpop.f32.mrb[0].mxu0
        %685 = vmatprep.mubr.f32.mxu0 %v392
        %686 = vmatmul.mubr.f32.gmra.mrb[0].mxu0 %v391
        %v687 = vpop.f32.mrb[0].mxu0
        %v688 = vadd.f32 %v583, %v687
        %v689 = vpop.f32.mrb[0].mxu0
        %690 = vmatprep.mubr.f32.mxu0 %v397
        %691 = vmatmul.mubr.f32.gmra.mrb[0].mxu0 %v396
        %v692 = vpop.f32.mrb[0].mxu0
        %v693 = vadd.f32 %v588, %v692
        %v694 = vpop.f32.mrb[0].mxu0
        %695 = vmatprep.mubr.f32.mxu0 %v402
        %696 = vmatmul.mubr.f32.gmra.mrb[0].mxu0 %v401
        %v697 = vpop.f32.mrb[0].mxu0
        %v698 = vadd.f32 %v593, %v697
        %v699 = vpop.f32.mrb[0].mxu0
        %700 = vdwg.mxu0
        %701 = vmatprep.subr.mxu0 0.0
        %702 = vmatpush1.msra.mxu0 %v468
        %703 = vmatprep.subr.mxu0 0.0
        %704 = vmatpush1.msra.mxu0 %v469
        %705 = vmatprep.subr.mxu0 0.0
        %706 = vmatpush1.msra.mxu0 %v470
        %707 = vmatprep.subr.mxu0 0.0
        %708 = vmatpush1.msra.mxu0 %v471
        %709 = vmatprep.subr.mxu0 0.0
        %710 = vmatpush1.msra.mxu0 %v472
        %711 = vmatprep.subr.mxu0 0.0
        %712 = vmatpush1.msra.mxu0 %v473
        %713 = vmatprep.subr.mxu0 0.0
        %714 = vmatpush1.msra.mxu0 %v474
        %715 = vmatprep.subr.mxu0 0.0
        %716 = vmatpush1.msra.mxu0 %v475
        %717 = vmatprep.subr.mxu0 0.0
        %718 = vmatpush1.msra.mxu0 %v476
        %719 = vmatprep.subr.mxu0 0.0
        %720 = vmatpush1.msra.mxu0 %v477
        %721 = vmatprep.subr.mxu0 0.0
        %722 = vmatpush1.msra.mxu0 %v478
        %723 = vmatprep.subr.mxu0 0.0
        %724 = vmatpush1.msra.mxu0 %v479
        %725 = vmatprep.subr.mxu0 0.0
        %726 = vmatpush1.msra.mxu0 %v480
        %727 = vmatprep.subr.mxu0 0.0
        %728 = vmatpush1.msra.mxu0 %v481
        %729 = vmatprep.subr.mxu0 0.0
        %730 = vmatpush1.msra.mxu0 %v482
        %731 = vmatprep.subr.mxu0 0.0
        %732 = vmatpush1.msra.mxu0 %v483
        %733 = vmatprep.subr.mxu0 0.0
        %734 = vmatpush1.msra.mxu0 0.0
        %735 = vmatprep.subr.mxu0 0.0
        %736 = vmatpush1.msra.mxu0 0.0
        %737 = vmatprep.subr.mxu0 0.0
        %738 = vmatpush1.msra.mxu0 0.0
        %739 = vmatprep.subr.mxu0 0.0
        %740 = vmatpush1.msra.mxu0 0.0
        %741 = vmatprep.subr.mxu0 0.0
        %742 = vmatpush1.msra.mxu0 0.0
        %743 = vmatprep.subr.mxu0 0.0
        %744 = vmatpush1.msra.mxu0 0.0
        %745 = vmatprep.subr.mxu0 0.0
        %746 = vmatpush1.msra.mxu0 0.0
        %747 = vmatprep.subr.mxu0 0.0
        %748 = vmatpush1.msra.mxu0 0.0
        %749 = vmatprep.subr.mxu0 0.0
        %750 = vmatpush1.msra.mxu0 0.0
        %751 = vmatprep.subr.mxu0 0.0
        %752 = vmatpush1.msra.mxu0 0.0
        %753 = vmatprep.subr.mxu0 0.0
        %754 = vmatpush1.msra.mxu0 0.0
        %755 = vmatprep.subr.mxu0 0.0
        %756 = vmatpush1.msra.mxu0 0.0
        %757 = vmatprep.subr.mxu0 0.0
        %758 = vmatpush1.msra.mxu0 0.0
        %759 = vmatprep.subr.mxu0 0.0
        %760 = vmatpush1.msra.mxu0 0.0
        %761 = vmatprep.subr.mxu0 0.0
        %762 = vmatpush1.msra.mxu0 0.0
        %763 = vmatprep.subr.mxu0 0.0
        %764 = vmatpush1.msra.mxu0 0.0
        %765 = vmatprep.mubr.f32.mxu0 0.0
        %766 = vmatmul.mubr.f32.gmra.mrb[0].mxu0 %v368
        %v767 = vpop.f32.mrb[0].mxu0
        %v768 = vadd.f32 %v663, %v767
        %v769 = vpop.f32.mrb[0].mxu0
        %770 = vmatprep.mubr.f32.mxu0 0.0
        %771 = vmatmul.mubr.f32.gmra.mrb[0].mxu0 %v373
        %v772 = vpop.f32.mrb[0].mxu0
        %v773 = vadd.f32 %v668, %v772
        %v774 = vpop.f32.mrb[0].mxu0
        %775 = vmatprep.mubr.f32.mxu0 0.0
        %776 = vmatmul.mubr.f32.gmra.mrb[0].mxu0 %v378
        %v777 = vpop.f32.mrb[0].mxu0
        %v778 = vadd.f32 %v673, %v777
        %v779 = vpop.f32.mrb[0].mxu0
        %780 = vmatprep.mubr.f32.mxu0 0.0
        %781 = vmatmul.mubr.f32.gmra.mrb[0].mxu0 %v383
        %v782 = vpop.f32.mrb[0].mxu0
        %v783 = vadd.f32 %v678, %v782
        %v784 = vpop.f32.mrb[0].mxu0
        %785 = vmatprep.mubr.f32.mxu0 0.0
        %786 = vmatmul.mubr.f32.gmra.mrb[0].mxu0 %v388
        %v787 = vpop.f32.mrb[0].mxu0
        %v788 = vadd.f32 %v683, %v787
        %v789 = vpop.f32.mrb[0].mxu0
        %790 = vmatprep.mubr.f32.mxu0 0.0
        %791 = vmatmul.mubr.f32.gmra.mrb[0].mxu0 %v393
        %v792 = vpop.f32.mrb[0].mxu0
        %v793 = vadd.f32 %v688, %v792
        %v794 = vpop.f32.mrb[0].mxu0
        %795 = vmatprep.mubr.f32.mxu0 0.0
        %796 = vmatmul.mubr.f32.gmra.mrb[0].mxu0 %v398
        %v797 = vpop.f32.mrb[0].mxu0
        %v798 = vadd.f32 %v693, %v797
        %v799 = vpop.f32.mrb[0].mxu0
        %800 = vmatprep.mubr.f32.mxu0 0.0
        %801 = vmatmul.mubr.f32.gmra.mrb[0].mxu0 %v403
        %v802 = vpop.f32.mrb[0].mxu0
        %v803 = vadd.f32 %v698, %v802
        %v804 = vpop.f32.mrb[0].mxu0
        %805 = vdwg.mxu0
        %v806 = vmax.f32 %v768, 0.0
        %v807 = vmax.f32 %v773, 0.0
        %v808 = vmax.f32 %v778, 0.0
        %v809 = vmax.f32 %v783, 0.0
        %v810 = vmax.f32 %v788, 0.0
        %v811 = vmax.f32 %v793, 0.0
        %v812 = vmax.f32 %v798, 0.0
        %v813 = vmax.f32 %v803, 0.0
        %v814 = vlaneseq
        %v815 = vshrl.u32 %v814, 7
        %v816 = vsub.s32 0, %v815
        %v817 = vrot.slane %v485, %v816
        %v818 = vmul.f32 %v806, %v817
        %v819 = vmul.f32 %v807, %v817
        %v820 = vmul.f32 %v808, %v817
        %v821 = vmul.f32 %v809, %v817
        %v822 = vmul.f32 %v810, %v817
        %v823 = vmul.f32 %v811, %v817
        %v824 = vmul.f32 %v812, %v817
        %v825 = vmul.f32 %v813, %v817
        %v826 = vlaneseq
        %v827 = vshrl.u32 %v826, 7
        %v828 = vsub.s32 0, %v827
        %v829 = vrot.slane %v486, %v828
        %v830 = vadd.f32 %v818, %v829
        %v831 = vadd.f32 %v819, %v829
        %v832 = vadd.f32 %v820, %v829
        %v833 = vadd.f32 %v821, %v829
        %v834 = vadd.f32 %v822, %v829
        %v835 = vadd.f32 %v823, %v829
        %v836 = vadd.f32 %v824, %v829
        %v837 = vadd.f32 %v825, %v829
        %v838 = vmul.f32 %v830, %v250
        %v839 = vmul.f32 %v831, %v251
        %v840 = vmul.f32 %v832, %v252
        %v841 = vmul.f32 %v833, %v253
        %v842 = vmul.f32 %v834, %v254
        %v843 = vmul.f32 %v835, %v255
        %v844 = vmul.f32 %v836, %v256
        %v845 = vmul.f32 %v837, %v257
        %846 = vst [vmem:[#allocation2 + $0x8] sm:$0xff] %v838
        %847 = vst [vmem:[#allocation2 + $0x10] sm:$0xff] %v839
        %848 = vst [vmem:[#allocation2 + $0x18] sm:$0xff] %v840
        %849 = vst [vmem:[#allocation2 + $0x20] sm:$0xff] %v841
        %850 = vst [vmem:[#allocation2 + $0x28] sm:$0xff] %v842
        %851 = vst [vmem:[#allocation2 + $0x30] sm:$0xff] %v843
        %852 = vst [vmem:[#allocation2 + $0x38] sm:$0xff] %v844
        %853 = vst [vmem:[#allocation2 + $0x40] sm:$0xff] %v845
        %v854 = vld [vmem:[#allocation2 + $0x6] sm:$0xff]
        %v855 = vld [vmem:[#allocation2 + $0xe] sm:$0xff]
        %v856 = vld [vmem:[#allocation2 + $0x16] sm:$0xff]
        %v857 = vld [vmem:[#allocation2 + $0x1e] sm:$0xff]
        %v858 = vld [vmem:[#allocation2 + $0x26] sm:$0xff]
        %v859 = vld [vmem:[#allocation2 + $0x2e] sm:$0xff]
        %v860 = vld [vmem:[#allocation2 + $0x36] sm:$0xff]
        %v861 = vld [vmem:[#allocation2 + $0x3e] sm:$0xff]
        %862 = vst [vmem:[#allocation3] sm:$0xff] %v854
        %863 = vst [vmem:[#allocation3 + $0x28] sm:$0xff] %v855
        %864 = vst [vmem:[#allocation3 + $0x50] sm:$0xff] %v856
        %865 = vst [vmem:[#allocation3 + $0x78] sm:$0xff] %v857
        %866 = vst [vmem:[#allocation3 + $0xa0] sm:$0xff] %v858
        %867 = vst [vmem:[#allocation3 + $0xc8] sm:$0xff] %v859
        %868 = vst [vmem:[#allocation3 + $0xf0] sm:$0xff] %v860
        %869 = vst [vmem:[#allocation3 + $0x118] sm:$0xff] %v861
        %v870 = vld [vmem:[#allocation2 + $0x7] sm:$0xff]
        %v871 = vld [vmem:[#allocation2 + $0xf] sm:$0xff]
        %v872 = vld [vmem:[#allocation2 + $0x17] sm:$0xff]
        %v873 = vld [vmem:[#allocation2 + $0x1f] sm:$0xff]
        %v874 = vld [vmem:[#allocation2 + $0x27] sm:$0xff]
        %v875 = vld [vmem:[#allocation2 + $0x2f] sm:$0xff]
        %v876 = vld [vmem:[#allocation2 + $0x37] sm:$0xff]
        %v877 = vld [vmem:[#allocation2 + $0x3f] sm:$0xff]
        %878 = vst [vmem:[#allocation3 + $0x8] sm:$0xff] %v870
        %879 = vst [vmem:[#allocation3 + $0x30] sm:$0xff] %v871
        %880 = vst [vmem:[#allocation3 + $0x58] sm:$0xff] %v872
        %881 = vst [vmem:[#allocation3 + $0x80] sm:$0xff] %v873
        %882 = vst [vmem:[#allocation3 + $0xa8] sm:$0xff] %v874
        %883 = vst [vmem:[#allocation3 + $0xd0] sm:$0xff] %v875
        %884 = vst [vmem:[#allocation3 + $0xf8] sm:$0xff] %v876
        %885 = vst [vmem:[#allocation3 + $0x120] sm:$0xff] %v877
        %v886 = vld [vmem:[#allocation2 + $0x8] sm:$0xff]
        %v887 = vld [vmem:[#allocation2 + $0x10] sm:$0xff]
        %v888 = vld [vmem:[#allocation2 + $0x18] sm:$0xff]
        %v889 = vld [vmem:[#allocation2 + $0x20] sm:$0xff]
        %v890 = vld [vmem:[#allocation2 + $0x28] sm:$0xff]
        %v891 = vld [vmem:[#allocation2 + $0x30] sm:$0xff]
        %v892 = vld [vmem:[#allocation2 + $0x38] sm:$0xff]
        %v893 = vld [vmem:[#allocation2 + $0x40] sm:$0xff]
        %894 = vst [vmem:[#allocation3 + $0x10] sm:$0xff] %v886
        %895 = vst [vmem:[#allocation3 + $0x38] sm:$0xff] %v887
        %896 = vst [vmem:[#allocation3 + $0x60] sm:$0xff] %v888
        %897 = vst [vmem:[#allocation3 + $0x88] sm:$0xff] %v889
        %898 = vst [vmem:[#allocation3 + $0xb0] sm:$0xff] %v890
        %899 = vst [vmem:[#allocation3 + $0xd8] sm:$0xff] %v891
        %900 = vst [vmem:[#allocation3 + $0x100] sm:$0xff] %v892
        %901 = vst [vmem:[#allocation3 + $0x128] sm:$0xff] %v893
        %v902 = vld [vmem:[#allocation2 + $0x9] sm:$0xff]
        %v903 = vld [vmem:[#allocation2 + $0x11] sm:$0xff]
        %v904 = vld [vmem:[#allocation2 + $0x19] sm:$0xff]
        %v905 = vld [vmem:[#allocation2 + $0x21] sm:$0xff]
        %v906 = vld [vmem:[#allocation2 + $0x29] sm:$0xff]
        %v907 = vld [vmem:[#allocation2 + $0x31] sm:$0xff]
        %v908 = vld [vmem:[#allocation2 + $0x39] sm:$0xff]
        %v909 = vld [vmem:[#allocation2 + $0x41] sm:$0xff]
        %910 = vst [vmem:[#allocation3 + $0x18] sm:$0xff] %v902
        %911 = vst [vmem:[#allocation3 + $0x40] sm:$0xff] %v903
        %912 = vst [vmem:[#allocation3 + $0x68] sm:$0xff] %v904
        %913 = vst [vmem:[#allocation3 + $0x90] sm:$0xff] %v905
        %914 = vst [vmem:[#allocation3 + $0xb8] sm:$0xff] %v906
        %915 = vst [vmem:[#allocation3 + $0xe0] sm:$0xff] %v907
        %916 = vst [vmem:[#allocation3 + $0x108] sm:$0xff] %v908
        %917 = vst [vmem:[#allocation3 + $0x130] sm:$0xff] %v909
        %v918 = vld [vmem:[#allocation2 + $0xa] sm:$0xff]
        %v919 = vld [vmem:[#allocation2 + $0x12] sm:$0xff]
        %v920 = vld [vmem:[#allocation2 + $0x1a] sm:$0xff]
        %v921 = vld [vmem:[#allocation2 + $0x22] sm:$0xff]
        %v922 = vld [vmem:[#allocation2 + $0x2a] sm:$0xff]
        %v923 = vld [vmem:[#allocation2 + $0x32] sm:$0xff]
        %v924 = vld [vmem:[#allocation2 + $0x3a] sm:$0xff]
        %v925 = vld [vmem:[#allocation2 + $0x42] sm:$0xff]
        %926 = vst [vmem:[#allocation3 + $0x20] sm:$0xff] %v918
        %927 = vst [vmem:[#allocation3 + $0x48] sm:$0xff] %v919
        %928 = vst [vmem:[#allocation3 + $0x70] sm:$0xff] %v920
        %929 = vst [vmem:[#allocation3 + $0x98] sm:$0xff] %v921
        %930 = vst [vmem:[#allocation3 + $0xc0] sm:$0xff] %v922
        %931 = vst [vmem:[#allocation3 + $0xe8] sm:$0xff] %v923
        %932 = vst [vmem:[#allocation3 + $0x110] sm:$0xff] %v924
        %933 = vst [vmem:[#allocation3 + $0x138] sm:$0xff] %v925
        %v934 = vld [vmem:[#allocation3] sm:$0xff]
        %v935 = vld [vmem:[#allocation3 + $0x8] sm:$0xff]
        %v936 = vld [vmem:[#allocation3 + $0x10] sm:$0xff]
        %v937 = vld [vmem:[#allocation3 + $0x18] sm:$0xff]
        %v938 = vld [vmem:[#allocation3 + $0x20] sm:$0xff]
        %v939 = vld [vmem:[#allocation3 + $0x28] sm:$0xff]
        %v940 = vld [vmem:[#allocation3 + $0x30] sm:$0xff]
        %v941 = vld [vmem:[#allocation3 + $0x38] sm:$0xff]
        %v942 = vld [vmem:[#allocation3 + $0x40] sm:$0xff]
        %v943 = vld [vmem:[#allocation3 + $0x48] sm:$0xff]
        %v944 = vld [vmem:[#allocation3 + $0x50] sm:$0xff]
        %v945 = vld [vmem:[#allocation3 + $0x58] sm:$0xff]
        %v946 = vld [vmem:[#allocation3 + $0x60] sm:$0xff]
        %v947 = vld [vmem:[#allocation3 + $0x68] sm:$0xff]
        %v948 = vld [vmem:[#allocation3 + $0x70] sm:$0xff]
        %v949 = vld [vmem:[#allocation3 + $0x78] sm:$0xff]
        %v950 = vld [vmem:[#allocation3 + $0x80] sm:$0xff]
        %v951 = vld [vmem:[#allocation3 + $0x88] sm:$0xff]
        %v952 = vld [vmem:[#allocation3 + $0x90] sm:$0xff]
        %v953 = vld [vmem:[#allocation3 + $0x98] sm:$0xff]
        %v954 = vld [vmem:[#allocation3 + $0xa0] sm:$0xff]
        %v955 = vld [vmem:[#allocation3 + $0xa8] sm:$0xff]
        %v956 = vld [vmem:[#allocation3 + $0xb0] sm:$0xff]
        %v957 = vld [vmem:[#allocation3 + $0xb8] sm:$0xff]
        %v958 = vld [vmem:[#allocation3 + $0xc0] sm:$0xff]
        %v959 = vld [vmem:[#allocation3 + $0xc8] sm:$0xff]
        %v960 = vld [vmem:[#allocation3 + $0xd0] sm:$0xff]
        %v961 = vld [vmem:[#allocation3 + $0xd8] sm:$0xff]
        %v962 = vld [vmem:[#allocation3 + $0xe0] sm:$0xff]
        %v963 = vld [vmem:[#allocation3 + $0xe8] sm:$0xff]
        %v964 = vld [vmem:[#allocation3 + $0xf0] sm:$0xff]
        %v965 = vld [vmem:[#allocation3 + $0xf8] sm:$0xff]
        %v966 = vld [vmem:[#allocation3 + $0x100] sm:$0xff]
        %v967 = vld [vmem:[#allocation3 + $0x108] sm:$0xff]
        %v968 = vld [vmem:[#allocation3 + $0x110] sm:$0xff]
        %v969 = vld [vmem:[#allocation3 + $0x118] sm:$0xff]
        %v970 = vld [vmem:[#allocation3 + $0x120] sm:$0xff]
        %v971 = vld [vmem:[#allocation3 + $0x128] sm:$0xff]
        %v972 = vld [vmem:[#allocation3 + $0x130] sm:$0xff]
        %v973 = vld [vmem:[#allocation3 + $0x138] sm:$0xff]
        %s974 = scalar_lea.vmem [#allocation9], 640
        %v975 = vld [vmem:[%s974] sm:$0xff]
        %v976 = vld [vmem:[%s974 + $0x8] sm:$0xff]
        %v977 = vld [vmem:[%s974 + $0x10] sm:$0xff]
        %v978 = vld [vmem:[%s974 + $0x18] sm:$0xff]
        %v979 = vld [vmem:[%s974 + $0x20] sm:$0xff]
        %v980 = vld [vmem:[%s974 + $0x28] sm:$0xff]
        %v981 = vld [vmem:[%s974 + $0x30] sm:$0xff]
        %v982 = vld [vmem:[%s974 + $0x38] sm:$0xff]
        %v983 = vld [vmem:[%s974 + $0x40] sm:$0xff]
        %v984 = vld [vmem:[%s974 + $0x48] sm:$0xff]
        %v985 = vld [vmem:[%s974 + $0x50] sm:$0xff]
        %v986 = vld [vmem:[%s974 + $0x58] sm:$0xff]
        %v987 = vld [vmem:[%s974 + $0x60] sm:$0xff]
        %v988 = vld [vmem:[%s974 + $0x68] sm:$0xff]
        %v989 = vld [vmem:[%s974 + $0x70] sm:$0xff]
        %v990 = vld [vmem:[%s974 + $0x78] sm:$0xff]
        %v991 = vld [vmem:[%s974 + $0x80] sm:$0xff]
        %v992 = vld [vmem:[%s974 + $0x88] sm:$0xff]
        %v993 = vld [vmem:[%s974 + $0x90] sm:$0xff]
        %v994 = vld [vmem:[%s974 + $0x98] sm:$0xff]
        %v995 = vld [vmem:[%s974 + $0xa0] sm:$0xff]
        %v996 = vld [vmem:[%s974 + $0xa8] sm:$0xff]
        %v997 = vld [vmem:[%s974 + $0xb0] sm:$0xff]
        %v998 = vld [vmem:[%s974 + $0xb8] sm:$0xff]
        %v999 = vld [vmem:[%s974 + $0xc0] sm:$0xff]
        %v1000 = vld [vmem:[%s974 + $0xc8] sm:$0xff]
        %v1001 = vld [vmem:[%s974 + $0xd0] sm:$0xff]
        %v1002 = vld [vmem:[%s974 + $0xd8] sm:$0xff]
        %v1003 = vld [vmem:[%s974 + $0xe0] sm:$0xff]
        %v1004 = vld [vmem:[%s974 + $0xe8] sm:$0xff]
        %v1005 = vld [vmem:[%s974 + $0xf0] sm:$0xff]
        %v1006 = vld [vmem:[%s974 + $0xf8] sm:$0xff]
        %v1007 = vld [vmem:[%s974 + $0x100] sm:$0xff]
        %v1008 = vld [vmem:[%s974 + $0x108] sm:$0xff]
        %v1009 = vld [vmem:[%s974 + $0x110] sm:$0xff]
        %v1010 = vld [vmem:[%s974 + $0x118] sm:$0xff]
        %v1011 = vld [vmem:[%s974 + $0x120] sm:$0xff]
        %v1012 = vld [vmem:[%s974 + $0x128] sm:$0xff]
        %v1013 = vld [vmem:[%s974 + $0x130] sm:$0xff]
        %v1014 = vld [vmem:[%s974 + $0x138] sm:$0xff]
        %v1015 = vld [vmem:[%s974 + $0x140] sm:$0xff]
        %v1016 = vld [vmem:[%s974 + $0x148] sm:$0xff]
        %v1017 = vld [vmem:[%s974 + $0x150] sm:$0xff]
        %v1018 = vld [vmem:[%s974 + $0x158] sm:$0xff]
        %v1019 = vld [vmem:[%s974 + $0x160] sm:$0xff]
        %v1020 = vld [vmem:[%s974 + $0x168] sm:$0xff]
        %v1021 = vld [vmem:[%s974 + $0x170] sm:$0xff]
        %v1022 = vld [vmem:[%s974 + $0x178] sm:$0xff]
        %v1023 = vld [vmem:[%s974 + $0x180] sm:$0xff]
        %v1024 = vld [vmem:[%s974 + $0x188] sm:$0xff]
        %v1025 = vld [vmem:[%s974 + $0x190] sm:$0xff]
        %v1026 = vld [vmem:[%s974 + $0x198] sm:$0xff]
        %v1027 = vld [vmem:[%s974 + $0x1a0] sm:$0xff]
        %v1028 = vld [vmem:[%s974 + $0x1a8] sm:$0xff]
        %v1029 = vld [vmem:[%s974 + $0x1b0] sm:$0xff]
        %v1030 = vld [vmem:[%s974 + $0x1b8] sm:$0xff]
        %v1031 = vld [vmem:[%s974 + $0x1c0] sm:$0xff]
        %v1032 = vld [vmem:[%s974 + $0x1c8] sm:$0xff]
        %v1033 = vld [vmem:[%s974 + $0x1d0] sm:$0xff]
        %v1034 = vld [vmem:[%s974 + $0x1d8] sm:$0xff]
        %v1035 = vld [vmem:[%s974 + $0x1e0] sm:$0xff]
        %v1036 = vld [vmem:[%s974 + $0x1e8] sm:$0xff]
        %v1037 = vld [vmem:[%s974 + $0x1f0] sm:$0xff]
        %v1038 = vld [vmem:[%s974 + $0x1f8] sm:$0xff]
        %v1039 = vld [vmem:[%s974 + $0x200] sm:$0xff]
        %v1040 = vld [vmem:[%s974 + $0x208] sm:$0xff]
        %v1041 = vld [vmem:[%s974 + $0x210] sm:$0xff]
        %v1042 = vld [vmem:[%s974 + $0x218] sm:$0xff]
        %v1043 = vld [vmem:[%s974 + $0x220] sm:$0xff]
        %v1044 = vld [vmem:[%s974 + $0x228] sm:$0xff]
        %v1045 = vld [vmem:[%s974 + $0x230] sm:$0xff]
        %v1046 = vld [vmem:[%s974 + $0x238] sm:$0xff]
        %v1047 = vld [vmem:[%s974 + $0x240] sm:$0xff]
        %v1048 = vld [vmem:[%s974 + $0x248] sm:$0xff]
        %v1049 = vld [vmem:[%s974 + $0x250] sm:$0xff]
        %v1050 = vld [vmem:[%s974 + $0x258] sm:$0xff]
        %v1051 = vld [vmem:[%s974 + $0x260] sm:$0xff]
        %v1052 = vld [vmem:[%s974 + $0x268] sm:$0xff]
        %v1053 = vld [vmem:[%s974 + $0x270] sm:$0xff]
        %v1054 = vld [vmem:[%s974 + $0x278] sm:$0xff]
        %v1055 = vld [vmem:[#allocation11 + $0x3] sm:$0x1]
        %v1056 = vld [vmem:[#allocation11 + $0x4] sm:$0x1]
        %v1057 = vld [vmem:[#allocation11 + $0x5] sm:$0x1]
        %v1058 = vlaneseq
        %v1059 = vshrl.u32 %v1058, 7
        %v1060 = vsub.s32 0, %v1059
        %v1061 = vrot.slane %v1055, %v1060
        %1062 = vmatprep.subr.mxu0 0.0
        %1063 = vmatpush1.msra.mxu0 %v975
        %1064 = vmatprep.subr.mxu0 0.0
        %1065 = vmatpush1.msra.mxu0 %v976
        %1066 = vmatprep.subr.mxu0 0.0
        %1067 = vmatpush1.msra.mxu0 %v977
        %1068 = vmatprep.subr.mxu0 0.0
        %1069 = vmatpush1.msra.mxu0 %v978
        %1070 = vmatprep.subr.mxu0 0.0
        %1071 = vmatpush1.msra.mxu0 %v979
        %1072 = vmatprep.subr.mxu0 0.0
        %1073 = vmatpush1.msra.mxu0 %v980
        %1074 = vmatprep.subr.mxu0 0.0
        %1075 = vmatpush1.msra.mxu0 %v981
        %1076 = vmatprep.subr.mxu0 0.0
        %1077 = vmatpush1.msra.mxu0 %v982
        %1078 = vmatprep.subr.mxu0 0.0
        %1079 = vmatpush1.msra.mxu0 %v983
        %1080 = vmatprep.subr.mxu0 0.0
        %1081 = vmatpush1.msra.mxu0 %v984
        %1082 = vmatprep.subr.mxu0 0.0
        %1083 = vmatpush1.msra.mxu0 %v985
        %1084 = vmatprep.subr.mxu0 0.0
        %1085 = vmatpush1.msra.mxu0 %v986
        %1086 = vmatprep.subr.mxu0 0.0
        %1087 = vmatpush1.msra.mxu0 %v987
        %1088 = vmatprep.subr.mxu0 0.0
        %1089 = vmatpush1.msra.mxu0 %v988
        %1090 = vmatprep.subr.mxu0 0.0
        %1091 = vmatpush1.msra.mxu0 %v989
        %1092 = vmatprep.subr.mxu0 0.0
        %1093 = vmatpush1.msra.mxu0 %v990
        %1094 = vmatprep.subr.mxu0 0.0
        %1095 = vmatpush1.msra.mxu0 %v991
        %1096 = vmatprep.subr.mxu0 0.0
        %1097 = vmatpush1.msra.mxu0 %v992
        %1098 = vmatprep.subr.mxu0 0.0
        %1099 = vmatpush1.msra.mxu0 %v993
        %1100 = vmatprep.subr.mxu0 0.0
        %1101 = vmatpush1.msra.mxu0 %v994
        %1102 = vmatprep.subr.mxu0 0.0
        %1103 = vmatpush1.msra.mxu0 %v995
        %1104 = vmatprep.subr.mxu0 0.0
        %1105 = vmatpush1.msra.mxu0 %v996
        %1106 = vmatprep.subr.mxu0 0.0
        %1107 = vmatpush1.msra.mxu0 %v997
        %1108 = vmatprep.subr.mxu0 0.0
        %1109 = vmatpush1.msra.mxu0 %v998
        %1110 = vmatprep.subr.mxu0 0.0
        %1111 = vmatpush1.msra.mxu0 %v999
        %1112 = vmatprep.subr.mxu0 0.0
        %1113 = vmatpush1.msra.mxu0 %v1000
        %1114 = vmatprep.subr.mxu0 0.0
        %1115 = vmatpush1.msra.mxu0 %v1001
        %1116 = vmatprep.subr.mxu0 0.0
        %1117 = vmatpush1.msra.mxu0 %v1002
        %1118 = vmatprep.subr.mxu0 0.0
        %1119 = vmatpush1.msra.mxu0 %v1003
        %1120 = vmatprep.subr.mxu0 0.0
        %1121 = vmatpush1.msra.mxu0 %v1004
        %1122 = vmatprep.subr.mxu0 0.0
        %1123 = vmatpush1.msra.mxu0 %v1005
        %1124 = vmatprep.subr.mxu0 0.0
        %1125 = vmatpush1.msra.mxu0 %v1006
        %1126 = vmatprep.mubr.f32.mxu0 %v935
        %1127 = vmatmul.mubr.f32.gmra.mrb[0].mxu0 %v934
        %v1128 = vpop.f32.mrb[0].mxu0
        %v1129 = vadd.f32 %v1061, %v1128
        %v1130 = vpop.f32.mrb[0].mxu0
        %1131 = vmatprep.mubr.f32.mxu0 %v940
        %1132 = vmatmul.mubr.f32.gmra.mrb[0].mxu0 %v939
        %v1133 = vpop.f32.mrb[0].mxu0
        %v1134 = vadd.f32 %v1061, %v1133
        %v1135 = vpop.f32.mrb[0].mxu0
        %1136 = vmatprep.mubr.f32.mxu0 %v945
        %1137 = vmatmul.mubr.f32.gmra.mrb[0].mxu0 %v944
        %v1138 = vpop.f32.mrb[0].mxu0
        %v1139 = vadd.f32 %v1061, %v1138
        %v1140 = vpop.f32.mrb[0].mxu0
        %1141 = vmatprep.mubr.f32.mxu0 %v950
        %1142 = vmatmul.mubr.f32.gmra.mrb[0].mxu0 %v949
        %v1143 = vpop.f32.mrb[0].mxu0
        %v1144 = vadd.f32 %v1061, %v1143
        %v1145 = vpop.f32.mrb[0].mxu0
        %1146 = vmatprep.mubr.f32.mxu0 %v955
        %1147 = vmatmul.mubr.f32.gmra.mrb[0].mxu0 %v954
        %v1148 = vpop.f32.mrb[0].mxu0
        %v1149 = vadd.f32 %v1061, %v1148
        %v1150 = vpop.f32.mrb[0].mxu0
        %1151 = vmatprep.mubr.f32.mxu0 %v960
        %1152 = vmatmul.mubr.f32.gmra.mrb[0].mxu0 %v959
        %v1153 = vpop.f32.mrb[0].mxu0
        %v1154 = vadd.f32 %v1061, %v1153
        %v1155 = vpop.f32.mrb[0].mxu0
        %1156 = vmatprep.mubr.f32.mxu0 %v965
        %1157 = vmatmul.mubr.f32.gmra.mrb[0].mxu0 %v964
        %v1158 = vpop.f32.mrb[0].mxu0
        %v1159 = vadd.f32 %v1061, %v1158
        %v1160 = vpop.f32.mrb[0].mxu0
        %1161 = vmatprep.mubr.f32.mxu0 %v970
        %1162 = vmatmul.mubr.f32.gmra.mrb[0].mxu0 %v969
        %v1163 = vpop.f32.mrb[0].mxu0
        %v1164 = vadd.f32 %v1061, %v1163
        %v1165 = vpop.f32.mrb[0].mxu0
        %1166 = vdwg.mxu0
        %1167 = vmatprep.subr.mxu0 0.0
        %1168 = vmatpush1.msra.mxu0 %v1007
        %1169 = vmatprep.subr.mxu0 0.0
        %1170 = vmatpush1.msra.mxu0 %v1008
        %1171 = vmatprep.subr.mxu0 0.0
        %1172 = vmatpush1.msra.mxu0 %v1009
        %1173 = vmatprep.subr.mxu0 0.0
        %1174 = vmatpush1.msra.mxu0 %v1010
        %1175 = vmatprep.subr.mxu0 0.0
        %1176 = vmatpush1.msra.mxu0 %v1011
        %1177 = vmatprep.subr.mxu0 0.0
        %1178 = vmatpush1.msra.mxu0 %v1012
        %1179 = vmatprep.subr.mxu0 0.0
        %1180 = vmatpush1.msra.mxu0 %v1013
        %1181 = vmatprep.subr.mxu0 0.0
        %1182 = vmatpush1.msra.mxu0 %v1014
        %1183 = vmatprep.subr.mxu0 0.0
        %1184 = vmatpush1.msra.mxu0 %v1015
        %1185 = vmatprep.subr.mxu0 0.0
        %1186 = vmatpush1.msra.mxu0 %v1016
        %1187 = vmatprep.subr.mxu0 0.0
        %1188 = vmatpush1.msra.mxu0 %v1017
        %1189 = vmatprep.subr.mxu0 0.0
        %1190 = vmatpush1.msra.mxu0 %v1018
        %1191 = vmatprep.subr.mxu0 0.0
        %1192 = vmatpush1.msra.mxu0 %v1019
        %1193 = vmatprep.subr.mxu0 0.0
        %1194 = vmatpush1.msra.mxu0 %v1020
        %1195 = vmatprep.subr.mxu0 0.0
        %1196 = vmatpush1.msra.mxu0 %v1021
        %1197 = vmatprep.subr.mxu0 0.0
        %1198 = vmatpush1.msra.mxu0 %v1022
        %1199 = vmatprep.subr.mxu0 0.0
        %1200 = vmatpush1.msra.mxu0 %v1023
        %1201 = vmatprep.subr.mxu0 0.0
        %1202 = vmatpush1.msra.mxu0 %v1024
        %1203 = vmatprep.subr.mxu0 0.0
        %1204 = vmatpush1.msra.mxu0 %v1025
        %1205 = vmatprep.subr.mxu0 0.0
        %1206 = vmatpush1.msra.mxu0 %v1026
        %1207 = vmatprep.subr.mxu0 0.0
        %1208 = vmatpush1.msra.mxu0 %v1027
        %1209 = vmatprep.subr.mxu0 0.0
        %1210 = vmatpush1.msra.mxu0 %v1028
        %1211 = vmatprep.subr.mxu0 0.0
        %1212 = vmatpush1.msra.mxu0 %v1029
        %1213 = vmatprep.subr.mxu0 0.0
        %1214 = vmatpush1.msra.mxu0 %v1030
        %1215 = vmatprep.subr.mxu0 0.0
        %1216 = vmatpush1.msra.mxu0 %v1031
        %1217 = vmatprep.subr.mxu0 0.0
        %1218 = vmatpush1.msra.mxu0 %v1032
        %1219 = vmatprep.subr.mxu0 0.0
        %1220 = vmatpush1.msra.mxu0 %v1033
        %1221 = vmatprep.subr.mxu0 0.0
        %1222 = vmatpush1.msra.mxu0 %v1034
        %1223 = vmatprep.subr.mxu0 0.0
        %1224 = vmatpush1.msra.mxu0 %v1035
        %1225 = vmatprep.subr.mxu0 0.0
        %1226 = vmatpush1.msra.mxu0 %v1036
        %1227 = vmatprep.subr.mxu0 0.0
        %1228 = vmatpush1.msra.mxu0 %v1037
        %1229 = vmatprep.subr.mxu0 0.0
        %1230 = vmatpush1.msra.mxu0 %v1038
        %1231 = vmatprep.mubr.f32.mxu0 %v937
        %1232 = vmatmul.mubr.f32.gmra.mrb[0].mxu0 %v936
        %v1233 = vpop.f32.mrb[0].mxu0
        %v1234 = vadd.f32 %v1129, %v1233
        %v1235 = vpop.f32.mrb[0].mxu0
        %1236 = vmatprep.mubr.f32.mxu0 %v942
        %1237 = vmatmul.mubr.f32.gmra.mrb[0].mxu0 %v941
        %v1238 = vpop.f32.mrb[0].mxu0
        %v1239 = vadd.f32 %v1134, %v1238
        %v1240 = vpop.f32.mrb[0].mxu0
        %1241 = vmatprep.mubr.f32.mxu0 %v947
        %1242 = vmatmul.mubr.f32.gmra.mrb[0].mxu0 %v946
        %v1243 = vpop.f32.mrb[0].mxu0
        %v1244 = vadd.f32 %v1139, %v1243
        %v1245 = vpop.f32.mrb[0].mxu0
        %1246 = vmatprep.mubr.f32.mxu0 %v952
        %1247 = vmatmul.mubr.f32.gmra.mrb[0].mxu0 %v951
        %v1248 = vpop.f32.mrb[0].mxu0
        %v1249 = vadd.f32 %v1144, %v1248
        %v1250 = vpop.f32.mrb[0].mxu0
        %1251 = vmatprep.mubr.f32.mxu0 %v957
        %1252 = vmatmul.mubr.f32.gmra.mrb[0].mxu0 %v956
        %v1253 = vpop.f32.mrb[0].mxu0
        %v1254 = vadd.f32 %v1149, %v1253
        %v1255 = vpop.f32.mrb[0].mxu0
        %1256 = vmatprep.mubr.f32.mxu0 %v962
        %1257 = vmatmul.mubr.f32.gmra.mrb[0].mxu0 %v961
        %v1258 = vpop.f32.mrb[0].mxu0
        %v1259 = vadd.f32 %v1154, %v1258
        %v1260 = vpop.f32.mrb[0].mxu0
        %1261 = vmatprep.mubr.f32.mxu0 %v967
        %1262 = vmatmul.mubr.f32.gmra.mrb[0].mxu0 %v966
        %v1263 = vpop.f32.mrb[0].mxu0
        %v1264 = vadd.f32 %v1159, %v1263
        %v1265 = vpop.f32.mrb[0].mxu0
        %1266 = vmatprep.mubr.f32.mxu0 %v972
        %1267 = vmatmul.mubr.f32.gmra.mrb[0].mxu0 %v971
        %v1268 = vpop.f32.mrb[0].mxu0
        %v1269 = vadd.f32 %v1164, %v1268
        %v1270 = vpop.f32.mrb[0].mxu0
        %1271 = vdwg.mxu0
        %1272 = vmatprep.subr.mxu0 0.0
        %1273 = vmatpush1.msra.mxu0 %v1039
        %1274 = vmatprep.subr.mxu0 0.0
        %1275 = vmatpush1.msra.mxu0 %v1040
        %1276 = vmatprep.subr.mxu0 0.0
        %1277 = vmatpush1.msra.mxu0 %v1041
        %1278 = vmatprep.subr.mxu0 0.0
        %1279 = vmatpush1.msra.mxu0 %v1042
        %1280 = vmatprep.subr.mxu0 0.0
        %1281 = vmatpush1.msra.mxu0 %v1043
        %1282 = vmatprep.subr.mxu0 0.0
        %1283 = vmatpush1.msra.mxu0 %v1044
        %1284 = vmatprep.subr.mxu0 0.0
        %1285 = vmatpush1.msra.mxu0 %v1045
        %1286 = vmatprep.subr.mxu0 0.0
        %1287 = vmatpush1.msra.mxu0 %v1046
        %1288 = vmatprep.subr.mxu0 0.0
        %1289 = vmatpush1.msra.mxu0 %v1047
        %1290 = vmatprep.subr.mxu0 0.0
        %1291 = vmatpush1.msra.mxu0 %v1048
        %1292 = vmatprep.subr.mxu0 0.0
        %1293 = vmatpush1.msra.mxu0 %v1049
        %1294 = vmatprep.subr.mxu0 0.0
        %1295 = vmatpush1.msra.mxu0 %v1050
        %1296 = vmatprep.subr.mxu0 0.0
        %1297 = vmatpush1.msra.mxu0 %v1051
        %1298 = vmatprep.subr.mxu0 0.0
        %1299 = vmatpush1.msra.mxu0 %v1052
        %1300 = vmatprep.subr.mxu0 0.0
        %1301 = vmatpush1.msra.mxu0 %v1053
        %1302 = vmatprep.subr.mxu0 0.0
        %1303 = vmatpush1.msra.mxu0 %v1054
        %1304 = vmatprep.subr.mxu0 0.0
        %1305 = vmatpush1.msra.mxu0 0.0
        %1306 = vmatprep.subr.mxu0 0.0
        %1307 = vmatpush1.msra.mxu0 0.0
        %1308 = vmatprep.subr.mxu0 0.0
        %1309 = vmatpush1.msra.mxu0 0.0
        %1310 = vmatprep.subr.mxu0 0.0
        %1311 = vmatpush1.msra.mxu0 0.0
        %1312 = vmatprep.subr.mxu0 0.0
        %1313 = vmatpush1.msra.mxu0 0.0
        %1314 = vmatprep.subr.mxu0 0.0
        %1315 = vmatpush1.msra.mxu0 0.0
        %1316 = vmatprep.subr.mxu0 0.0
        %1317 = vmatpush1.msra.mxu0 0.0
        %1318 = vmatprep.subr.mxu0 0.0
        %1319 = vmatpush1.msra.mxu0 0.0
        %1320 = vmatprep.subr.mxu0 0.0
        %1321 = vmatpush1.msra.mxu0 0.0
        %1322 = vmatprep.subr.mxu0 0.0
        %1323 = vmatpush1.msra.mxu0 0.0
        %1324 = vmatprep.subr.mxu0 0.0
        %1325 = vmatpush1.msra.mxu0 0.0
        %1326 = vmatprep.subr.mxu0 0.0
        %1327 = vmatpush1.msra.mxu0 0.0
        %1328 = vmatprep.subr.mxu0 0.0
        %1329 = vmatpush1.msra.mxu0 0.0
        %1330 = vmatprep.subr.mxu0 0.0
        %1331 = vmatpush1.msra.mxu0 0.0
        %1332 = vmatprep.subr.mxu0 0.0
        %1333 = vmatpush1.msra.mxu0 0.0
        %1334 = vmatprep.subr.mxu0 0.0
        %1335 = vmatpush1.msra.mxu0 0.0
        %1336 = vmatprep.mubr.f32.mxu0 0.0
        %1337 = vmatmul.mubr.f32.gmra.mrb[0].mxu0 %v938
        %v1338 = vpop.f32.mrb[0].mxu0
        %v1339 = vadd.f32 %v1234, %v1338
        %v1340 = vpop.f32.mrb[0].mxu0
        %1341 = vmatprep.mubr.f32.mxu0 0.0
        %1342 = vmatmul.mubr.f32.gmra.mrb[0].mxu0 %v943
        %v1343 = vpop.f32.mrb[0].mxu0
        %v1344 = vadd.f32 %v1239, %v1343
        %v1345 = vpop.f32.mrb[0].mxu0
        %1346 = vmatprep.mubr.f32.mxu0 0.0
        %1347 = vmatmul.mubr.f32.gmra.mrb[0].mxu0 %v948
        %v1348 = vpop.f32.mrb[0].mxu0
        %v1349 = vadd.f32 %v1244, %v1348
        %v1350 = vpop.f32.mrb[0].mxu0
        %1351 = vmatprep.mubr.f32.mxu0 0.0
        %1352 = vmatmul.mubr.f32.gmra.mrb[0].mxu0 %v953
        %v1353 = vpop.f32.mrb[0].mxu0
        %v1354 = vadd.f32 %v1249, %v1353
        %v1355 = vpop.f32.mrb[0].mxu0
        %1356 = vmatprep.mubr.f32.mxu0 0.0
        %1357 = vmatmul.mubr.f32.gmra.mrb[0].mxu0 %v958
        %v1358 = vpop.f32.mrb[0].mxu0
        %v1359 = vadd.f32 %v1254, %v1358
        %v1360 = vpop.f32.mrb[0].mxu0
        %1361 = vmatprep.mubr.f32.mxu0 0.0
        %1362 = vmatmul.mubr.f32.gmra.mrb[0].mxu0 %v963
        %v1363 = vpop.f32.mrb[0].mxu0
        %v1364 = vadd.f32 %v1259, %v1363
        %v1365 = vpop.f32.mrb[0].mxu0
        %1366 = vmatprep.mubr.f32.mxu0 0.0
        %1367 = vmatmul.mubr.f32.gmra.mrb[0].mxu0 %v968
        %v1368 = vpop.f32.mrb[0].mxu0
        %v1369 = vadd.f32 %v1264, %v1368
        %v1370 = vpop.f32.mrb[0].mxu0
        %1371 = vmatprep.mubr.f32.mxu0 0.0
        %1372 = vmatmul.mubr.f32.gmra.mrb[0].mxu0 %v973
        %v1373 = vpop.f32.mrb[0].mxu0
        %v1374 = vadd.f32 %v1269, %v1373
        %v1375 = vpop.f32.mrb[0].mxu0
        %1376 = vdwg.mxu0
        %v1377 = vmax.f32 %v1339, 0.0
        %v1378 = vmax.f32 %v1344, 0.0
        %v1379 = vmax.f32 %v1349, 0.0
        %v1380 = vmax.f32 %v1354, 0.0
        %v1381 = vmax.f32 %v1359, 0.0
        %v1382 = vmax.f32 %v1364, 0.0
        %v1383 = vmax.f32 %v1369, 0.0
        %v1384 = vmax.f32 %v1374, 0.0
        %v1385 = vlaneseq
        %v1386 = vshrl.u32 %v1385, 7
        %v1387 = vsub.s32 0, %v1386
        %v1388 = vrot.slane %v1056, %v1387
        %v1389 = vmul.f32 %v1377, %v1388
        %v1390 = vmul.f32 %v1378, %v1388
        %v1391 = vmul.f32 %v1379, %v1388
        %v1392 = vmul.f32 %v1380, %v1388
        %v1393 = vmul.f32 %v1381, %v1388
        %v1394 = vmul.f32 %v1382, %v1388
        %v1395 = vmul.f32 %v1383, %v1388
        %v1396 = vmul.f32 %v1384, %v1388
        %v1397 = vlaneseq
        %v1398 = vshrl.u32 %v1397, 7
        %v1399 = vsub.s32 0, %v1398
        %v1400 = vrot.slane %v1057, %v1399
        %v1401 = vadd.f32 %v1389, %v1400
        %v1402 = vadd.f32 %v1390, %v1400
        %v1403 = vadd.f32 %v1391, %v1400
        %v1404 = vadd.f32 %v1392, %v1400
        %v1405 = vadd.f32 %v1393, %v1400
        %v1406 = vadd.f32 %v1394, %v1400
        %v1407 = vadd.f32 %v1395, %v1400
        %v1408 = vadd.f32 %v1396, %v1400
        %v1409 = vmul.f32 %v1401, %v250
        %v1410 = vmul.f32 %v1402, %v251
        %v1411 = vmul.f32 %v1403, %v252
        %v1412 = vmul.f32 %v1404, %v253
        %v1413 = vmul.f32 %v1405, %v254
        %v1414 = vmul.f32 %v1406, %v255
        %v1415 = vmul.f32 %v1407, %v256
        %v1416 = vmul.f32 %v1408, %v257
        %1417 = vst [vmem:[#allocation2 + $0x8] sm:$0xff] %v1409
        %1418 = vst [vmem:[#allocation2 + $0x10] sm:$0xff] %v1410
        %1419 = vst [vmem:[#allocation2 + $0x18] sm:$0xff] %v1411
        %1420 = vst [vmem:[#allocation2 + $0x20] sm:$0xff] %v1412
        %1421 = vst [vmem:[#allocation2 + $0x28] sm:$0xff] %v1413
        %1422 = vst [vmem:[#allocation2 + $0x30] sm:$0xff] %v1414
        %1423 = vst [vmem:[#allocation2 + $0x38] sm:$0xff] %v1415
        %1424 = vst [vmem:[#allocation2 + $0x40] sm:$0xff] %v1416
        %v1425 = vld [vmem:[#allocation2 + $0x6] sm:$0xff]
        %v1426 = vld [vmem:[#allocation2 + $0xe] sm:$0xff]
        %v1427 = vld [vmem:[#allocation2 + $0x16] sm:$0xff]
        %v1428 = vld [vmem:[#allocation2 + $0x1e] sm:$0xff]
        %v1429 = vld [vmem:[#allocation2 + $0x26] sm:$0xff]
        %v1430 = vld [vmem:[#allocation2 + $0x2e] sm:$0xff]
        %v1431 = vld [vmem:[#allocation2 + $0x36] sm:$0xff]
        %v1432 = vld [vmem:[#allocation2 + $0x3e] sm:$0xff]
        %1433 = vst [vmem:[#allocation3] sm:$0xff] %v1425
        %1434 = vst [vmem:[#allocation3 + $0x28] sm:$0xff] %v1426
        %1435 = vst [vmem:[#allocation3 + $0x50] sm:$0xff] %v1427
        %1436 = vst [vmem:[#allocation3 + $0x78] sm:$0xff] %v1428
        %1437 = vst [vmem:[#allocation3 + $0xa0] sm:$0xff] %v1429
        %1438 = vst [vmem:[#allocation3 + $0xc8] sm:$0xff] %v1430
        %1439 = vst [vmem:[#allocation3 + $0xf0] sm:$0xff] %v1431
        %1440 = vst [vmem:[#allocation3 + $0x118] sm:$0xff] %v1432
        %v1441 = vld [vmem:[#allocation2 + $0x7] sm:$0xff]
        %v1442 = vld [vmem:[#allocation2 + $0xf] sm:$0xff]
        %v1443 = vld [vmem:[#allocation2 + $0x17] sm:$0xff]
        %v1444 = vld [vmem:[#allocation2 + $0x1f] sm:$0xff]
        %v1445 = vld [vmem:[#allocation2 + $0x27] sm:$0xff]
        %v1446 = vld [vmem:[#allocation2 + $0x2f] sm:$0xff]
        %v1447 = vld [vmem:[#allocation2 + $0x37] sm:$0xff]
        %v1448 = vld [vmem:[#allocation2 + $0x3f] sm:$0xff]
        %1449 = vst [vmem:[#allocation3 + $0x8] sm:$0xff] %v1441
        %1450 = vst [vmem:[#allocation3 + $0x30] sm:$0xff] %v1442
        %1451 = vst [vmem:[#allocation3 + $0x58] sm:$0xff] %v1443
        %1452 = vst [vmem:[#allocation3 + $0x80] sm:$0xff] %v1444
        %1453 = vst [vmem:[#allocation3 + $0xa8] sm:$0xff] %v1445
        %1454 = vst [vmem:[#allocation3 + $0xd0] sm:$0xff] %v1446
        %1455 = vst [vmem:[#allocation3 + $0xf8] sm:$0xff] %v1447
        %1456 = vst [vmem:[#allocation3 + $0x120] sm:$0xff] %v1448
        %v1457 = vld [vmem:[#allocation2 + $0x8] sm:$0xff]
        %v1458 = vld [vmem:[#allocation2 + $0x10] sm:$0xff]
        %v1459 = vld [vmem:[#allocation2 + $0x18] sm:$0xff]
        %v1460 = vld [vmem:[#allocation2 + $0x20] sm:$0xff]
        %v1461 = vld [vmem:[#allocation2 + $0x28] sm:$0xff]
        %v1462 = vld [vmem:[#allocation2 + $0x30] sm:$0xff]
        %v1463 = vld [vmem:[#allocation2 + $0x38] sm:$0xff]
        %v1464 = vld [vmem:[#allocation2 + $0x40] sm:$0xff]
        %1465 = vst [vmem:[#allocation3 + $0x10] sm:$0xff] %v1457
        %1466 = vst [vmem:[#allocation3 + $0x38] sm:$0xff] %v1458
        %1467 = vst [vmem:[#allocation3 + $0x60] sm:$0xff] %v1459
        %1468 = vst [vmem:[#allocation3 + $0x88] sm:$0xff] %v1460
        %1469 = vst [vmem:[#allocation3 + $0xb0] sm:$0xff] %v1461
        %1470 = vst [vmem:[#allocation3 + $0xd8] sm:$0xff] %v1462
        %1471 = vst [vmem:[#allocation3 + $0x100] sm:$0xff] %v1463
        %1472 = vst [vmem:[#allocation3 + $0x128] sm:$0xff] %v1464
        %v1473 = vld [vmem:[#allocation2 + $0x9] sm:$0xff]
        %v1474 = vld [vmem:[#allocation2 + $0x11] sm:$0xff]
        %v1475 = vld [vmem:[#allocation2 + $0x19] sm:$0xff]
        %v1476 = vld [vmem:[#allocation2 + $0x21] sm:$0xff]
        %v1477 = vld [vmem:[#allocation2 + $0x29] sm:$0xff]
        %v1478 = vld [vmem:[#allocation2 + $0x31] sm:$0xff]
        %v1479 = vld [vmem:[#allocation2 + $0x39] sm:$0xff]
        %v1480 = vld [vmem:[#allocation2 + $0x41] sm:$0xff]
        %1481 = vst [vmem:[#allocation3 + $0x18] sm:$0xff] %v1473
        %1482 = vst [vmem:[#allocation3 + $0x40] sm:$0xff] %v1474
        %1483 = vst [vmem:[#allocation3 + $0x68] sm:$0xff] %v1475
        %1484 = vst [vmem:[#allocation3 + $0x90] sm:$0xff] %v1476
        %1485 = vst [vmem:[#allocation3 + $0xb8] sm:$0xff] %v1477
        %1486 = vst [vmem:[#allocation3 + $0xe0] sm:$0xff] %v1478
        %1487 = vst [vmem:[#allocation3 + $0x108] sm:$0xff] %v1479
        %1488 = vst [vmem:[#allocation3 + $0x130] sm:$0xff] %v1480
        %v1489 = vld [vmem:[#allocation2 + $0xa] sm:$0xff]
        %v1490 = vld [vmem:[#allocation2 + $0x12] sm:$0xff]
        %v1491 = vld [vmem:[#allocation2 + $0x1a] sm:$0xff]
        %v1492 = vld [vmem:[#allocation2 + $0x22] sm:$0xff]
        %v1493 = vld [vmem:[#allocation2 + $0x2a] sm:$0xff]
        %v1494 = vld [vmem:[#allocation2 + $0x32] sm:$0xff]
        %v1495 = vld [vmem:[#allocation2 + $0x3a] sm:$0xff]
        %v1496 = vld [vmem:[#allocation2 + $0x42] sm:$0xff]
        %1497 = vst [vmem:[#allocation3 + $0x20] sm:$0xff] %v1489
        %1498 = vst [vmem:[#allocation3 + $0x48] sm:$0xff] %v1490
        %1499 = vst [vmem:[#allocation3 + $0x70] sm:$0xff] %v1491
        %1500 = vst [vmem:[#allocation3 + $0x98] sm:$0xff] %v1492
        %1501 = vst [vmem:[#allocation3 + $0xc0] sm:$0xff] %v1493
        %1502 = vst [vmem:[#allocation3 + $0xe8] sm:$0xff] %v1494
        %1503 = vst [vmem:[#allocation3 + $0x110] sm:$0xff] %v1495
        %1504 = vst [vmem:[#allocation3 + $0x138] sm:$0xff] %v1496
        %v1505 = vld [vmem:[#allocation3] sm:$0xff]
        %v1506 = vld [vmem:[#allocation3 + $0x8] sm:$0xff]
        %v1507 = vld [vmem:[#allocation3 + $0x10] sm:$0xff]
        %v1508 = vld [vmem:[#allocation3 + $0x18] sm:$0xff]
        %v1509 = vld [vmem:[#allocation3 + $0x20] sm:$0xff]
        %v1510 = vld [vmem:[#allocation3 + $0x28] sm:$0xff]
        %v1511 = vld [vmem:[#allocation3 + $0x30] sm:$0xff]
        %v1512 = vld [vmem:[#allocation3 + $0x38] sm:$0xff]
        %v1513 = vld [vmem:[#allocation3 + $0x40] sm:$0xff]
        %v1514 = vld [vmem:[#allocation3 + $0x48] sm:$0xff]
        %v1515 = vld [vmem:[#allocation3 + $0x50] sm:$0xff]
        %v1516 = vld [vmem:[#allocation3 + $0x58] sm:$0xff]
        %v1517 = vld [vmem:[#allocation3 + $0x60] sm:$0xff]
        %v1518 = vld [vmem:[#allocation3 + $0x68] sm:$0xff]
        %v1519 = vld [vmem:[#allocation3 + $0x70] sm:$0xff]
        %v1520 = vld [vmem:[#allocation3 + $0x78] sm:$0xff]
        %v1521 = vld [vmem:[#allocation3 + $0x80] sm:$0xff]
        %v1522 = vld [vmem:[#allocation3 + $0x88] sm:$0xff]
        %v1523 = vld [vmem:[#allocation3 + $0x90] sm:$0xff]
        %v1524 = vld [vmem:[#allocation3 + $0x98] sm:$0xff]
        %v1525 = vld [vmem:[#allocation3 + $0xa0] sm:$0xff]
        %v1526 = vld [vmem:[#allocation3 + $0xa8] sm:$0xff]
        %v1527 = vld [vmem:[#allocation3 + $0xb0] sm:$0xff]
        %v1528 = vld [vmem:[#allocation3 + $0xb8] sm:$0xff]
        %v1529 = vld [vmem:[#allocation3 + $0xc0] sm:$0xff]
        %v1530 = vld [vmem:[#allocation3 + $0xc8] sm:$0xff]
        %v1531 = vld [vmem:[#allocation3 + $0xd0] sm:$0xff]
        %v1532 = vld [vmem:[#allocation3 + $0xd8] sm:$0xff]
        %v1533 = vld [vmem:[#allocation3 + $0xe0] sm:$0xff]
        %v1534 = vld [vmem:[#allocation3 + $0xe8] sm:$0xff]
        %v1535 = vld [vmem:[#allocation3 + $0xf0] sm:$0xff]
        %v1536 = vld [vmem:[#allocation3 + $0xf8] sm:$0xff]
        %v1537 = vld [vmem:[#allocation3 + $0x100] sm:$0xff]
        %v1538 = vld [vmem:[#allocation3 + $0x108] sm:$0xff]
        %v1539 = vld [vmem:[#allocation3 + $0x110] sm:$0xff]
        %v1540 = vld [vmem:[#allocation3 + $0x118] sm:$0xff]
        %v1541 = vld [vmem:[#allocation3 + $0x120] sm:$0xff]
        %v1542 = vld [vmem:[#allocation3 + $0x128] sm:$0xff]
        %v1543 = vld [vmem:[#allocation3 + $0x130] sm:$0xff]
        %v1544 = vld [vmem:[#allocation3 + $0x138] sm:$0xff]
        %s1545 = scalar_lea.vmem [#allocation9], 1280
        %v1546 = vld [vmem:[%s1545] sm:$0xff]
        %v1547 = vld [vmem:[%s1545 + $0x8] sm:$0xff]
        %v1548 = vld [vmem:[%s1545 + $0x10] sm:$0xff]
        %v1549 = vld [vmem:[%s1545 + $0x18] sm:$0xff]
        %v1550 = vld [vmem:[%s1545 + $0x20] sm:$0xff]
        %v1551 = vld [vmem:[%s1545 + $0x28] sm:$0xff]
        %v1552 = vld [vmem:[%s1545 + $0x30] sm:$0xff]
        %v1553 = vld [vmem:[%s1545 + $0x38] sm:$0xff]
        %v1554 = vld [vmem:[%s1545 + $0x40] sm:$0xff]
        %v1555 = vld [vmem:[%s1545 + $0x48] sm:$0xff]
        %v1556 = vld [vmem:[%s1545 + $0x50] sm:$0xff]
        %v1557 = vld [vmem:[%s1545 + $0x58] sm:$0xff]
        %v1558 = vld [vmem:[%s1545 + $0x60] sm:$0xff]
        %v1559 = vld [vmem:[%s1545 + $0x68] sm:$0xff]
        %v1560 = vld [vmem:[%s1545 + $0x70] sm:$0xff]
        %v1561 = vld [vmem:[%s1545 + $0x78] sm:$0xff]
        %v1562 = vld [vmem:[%s1545 + $0x80] sm:$0xff]
        %v1563 = vld [vmem:[%s1545 + $0x88] sm:$0xff]
        %v1564 = vld [vmem:[%s1545 + $0x90] sm:$0xff]
        %v1565 = vld [vmem:[%s1545 + $0x98] sm:$0xff]
        %v1566 = vld [vmem:[%s1545 + $0xa0] sm:$0xff]
        %v1567 = vld [vmem:[%s1545 + $0xa8] sm:$0xff]
        %v1568 = vld [vmem:[%s1545 + $0xb0] sm:$0xff]
        %v1569 = vld [vmem:[%s1545 + $0xb8] sm:$0xff]
        %v1570 = vld [vmem:[%s1545 + $0xc0] sm:$0xff]
        %v1571 = vld [vmem:[%s1545 + $0xc8] sm:$0xff]
        %v1572 = vld [vmem:[%s1545 + $0xd0] sm:$0xff]
        %v1573 = vld [vmem:[%s1545 + $0xd8] sm:$0xff]
        %v1574 = vld [vmem:[%s1545 + $0xe0] sm:$0xff]
        %v1575 = vld [vmem:[%s1545 + $0xe8] sm:$0xff]
        %v1576 = vld [vmem:[%s1545 + $0xf0] sm:$0xff]
        %v1577 = vld [vmem:[%s1545 + $0xf8] sm:$0xff]
        %v1578 = vld [vmem:[%s1545 + $0x100] sm:$0xff]
        %v1579 = vld [vmem:[%s1545 + $0x108] sm:$0xff]
        %v1580 = vld [vmem:[%s1545 + $0x110] sm:$0xff]
        %v1581 = vld [vmem:[%s1545 + $0x118] sm:$0xff]
        %v1582 = vld [vmem:[%s1545 + $0x120] sm:$0xff]
        %v1583 = vld [vmem:[%s1545 + $0x128] sm:$0xff]
        %v1584 = vld [vmem:[%s1545 + $0x130] sm:$0xff]
        %v1585 = vld [vmem:[%s1545 + $0x138] sm:$0xff]
        %v1586 = vld [vmem:[%s1545 + $0x140] sm:$0xff]
        %v1587 = vld [vmem:[%s1545 + $0x148] sm:$0xff]
        %v1588 = vld [vmem:[%s1545 + $0x150] sm:$0xff]
        %v1589 = vld [vmem:[%s1545 + $0x158] sm:$0xff]
        %v1590 = vld [vmem:[%s1545 + $0x160] sm:$0xff]
        %v1591 = vld [vmem:[%s1545 + $0x168] sm:$0xff]
        %v1592 = vld [vmem:[%s1545 + $0x170] sm:$0xff]
        %v1593 = vld [vmem:[%s1545 + $0x178] sm:$0xff]
        %v1594 = vld [vmem:[%s1545 + $0x180] sm:$0xff]
        %v1595 = vld [vmem:[%s1545 + $0x188] sm:$0xff]
        %v1596 = vld [vmem:[%s1545 + $0x190] sm:$0xff]
        %v1597 = vld [vmem:[%s1545 + $0x198] sm:$0xff]
        %v1598 = vld [vmem:[%s1545 + $0x1a0] sm:$0xff]
        %v1599 = vld [vmem:[%s1545 + $0x1a8] sm:$0xff]
        %v1600 = vld [vmem:[%s1545 + $0x1b0] sm:$0xff]
        %v1601 = vld [vmem:[%s1545 + $0x1b8] sm:$0xff]
        %v1602 = vld [vmem:[%s1545 + $0x1c0] sm:$0xff]
        %v1603 = vld [vmem:[%s1545 + $0x1c8] sm:$0xff]
        %v1604 = vld [vmem:[%s1545 + $0x1d0] sm:$0xff]
        %v1605 = vld [vmem:[%s1545 + $0x1d8] sm:$0xff]
        %v1606 = vld [vmem:[%s1545 + $0x1e0] sm:$0xff]
        %v1607 = vld [vmem:[%s1545 + $0x1e8] sm:$0xff]
        %v1608 = vld [vmem:[%s1545 + $0x1f0] sm:$0xff]
        %v1609 = vld [vmem:[%s1545 + $0x1f8] sm:$0xff]
        %v1610 = vld [vmem:[%s1545 + $0x200] sm:$0xff]
        %v1611 = vld [vmem:[%s1545 + $0x208] sm:$0xff]
        %v1612 = vld [vmem:[%s1545 + $0x210] sm:$0xff]
        %v1613 = vld [vmem:[%s1545 + $0x218] sm:$0xff]
        %v1614 = vld [vmem:[%s1545 + $0x220] sm:$0xff]
        %v1615 = vld [vmem:[%s1545 + $0x228] sm:$0xff]
        %v1616 = vld [vmem:[%s1545 + $0x230] sm:$0xff]
        %v1617 = vld [vmem:[%s1545 + $0x238] sm:$0xff]
        %v1618 = vld [vmem:[%s1545 + $0x240] sm:$0xff]
        %v1619 = vld [vmem:[%s1545 + $0x248] sm:$0xff]
        %v1620 = vld [vmem:[%s1545 + $0x250] sm:$0xff]
        %v1621 = vld [vmem:[%s1545 + $0x258] sm:$0xff]
        %v1622 = vld [vmem:[%s1545 + $0x260] sm:$0xff]
        %v1623 = vld [vmem:[%s1545 + $0x268] sm:$0xff]
        %v1624 = vld [vmem:[%s1545 + $0x270] sm:$0xff]
        %v1625 = vld [vmem:[%s1545 + $0x278] sm:$0xff]
        %v1626 = vld [vmem:[#allocation11 + $0x6] sm:$0x1]
        %v1627 = vld [vmem:[#allocation11 + $0x7] sm:$0x1]
        %v1628 = vld [vmem:[#allocation11 + $0x8] sm:$0x1]
        %v1629 = vlaneseq
        %v1630 = vshrl.u32 %v1629, 7
        %v1631 = vsub.s32 0, %v1630
        %v1632 = vrot.slane %v1626, %v1631
        %1633 = vmatprep.subr.mxu0 0.0
        %1634 = vmatpush1.msra.mxu0 %v1546
        %1635 = vmatprep.subr.mxu0 0.0
        %1636 = vmatpush1.msra.mxu0 %v1547
        %1637 = vmatprep.subr.mxu0 0.0
        %1638 = vmatpush1.msra.mxu0 %v1548
        %1639 = vmatprep.subr.mxu0 0.0
        %1640 = vmatpush1.msra.mxu0 %v1549
        %1641 = vmatprep.subr.mxu0 0.0
        %1642 = vmatpush1.msra.mxu0 %v1550
        %1643 = vmatprep.subr.mxu0 0.0
        %1644 = vmatpush1.msra.mxu0 %v1551
        %1645 = vmatprep.subr.mxu0 0.0
        %1646 = vmatpush1.msra.mxu0 %v1552
        %1647 = vmatprep.subr.mxu0 0.0
        %1648 = vmatpush1.msra.mxu0 %v1553
        %1649 = vmatprep.subr.mxu0 0.0
        %1650 = vmatpush1.msra.mxu0 %v1554
        %1651 = vmatprep.subr.mxu0 0.0
        %1652 = vmatpush1.msra.mxu0 %v1555
        %1653 = vmatprep.subr.mxu0 0.0
        %1654 = vmatpush1.msra.mxu0 %v1556
        %1655 = vmatprep.subr.mxu0 0.0
        %1656 = vmatpush1.msra.mxu0 %v1557
        %1657 = vmatprep.subr.mxu0 0.0
        %1658 = vmatpush1.msra.mxu0 %v1558
        %1659 = vmatprep.subr.mxu0 0.0
        %1660 = vmatpush1.msra.mxu0 %v1559
        %1661 = vmatprep.subr.mxu0 0.0
        %1662 = vmatpush1.msra.mxu0 %v1560
        %1663 = vmatprep.subr.mxu0 0.0
        %1664 = vmatpush1.msra.mxu0 %v1561
        %1665 = vmatprep.subr.mxu0 0.0
        %1666 = vmatpush1.msra.mxu0 %v1562
        %1667 = vmatprep.subr.mxu0 0.0
        %1668 = vmatpush1.msra.mxu0 %v1563
        %1669 = vmatprep.subr.mxu0 0.0
        %1670 = vmatpush1.msra.mxu0 %v1564
        %1671 = vmatprep.subr.mxu0 0.0
        %1672 = vmatpush1.msra.mxu0 %v1565
        %1673 = vmatprep.subr.mxu0 0.0
        %1674 = vmatpush1.msra.mxu0 %v1566
        %1675 = vmatprep.subr.mxu0 0.0
        %1676 = vmatpush1.msra.mxu0 %v1567
        %1677 = vmatprep.subr.mxu0 0.0
        %1678 = vmatpush1.msra.mxu0 %v1568
        %1679 = vmatprep.subr.mxu0 0.0
        %1680 = vmatpush1.msra.mxu0 %v1569
        %1681 = vmatprep.subr.mxu0 0.0
        %1682 = vmatpush1.msra.mxu0 %v1570
        %1683 = vmatprep.subr.mxu0 0.0
        %1684 = vmatpush1.msra.mxu0 %v1571
        %1685 = vmatprep.subr.mxu0 0.0
        %1686 = vmatpush1.msra.mxu0 %v1572
        %1687 = vmatprep.subr.mxu0 0.0
        %1688 = vmatpush1.msra.mxu0 %v1573
        %1689 = vmatprep.subr.mxu0 0.0
        %1690 = vmatpush1.msra.mxu0 %v1574
        %1691 = vmatprep.subr.mxu0 0.0
        %1692 = vmatpush1.msra.mxu0 %v1575
        %1693 = vmatprep.subr.mxu0 0.0
        %1694 = vmatpush1.msra.mxu0 %v1576
        %1695 = vmatprep.subr.mxu0 0.0
        %1696 = vmatpush1.msra.mxu0 %v1577
        %1697 = vmatprep.mubr.f32.mxu0 %v1506
        %1698 = vmatmul.mubr.f32.gmra.mrb[0].mxu0 %v1505
        %v1699 = vpop.f32.mrb[0].mxu0
        %v1700 = vadd.f32 %v1632, %v1699
        %v1701 = vpop.f32.mrb[0].mxu0
        %1702 = vmatprep.mubr.f32.mxu0 %v1511
        %1703 = vmatmul.mubr.f32.gmra.mrb[0].mxu0 %v1510
        %v1704 = vpop.f32.mrb[0].mxu0
        %v1705 = vadd.f32 %v1632, %v1704
        %v1706 = vpop.f32.mrb[0].mxu0
        %1707 = vmatprep.mubr.f32.mxu0 %v1516
        %1708 = vmatmul.mubr.f32.gmra.mrb[0].mxu0 %v1515
        %v1709 = vpop.f32.mrb[0].mxu0
        %v1710 = vadd.f32 %v1632, %v1709
        %v1711 = vpop.f32.mrb[0].mxu0
        %1712 = vmatprep.mubr.f32.mxu0 %v1521
        %1713 = vmatmul.mubr.f32.gmra.mrb[0].mxu0 %v1520
        %v1714 = vpop.f32.mrb[0].mxu0
        %v1715 = vadd.f32 %v1632, %v1714
        %v1716 = vpop.f32.mrb[0].mxu0
        %1717 = vmatprep.mubr.f32.mxu0 %v1526
        %1718 = vmatmul.mubr.f32.gmra.mrb[0].mxu0 %v1525
        %v1719 = vpop.f32.mrb[0].mxu0
        %v1720 = vadd.f32 %v1632, %v1719
        %v1721 = vpop.f32.mrb[0].mxu0
        %1722 = vmatprep.mubr.f32.mxu0 %v1531
        %1723 = vmatmul.mubr.f32.gmra.mrb[0].mxu0 %v1530
        %v1724 = vpop.f32.mrb[0].mxu0
        %v1725 = vadd.f32 %v1632, %v1724
        %v1726 = vpop.f32.mrb[0].mxu0
        %1727 = vmatprep.mubr.f32.mxu0 %v1536
        %1728 = vmatmul.mubr.f32.gmra.mrb[0].mxu0 %v1535
        %v1729 = vpop.f32.mrb[0].mxu0
        %v1730 = vadd.f32 %v1632, %v1729
        %v1731 = vpop.f32.mrb[0].mxu0
        %1732 = vmatprep.mubr.f32.mxu0 %v1541
        %1733 = vmatmul.mubr.f32.gmra.mrb[0].mxu0 %v1540
        %v1734 = vpop.f32.mrb[0].mxu0
        %v1735 = vadd.f32 %v1632, %v1734
        %v1736 = vpop.f32.mrb[0].mxu0
        %1737 = vdwg.mxu0
        %1738 = vmatprep.subr.mxu0 0.0
        %1739 = vmatpush1.msra.mxu0 %v1578
        %1740 = vmatprep.subr.mxu0 0.0
        %1741 = vmatpush1.msra.mxu0 %v1579
        %1742 = vmatprep.subr.mxu0 0.0
        %1743 = vmatpush1.msra.mxu0 %v1580
        %1744 = vmatprep.subr.mxu0 0.0
        %1745 = vmatpush1.msra.mxu0 %v1581
        %1746 = vmatprep.subr.mxu0 0.0
        %1747 = vmatpush1.msra.mxu0 %v1582
        %1748 = vmatprep.subr.mxu0 0.0
        %1749 = vmatpush1.msra.mxu0 %v1583
        %1750 = vmatprep.subr.mxu0 0.0
        %1751 = vmatpush1.msra.mxu0 %v1584
        %1752 = vmatprep.subr.mxu0 0.0
        %1753 = vmatpush1.msra.mxu0 %v1585
        %1754 = vmatprep.subr.mxu0 0.0
        %1755 = vmatpush1.msra.mxu0 %v1586
        %1756 = vmatprep.subr.mxu0 0.0
        %1757 = vmatpush1.msra.mxu0 %v1587
        %1758 = vmatprep.subr.mxu0 0.0
        %1759 = vmatpush1.msra.mxu0 %v1588
        %1760 = vmatprep.subr.mxu0 0.0
        %1761 = vmatpush1.msra.mxu0 %v1589
        %1762 = vmatprep.subr.mxu0 0.0
        %1763 = vmatpush1.msra.mxu0 %v1590
        %1764 = vmatprep.subr.mxu0 0.0
        %1765 = vmatpush1.msra.mxu0 %v1591
        %1766 = vmatprep.subr.mxu0 0.0
        %1767 = vmatpush1.msra.mxu0 %v1592
        %1768 = vmatprep.subr.mxu0 0.0
        %1769 = vmatpush1.msra.mxu0 %v1593
        %1770 = vmatprep.subr.mxu0 0.0
        %1771 = vmatpush1.msra.mxu0 %v1594
        %1772 = vmatprep.subr.mxu0 0.0
        %1773 = vmatpush1.msra.mxu0 %v1595
        %1774 = vmatprep.subr.mxu0 0.0
        %1775 = vmatpush1.msra.mxu0 %v1596
        %1776 = vmatprep.subr.mxu0 0.0
        %1777 = vmatpush1.msra.mxu0 %v1597
        %1778 = vmatprep.subr.mxu0 0.0
        %1779 = vmatpush1.msra.mxu0 %v1598
        %1780 = vmatprep.subr.mxu0 0.0
        %1781 = vmatpush1.msra.mxu0 %v1599
        %1782 = vmatprep.subr.mxu0 0.0
        %1783 = vmatpush1.msra.mxu0 %v1600
        %1784 = vmatprep.subr.mxu0 0.0
        %1785 = vmatpush1.msra.mxu0 %v1601
        %1786 = vmatprep.subr.mxu0 0.0
        %1787 = vmatpush1.msra.mxu0 %v1602
        %1788 = vmatprep.subr.mxu0 0.0
        %1789 = vmatpush1.msra.mxu0 %v1603
        %1790 = vmatprep.subr.mxu0 0.0
        %1791 = vmatpush1.msra.mxu0 %v1604
        %1792 = vmatprep.subr.mxu0 0.0
        %1793 = vmatpush1.msra.mxu0 %v1605
        %1794 = vmatprep.subr.mxu0 0.0
        %1795 = vmatpush1.msra.mxu0 %v1606
        %1796 = vmatprep.subr.mxu0 0.0
        %1797 = vmatpush1.msra.mxu0 %v1607
        %1798 = vmatprep.subr.mxu0 0.0
        %1799 = vmatpush1.msra.mxu0 %v1608
        %1800 = vmatprep.subr.mxu0 0.0
        %1801 = vmatpush1.msra.mxu0 %v1609
        %1802 = vmatprep.mubr.f32.mxu0 %v1508
        %1803 = vmatmul.mubr.f32.gmra.mrb[0].mxu0 %v1507
        %v1804 = vpop.f32.mrb[0].mxu0
        %v1805 = vadd.f32 %v1700, %v1804
        %v1806 = vpop.f32.mrb[0].mxu0
        %1807 = vmatprep.mubr.f32.mxu0 %v1513
        %1808 = vmatmul.mubr.f32.gmra.mrb[0].mxu0 %v1512
        %v1809 = vpop.f32.mrb[0].mxu0
        %v1810 = vadd.f32 %v1705, %v1809
        %v1811 = vpop.f32.mrb[0].mxu0
        %1812 = vmatprep.mubr.f32.mxu0 %v1518
        %1813 = vmatmul.mubr.f32.gmra.mrb[0].mxu0 %v1517
        %v1814 = vpop.f32.mrb[0].mxu0
        %v1815 = vadd.f32 %v1710, %v1814
        %v1816 = vpop.f32.mrb[0].mxu0
        %1817 = vmatprep.mubr.f32.mxu0 %v1523
        %1818 = vmatmul.mubr.f32.gmra.mrb[0].mxu0 %v1522
        %v1819 = vpop.f32.mrb[0].mxu0
        %v1820 = vadd.f32 %v1715, %v1819
        %v1821 = vpop.f32.mrb[0].mxu0
        %1822 = vmatprep.mubr.f32.mxu0 %v1528
        %1823 = vmatmul.mubr.f32.gmra.mrb[0].mxu0 %v1527
        %v1824 = vpop.f32.mrb[0].mxu0
        %v1825 = vadd.f32 %v1720, %v1824
        %v1826 = vpop.f32.mrb[0].mxu0
        %1827 = vmatprep.mubr.f32.mxu0 %v1533
        %1828 = vmatmul.mubr.f32.gmra.mrb[0].mxu0 %v1532
        %v1829 = vpop.f32.mrb[0].mxu0
        %v1830 = vadd.f32 %v1725, %v1829
        %v1831 = vpop.f32.mrb[0].mxu0
        %1832 = vmatprep.mubr.f32.mxu0 %v1538
        %1833 = vmatmul.mubr.f32.gmra.mrb[0].mxu0 %v1537
        %v1834 = vpop.f32.mrb[0].mxu0
        %v1835 = vadd.f32 %v1730, %v1834
        %v1836 = vpop.f32.mrb[0].mxu0
        %1837 = vmatprep.mubr.f32.mxu0 %v1543
        %1838 = vmatmul.mubr.f32.gmra.mrb[0].mxu0 %v1542
        %v1839 = vpop.f32.mrb[0].mxu0
        %v1840 = vadd.f32 %v1735, %v1839
        %v1841 = vpop.f32.mrb[0].mxu0
        %1842 = vdwg.mxu0
        %1843 = vmatprep.subr.mxu0 0.0
        %1844 = vmatpush1.msra.mxu0 %v1610
        %1845 = vmatprep.subr.mxu0 0.0
        %1846 = vmatpush1.msra.mxu0 %v1611
        %1847 = vmatprep.subr.mxu0 0.0
        %1848 = vmatpush1.msra.mxu0 %v1612
        %1849 = vmatprep.subr.mxu0 0.0
        %1850 = vmatpush1.msra.mxu0 %v1613
        %1851 = vmatprep.subr.mxu0 0.0
        %1852 = vmatpush1.msra.mxu0 %v1614
        %1853 = vmatprep.subr.mxu0 0.0
        %1854 = vmatpush1.msra.mxu0 %v1615
        %1855 = vmatprep.subr.mxu0 0.0
        %1856 = vmatpush1.msra.mxu0 %v1616
        %1857 = vmatprep.subr.mxu0 0.0
        %1858 = vmatpush1.msra.mxu0 %v1617
        %1859 = vmatprep.subr.mxu0 0.0
        %1860 = vmatpush1.msra.mxu0 %v1618
        %1861 = vmatprep.subr.mxu0 0.0
        %1862 = vmatpush1.msra.mxu0 %v1619
        %1863 = vmatprep.subr.mxu0 0.0
        %1864 = vmatpush1.msra.mxu0 %v1620
        %1865 = vmatprep.subr.mxu0 0.0
        %1866 = vmatpush1.msra.mxu0 %v1621
        %1867 = vmatprep.subr.mxu0 0.0
        %1868 = vmatpush1.msra.mxu0 %v1622
        %1869 = vmatprep.subr.mxu0 0.0
        %1870 = vmatpush1.msra.mxu0 %v1623
        %1871 = vmatprep.subr.mxu0 0.0
        %1872 = vmatpush1.msra.mxu0 %v1624
        %1873 = vmatprep.subr.mxu0 0.0
        %1874 = vmatpush1.msra.mxu0 %v1625
        %1875 = vmatprep.subr.mxu0 0.0
        %1876 = vmatpush1.msra.mxu0 0.0
        %1877 = vmatprep.subr.mxu0 0.0
        %1878 = vmatpush1.msra.mxu0 0.0
        %1879 = vmatprep.subr.mxu0 0.0
        %1880 = vmatpush1.msra.mxu0 0.0
        %1881 = vmatprep.subr.mxu0 0.0
        %1882 = vmatpush1.msra.mxu0 0.0
        %1883 = vmatprep.subr.mxu0 0.0
        %1884 = vmatpush1.msra.mxu0 0.0
        %1885 = vmatprep.subr.mxu0 0.0
        %1886 = vmatpush1.msra.mxu0 0.0
        %1887 = vmatprep.subr.mxu0 0.0
        %1888 = vmatpush1.msra.mxu0 0.0
        %1889 = vmatprep.subr.mxu0 0.0
        %1890 = vmatpush1.msra.mxu0 0.0
        %1891 = vmatprep.subr.mxu0 0.0
        %1892 = vmatpush1.msra.mxu0 0.0
        %1893 = vmatprep.subr.mxu0 0.0
        %1894 = vmatpush1.msra.mxu0 0.0
        %1895 = vmatprep.subr.mxu0 0.0
        %1896 = vmatpush1.msra.mxu0 0.0
        %1897 = vmatprep.subr.mxu0 0.0
        %1898 = vmatpush1.msra.mxu0 0.0
        %1899 = vmatprep.subr.mxu0 0.0
        %1900 = vmatpush1.msra.mxu0 0.0
        %1901 = vmatprep.subr.mxu0 0.0
        %1902 = vmatpush1.msra.mxu0 0.0
        %1903 = vmatprep.subr.mxu0 0.0
        %1904 = vmatpush1.msra.mxu0 0.0
        %1905 = vmatprep.subr.mxu0 0.0
        %1906 = vmatpush1.msra.mxu0 0.0
        %1907 = vmatprep.mubr.f32.mxu0 0.0
        %1908 = vmatmul.mubr.f32.gmra.mrb[0].mxu0 %v1509
        %v1909 = vpop.f32.mrb[0].mxu0
        %v1910 = vadd.f32 %v1805, %v1909
        %v1911 = vpop.f32.mrb[0].mxu0
        %1912 = vmatprep.mubr.f32.mxu0 0.0
        %1913 = vmatmul.mubr.f32.gmra.mrb[0].mxu0 %v1514
        %v1914 = vpop.f32.mrb[0].mxu0
        %v1915 = vadd.f32 %v1810, %v1914
        %v1916 = vpop.f32.mrb[0].mxu0
        %1917 = vmatprep.mubr.f32.mxu0 0.0
        %1918 = vmatmul.mubr.f32.gmra.mrb[0].mxu0 %v1519
        %v1919 = vpop.f32.mrb[0].mxu0
        %v1920 = vadd.f32 %v1815, %v1919
        %v1921 = vpop.f32.mrb[0].mxu0
        %1922 = vmatprep.mubr.f32.mxu0 0.0
        %1923 = vmatmul.mubr.f32.gmra.mrb[0].mxu0 %v1524
        %v1924 = vpop.f32.mrb[0].mxu0
        %v1925 = vadd.f32 %v1820, %v1924
        %v1926 = vpop.f32.mrb[0].mxu0
        %1927 = vmatprep.mubr.f32.mxu0 0.0
        %1928 = vmatmul.mubr.f32.gmra.mrb[0].mxu0 %v1529
        %v1929 = vpop.f32.mrb[0].mxu0
        %v1930 = vadd.f32 %v1825, %v1929
        %v1931 = vpop.f32.mrb[0].mxu0
        %1932 = vmatprep.mubr.f32.mxu0 0.0
        %1933 = vmatmul.mubr.f32.gmra.mrb[0].mxu0 %v1534
        %v1934 = vpop.f32.mrb[0].mxu0
        %v1935 = vadd.f32 %v1830, %v1934
        %v1936 = vpop.f32.mrb[0].mxu0
        %1937 = vmatprep.mubr.f32.mxu0 0.0
        %1938 = vmatmul.mubr.f32.gmra.mrb[0].mxu0 %v1539
        %v1939 = vpop.f32.mrb[0].mxu0
        %v1940 = vadd.f32 %v1835, %v1939
        %v1941 = vpop.f32.mrb[0].mxu0
        %1942 = vmatprep.mubr.f32.mxu0 0.0
        %1943 = vmatmul.mubr.f32.gmra.mrb[0].mxu0 %v1544
        %v1944 = vpop.f32.mrb[0].mxu0
        %v1945 = vadd.f32 %v1840, %v1944
        %v1946 = vpop.f32.mrb[0].mxu0
        %1947 = vdwg.mxu0
        %v1948 = vmax.f32 %v1910, 0.0
        %v1949 = vmax.f32 %v1915, 0.0
        %v1950 = vmax.f32 %v1920, 0.0
        %v1951 = vmax.f32 %v1925, 0.0
        %v1952 = vmax.f32 %v1930, 0.0
        %v1953 = vmax.f32 %v1935, 0.0
        %v1954 = vmax.f32 %v1940, 0.0
        %v1955 = vmax.f32 %v1945, 0.0
        %v1956 = vlaneseq
        %v1957 = vshrl.u32 %v1956, 7
        %v1958 = vsub.s32 0, %v1957
        %v1959 = vrot.slane %v1627, %v1958
        %v1960 = vmul.f32 %v1948, %v1959
        %v1961 = vmul.f32 %v1949, %v1959
        %v1962 = vmul.f32 %v1950, %v1959
        %v1963 = vmul.f32 %v1951, %v1959
        %v1964 = vmul.f32 %v1952, %v1959
        %v1965 = vmul.f32 %v1953, %v1959
        %v1966 = vmul.f32 %v1954, %v1959
        %v1967 = vmul.f32 %v1955, %v1959
        %v1968 = vlaneseq
        %v1969 = vshrl.u32 %v1968, 7
        %v1970 = vsub.s32 0, %v1969
        %v1971 = vrot.slane %v1628, %v1970
        %v1972 = vadd.f32 %v1960, %v1971
        %v1973 = vadd.f32 %v1961, %v1971
        %v1974 = vadd.f32 %v1962, %v1971
        %v1975 = vadd.f32 %v1963, %v1971
        %v1976 = vadd.f32 %v1964, %v1971
        %v1977 = vadd.f32 %v1965, %v1971
        %v1978 = vadd.f32 %v1966, %v1971
        %v1979 = vadd.f32 %v1967, %v1971
        %v1980 = vmul.f32 %v1972, %v250
        %v1981 = vmul.f32 %v1973, %v251
        %v1982 = vmul.f32 %v1974, %v252
        %v1983 = vmul.f32 %v1975, %v253
        %v1984 = vmul.f32 %v1976, %v254
        %v1985 = vmul.f32 %v1977, %v255
        %v1986 = vmul.f32 %v1978, %v256
        %v1987 = vmul.f32 %v1979, %v257
        %v1988 = vadd.f32 %v838, %v1980
        %v1989 = vadd.f32 %v839, %v1981
        %v1990 = vadd.f32 %v840, %v1982
        %v1991 = vadd.f32 %v841, %v1983
        %v1992 = vadd.f32 %v842, %v1984
        %v1993 = vadd.f32 %v843, %v1985
        %v1994 = vadd.f32 %v844, %v1986
        %v1995 = vadd.f32 %v845, %v1987
        %1996 = vst [vmem:[#allocation2 + $0x8] sm:$0xff] %v1988
        %1997 = vst [vmem:[#allocation2 + $0x10] sm:$0xff] %v1989
        %1998 = vst [vmem:[#allocation2 + $0x18] sm:$0xff] %v1990
        %1999 = vst [vmem:[#allocation2 + $0x20] sm:$0xff] %v1991
        %2000 = vst [vmem:[#allocation2 + $0x28] sm:$0xff] %v1992
        %2001 = vst [vmem:[#allocation2 + $0x30] sm:$0xff] %v1993
        %2002 = vst [vmem:[#allocation2 + $0x38] sm:$0xff] %v1994
        %2003 = vst [vmem:[#allocation2 + $0x40] sm:$0xff] %v1995
        %v2004 = vld [vmem:[#allocation2 + $0x4] sm:$0xff]
        %v2005 = vld [vmem:[#allocation2 + $0xc] sm:$0xff]
        %v2006 = vld [vmem:[#allocation2 + $0x14] sm:$0xff]
        %v2007 = vld [vmem:[#allocation2 + $0x1c] sm:$0xff]
        %v2008 = vld [vmem:[#allocation2 + $0x24] sm:$0xff]
        %v2009 = vld [vmem:[#allocation2 + $0x2c] sm:$0xff]
        %v2010 = vld [vmem:[#allocation2 + $0x34] sm:$0xff]
        %v2011 = vld [vmem:[#allocation2 + $0x3c] sm:$0xff]
        %2012 = vst [vmem:[#allocation3] sm:$0xff] %v2004
        %2013 = vst [vmem:[#allocation3 + $0x28] sm:$0xff] %v2005
        %2014 = vst [vmem:[#allocation3 + $0x50] sm:$0xff] %v2006
        %2015 = vst [vmem:[#allocation3 + $0x78] sm:$0xff] %v2007
        %2016 = vst [vmem:[#allocation3 + $0xa0] sm:$0xff] %v2008
        %2017 = vst [vmem:[#allocation3 + $0xc8] sm:$0xff] %v2009
        %2018 = vst [vmem:[#allocation3 + $0xf0] sm:$0xff] %v2010
        %2019 = vst [vmem:[#allocation3 + $0x118] sm:$0xff] %v2011
        %v2020 = vld [vmem:[#allocation2 + $0x6] sm:$0xff]
        %v2021 = vld [vmem:[#allocation2 + $0xe] sm:$0xff]
        %v2022 = vld [vmem:[#allocation2 + $0x16] sm:$0xff]
        %v2023 = vld [vmem:[#allocation2 + $0x1e] sm:$0xff]
        %v2024 = vld [vmem:[#allocation2 + $0x26] sm:$0xff]
        %v2025 = vld [vmem:[#allocation2 + $0x2e] sm:$0xff]
        %v2026 = vld [vmem:[#allocation2 + $0x36] sm:$0xff]
        %v2027 = vld [vmem:[#allocation2 + $0x3e] sm:$0xff]
        %2028 = vst [vmem:[#allocation3 + $0x8] sm:$0xff] %v2020
        %2029 = vst [vmem:[#allocation3 + $0x30] sm:$0xff] %v2021
        %2030 = vst [vmem:[#allocation3 + $0x58] sm:$0xff] %v2022
        %2031 = vst [vmem:[#allocation3 + $0x80] sm:$0xff] %v2023
        %2032 = vst [vmem:[#allocation3 + $0xa8] sm:$0xff] %v2024
        %2033 = vst [vmem:[#allocation3 + $0xd0] sm:$0xff] %v2025
        %2034 = vst [vmem:[#allocation3 + $0xf8] sm:$0xff] %v2026
        %2035 = vst [vmem:[#allocation3 + $0x120] sm:$0xff] %v2027
        %v2036 = vld [vmem:[#allocation2 + $0x8] sm:$0xff]
        %v2037 = vld [vmem:[#allocation2 + $0x10] sm:$0xff]
        %v2038 = vld [vmem:[#allocation2 + $0x18] sm:$0xff]
        %v2039 = vld [vmem:[#allocation2 + $0x20] sm:$0xff]
        %v2040 = vld [vmem:[#allocation2 + $0x28] sm:$0xff]
        %v2041 = vld [vmem:[#allocation2 + $0x30] sm:$0xff]
        %v2042 = vld [vmem:[#allocation2 + $0x38] sm:$0xff]
        %v2043 = vld [vmem:[#allocation2 + $0x40] sm:$0xff]
        %2044 = vst [vmem:[#allocation3 + $0x10] sm:$0xff] %v2036
        %2045 = vst [vmem:[#allocation3 + $0x38] sm:$0xff] %v2037
        %2046 = vst [vmem:[#allocation3 + $0x60] sm:$0xff] %v2038
        %2047 = vst [vmem:[#allocation3 + $0x88] sm:$0xff] %v2039
        %2048 = vst [vmem:[#allocation3 + $0xb0] sm:$0xff] %v2040
        %2049 = vst [vmem:[#allocation3 + $0xd8] sm:$0xff] %v2041
        %2050 = vst [vmem:[#allocation3 + $0x100] sm:$0xff] %v2042
        %2051 = vst [vmem:[#allocation3 + $0x128] sm:$0xff] %v2043
        %v2052 = vld [vmem:[#allocation2 + $0xa] sm:$0xff]
        %v2053 = vld [vmem:[#allocation2 + $0x12] sm:$0xff]
        %v2054 = vld [vmem:[#allocation2 + $0x1a] sm:$0xff]
        %v2055 = vld [vmem:[#allocation2 + $0x22] sm:$0xff]
        %v2056 = vld [vmem:[#allocation2 + $0x2a] sm:$0xff]
        %v2057 = vld [vmem:[#allocation2 + $0x32] sm:$0xff]
        %v2058 = vld [vmem:[#allocation2 + $0x3a] sm:$0xff]
        %v2059 = vld [vmem:[#allocation2 + $0x42] sm:$0xff]
        %2060 = vst [vmem:[#allocation3 + $0x18] sm:$0xff] %v2052
        %2061 = vst [vmem:[#allocation3 + $0x40] sm:$0xff] %v2053
        %2062 = vst [vmem:[#allocation3 + $0x68] sm:$0xff] %v2054
        %2063 = vst [vmem:[#allocation3 + $0x90] sm:$0xff] %v2055
        %2064 = vst [vmem:[#allocation3 + $0xb8] sm:$0xff] %v2056
        %2065 = vst [vmem:[#allocation3 + $0xe0] sm:$0xff] %v2057
        %2066 = vst [vmem:[#allocation3 + $0x108] sm:$0xff] %v2058
        %2067 = vst [vmem:[#allocation3 + $0x130] sm:$0xff] %v2059
        %v2068 = vld [vmem:[#allocation2 + $0xc] sm:$0xff]
        %v2069 = vld [vmem:[#allocation2 + $0x14] sm:$0xff]
        %v2070 = vld [vmem:[#allocation2 + $0x1c] sm:$0xff]
        %v2071 = vld [vmem:[#allocation2 + $0x24] sm:$0xff]
        %v2072 = vld [vmem:[#allocation2 + $0x2c] sm:$0xff]
        %v2073 = vld [vmem:[#allocation2 + $0x34] sm:$0xff]
        %v2074 = vld [vmem:[#allocation2 + $0x3c] sm:$0xff]
        %v2075 = vld [vmem:[#allocation2 + $0x44] sm:$0xff]
        %2076 = vst [vmem:[#allocation3 + $0x20] sm:$0xff] %v2068
        %2077 = vst [vmem:[#allocation3 + $0x48] sm:$0xff] %v2069
        %2078 = vst [vmem:[#allocation3 + $0x70] sm:$0xff] %v2070
        %2079 = vst [vmem:[#allocation3 + $0x98] sm:$0xff] %v2071
        %2080 = vst [vmem:[#allocation3 + $0xc0] sm:$0xff] %v2072
        %2081 = vst [vmem:[#allocation3 + $0xe8] sm:$0xff] %v2073
        %2082 = vst [vmem:[#allocation3 + $0x110] sm:$0xff] %v2074
        %2083 = vst [vmem:[#allocation3 + $0x138] sm:$0xff] %v2075
        %v2084 = vld [vmem:[#allocation3] sm:$0xff]
        %v2085 = vld [vmem:[#allocation3 + $0x8] sm:$0xff]
        %v2086 = vld [vmem:[#allocation3 + $0x10] sm:$0xff]
        %v2087 = vld [vmem:[#allocation3 + $0x18] sm:$0xff]
        %v2088 = vld [vmem:[#allocation3 + $0x20] sm:$0xff]
        %v2089 = vld [vmem:[#allocation3 + $0x28] sm:$0xff]
        %v2090 = vld [vmem:[#allocation3 + $0x30] sm:$0xff]
        %v2091 = vld [vmem:[#allocation3 + $0x38] sm:$0xff]
        %v2092 = vld [vmem:[#allocation3 + $0x40] sm:$0xff]
        %v2093 = vld [vmem:[#allocation3 + $0x48] sm:$0xff]
        %v2094 = vld [vmem:[#allocation3 + $0x50] sm:$0xff]
        %v2095 = vld [vmem:[#allocation3 + $0x58] sm:$0xff]
        %v2096 = vld [vmem:[#allocation3 + $0x60] sm:$0xff]
        %v2097 = vld [vmem:[#allocation3 + $0x68] sm:$0xff]
        %v2098 = vld [vmem:[#allocation3 + $0x70] sm:$0xff]
        %v2099 = vld [vmem:[#allocation3 + $0x78] sm:$0xff]
        %v2100 = vld [vmem:[#allocation3 + $0x80] sm:$0xff]
        %v2101 = vld [vmem:[#allocation3 + $0x88] sm:$0xff]
        %v2102 = vld [vmem:[#allocation3 + $0x90] sm:$0xff]
        %v2103 = vld [vmem:[#allocation3 + $0x98] sm:$0xff]
        %v2104 = vld [vmem:[#allocation3 + $0xa0] sm:$0xff]
        %v2105 = vld [vmem:[#allocation3 + $0xa8] sm:$0xff]
        %v2106 = vld [vmem:[#allocation3 + $0xb0] sm:$0xff]
        %v2107 = vld [vmem:[#allocation3 + $0xb8] sm:$0xff]
        %v2108 = vld [vmem:[#allocation3 + $0xc0] sm:$0xff]
        %v2109 = vld [vmem:[#allocation3 + $0xc8] sm:$0xff]
        %v2110 = vld [vmem:[#allocation3 + $0xd0] sm:$0xff]
        %v2111 = vld [vmem:[#allocation3 + $0xd8] sm:$0xff]
        %v2112 = vld [vmem:[#allocation3 + $0xe0] sm:$0xff]
        %v2113 = vld [vmem:[#allocation3 + $0xe8] sm:$0xff]
        %v2114 = vld [vmem:[#allocation3 + $0xf0] sm:$0xff]
        %v2115 = vld [vmem:[#allocation3 + $0xf8] sm:$0xff]
        %v2116 = vld [vmem:[#allocation3 + $0x100] sm:$0xff]
        %v2117 = vld [vmem:[#allocation3 + $0x108] sm:$0xff]
        %v2118 = vld [vmem:[#allocation3 + $0x110] sm:$0xff]
        %v2119 = vld [vmem:[#allocation3 + $0x118] sm:$0xff]
        %v2120 = vld [vmem:[#allocation3 + $0x120] sm:$0xff]
        %v2121 = vld [vmem:[#allocation3 + $0x128] sm:$0xff]
        %v2122 = vld [vmem:[#allocation3 + $0x130] sm:$0xff]
        %v2123 = vld [vmem:[#allocation3 + $0x138] sm:$0xff]
        %s2124 = scalar_lea.vmem [#allocation9], 1920
        %v2125 = vld [vmem:[%s2124] sm:$0xff]
        %v2126 = vld [vmem:[%s2124 + $0x8] sm:$0xff]
        %v2127 = vld [vmem:[%s2124 + $0x10] sm:$0xff]
        %v2128 = vld [vmem:[%s2124 + $0x18] sm:$0xff]
        %v2129 = vld [vmem:[%s2124 + $0x20] sm:$0xff]
        %v2130 = vld [vmem:[%s2124 + $0x28] sm:$0xff]
        %v2131 = vld [vmem:[%s2124 + $0x30] sm:$0xff]
        %v2132 = vld [vmem:[%s2124 + $0x38] sm:$0xff]
        %v2133 = vld [vmem:[%s2124 + $0x40] sm:$0xff]
        %v2134 = vld [vmem:[%s2124 + $0x48] sm:$0xff]
        %v2135 = vld [vmem:[%s2124 + $0x50] sm:$0xff]
        %v2136 = vld [vmem:[%s2124 + $0x58] sm:$0xff]
        %v2137 = vld [vmem:[%s2124 + $0x60] sm:$0xff]
        %v2138 = vld [vmem:[%s2124 + $0x68] sm:$0xff]
        %v2139 = vld [vmem:[%s2124 + $0x70] sm:$0xff]
        %v2140 = vld [vmem:[%s2124 + $0x78] sm:$0xff]
        %v2141 = vld [vmem:[%s2124 + $0x80] sm:$0xff]
        %v2142 = vld [vmem:[%s2124 + $0x88] sm:$0xff]
        %v2143 = vld [vmem:[%s2124 + $0x90] sm:$0xff]
        %v2144 = vld [vmem:[%s2124 + $0x98] sm:$0xff]
        %v2145 = vld [vmem:[%s2124 + $0xa0] sm:$0xff]
        %v2146 = vld [vmem:[%s2124 + $0xa8] sm:$0xff]
        %v2147 = vld [vmem:[%s2124 + $0xb0] sm:$0xff]
        %v2148 = vld [vmem:[%s2124 + $0xb8] sm:$0xff]
        %v2149 = vld [vmem:[%s2124 + $0xc0] sm:$0xff]
        %v2150 = vld [vmem:[%s2124 + $0xc8] sm:$0xff]
        %v2151 = vld [vmem:[%s2124 + $0xd0] sm:$0xff]
        %v2152 = vld [vmem:[%s2124 + $0xd8] sm:$0xff]
        %v2153 = vld [vmem:[%s2124 + $0xe0] sm:$0xff]
        %v2154 = vld [vmem:[%s2124 + $0xe8] sm:$0xff]
        %v2155 = vld [vmem:[%s2124 + $0xf0] sm:$0xff]
        %v2156 = vld [vmem:[%s2124 + $0xf8] sm:$0xff]
        %v2157 = vld [vmem:[%s2124 + $0x100] sm:$0xff]
        %v2158 = vld [vmem:[%s2124 + $0x108] sm:$0xff]
        %v2159 = vld [vmem:[%s2124 + $0x110] sm:$0xff]
        %v2160 = vld [vmem:[%s2124 + $0x118] sm:$0xff]
        %v2161 = vld [vmem:[%s2124 + $0x120] sm:$0xff]
        %v2162 = vld [vmem:[%s2124 + $0x128] sm:$0xff]
        %v2163 = vld [vmem:[%s2124 + $0x130] sm:$0xff]
        %v2164 = vld [vmem:[%s2124 + $0x138] sm:$0xff]
        %v2165 = vld [vmem:[%s2124 + $0x140] sm:$0xff]
        %v2166 = vld [vmem:[%s2124 + $0x148] sm:$0xff]
        %v2167 = vld [vmem:[%s2124 + $0x150] sm:$0xff]
        %v2168 = vld [vmem:[%s2124 + $0x158] sm:$0xff]
        %v2169 = vld [vmem:[%s2124 + $0x160] sm:$0xff]
        %v2170 = vld [vmem:[%s2124 + $0x168] sm:$0xff]
        %v2171 = vld [vmem:[%s2124 + $0x170] sm:$0xff]
        %v2172 = vld [vmem:[%s2124 + $0x178] sm:$0xff]
        %v2173 = vld [vmem:[%s2124 + $0x180] sm:$0xff]
        %v2174 = vld [vmem:[%s2124 + $0x188] sm:$0xff]
        %v2175 = vld [vmem:[%s2124 + $0x190] sm:$0xff]
        %v2176 = vld [vmem:[%s2124 + $0x198] sm:$0xff]
        %v2177 = vld [vmem:[%s2124 + $0x1a0] sm:$0xff]
        %v2178 = vld [vmem:[%s2124 + $0x1a8] sm:$0xff]
        %v2179 = vld [vmem:[%s2124 + $0x1b0] sm:$0xff]
        %v2180 = vld [vmem:[%s2124 + $0x1b8] sm:$0xff]
        %v2181 = vld [vmem:[%s2124 + $0x1c0] sm:$0xff]
        %v2182 = vld [vmem:[%s2124 + $0x1c8] sm:$0xff]
        %v2183 = vld [vmem:[%s2124 + $0x1d0] sm:$0xff]
        %v2184 = vld [vmem:[%s2124 + $0x1d8] sm:$0xff]
        %v2185 = vld [vmem:[%s2124 + $0x1e0] sm:$0xff]
        %v2186 = vld [vmem:[%s2124 + $0x1e8] sm:$0xff]
        %v2187 = vld [vmem:[%s2124 + $0x1f0] sm:$0xff]
        %v2188 = vld [vmem:[%s2124 + $0x1f8] sm:$0xff]
        %v2189 = vld [vmem:[%s2124 + $0x200] sm:$0xff]
        %v2190 = vld [vmem:[%s2124 + $0x208] sm:$0xff]
        %v2191 = vld [vmem:[%s2124 + $0x210] sm:$0xff]
        %v2192 = vld [vmem:[%s2124 + $0x218] sm:$0xff]
        %v2193 = vld [vmem:[%s2124 + $0x220] sm:$0xff]
        %v2194 = vld [vmem:[%s2124 + $0x228] sm:$0xff]
        %v2195 = vld [vmem:[%s2124 + $0x230] sm:$0xff]
        %v2196 = vld [vmem:[%s2124 + $0x238] sm:$0xff]
        %v2197 = vld [vmem:[%s2124 + $0x240] sm:$0xff]
        %v2198 = vld [vmem:[%s2124 + $0x248] sm:$0xff]
        %v2199 = vld [vmem:[%s2124 + $0x250] sm:$0xff]
        %v2200 = vld [vmem:[%s2124 + $0x258] sm:$0xff]
        %v2201 = vld [vmem:[%s2124 + $0x260] sm:$0xff]
        %v2202 = vld [vmem:[%s2124 + $0x268] sm:$0xff]
        %v2203 = vld [vmem:[%s2124 + $0x270] sm:$0xff]
        %v2204 = vld [vmem:[%s2124 + $0x278] sm:$0xff]
        %v2205 = vld [vmem:[#allocation11 + $0x9] sm:$0x1]
        %v2206 = vld [vmem:[#allocation11 + $0xa] sm:$0x1]
        %v2207 = vld [vmem:[#allocation11 + $0xb] sm:$0x1]
        %v2208 = vlaneseq
        %v2209 = vshrl.u32 %v2208, 7
        %v2210 = vsub.s32 0, %v2209
        %v2211 = vrot.slane %v2205, %v2210
        %2212 = vmatprep.subr.mxu0 0.0
        %2213 = vmatpush1.msra.mxu0 %v2125
        %2214 = vmatprep.subr.mxu0 0.0
        %2215 = vmatpush1.msra.mxu0 %v2126
        %2216 = vmatprep.subr.mxu0 0.0
        %2217 = vmatpush1.msra.mxu0 %v2127
        %2218 = vmatprep.subr.mxu0 0.0
        %2219 = vmatpush1.msra.mxu0 %v2128
        %2220 = vmatprep.subr.mxu0 0.0
        %2221 = vmatpush1.msra.mxu0 %v2129
        %2222 = vmatprep.subr.mxu0 0.0
        %2223 = vmatpush1.msra.mxu0 %v2130
        %2224 = vmatprep.subr.mxu0 0.0
        %2225 = vmatpush1.msra.mxu0 %v2131
        %2226 = vmatprep.subr.mxu0 0.0
        %2227 = vmatpush1.msra.mxu0 %v2132
        %2228 = vmatprep.subr.mxu0 0.0
        %2229 = vmatpush1.msra.mxu0 %v2133
        %2230 = vmatprep.subr.mxu0 0.0
        %2231 = vmatpush1.msra.mxu0 %v2134
        %2232 = vmatprep.subr.mxu0 0.0
        %2233 = vmatpush1.msra.mxu0 %v2135
        %2234 = vmatprep.subr.mxu0 0.0
        %2235 = vmatpush1.msra.mxu0 %v2136
        %2236 = vmatprep.subr.mxu0 0.0
        %2237 = vmatpush1.msra.mxu0 %v2137
        %2238 = vmatprep.subr.mxu0 0.0
        %2239 = vmatpush1.msra.mxu0 %v2138
        %2240 = vmatprep.subr.mxu0 0.0
        %2241 = vmatpush1.msra.mxu0 %v2139
        %2242 = vmatprep.subr.mxu0 0.0
        %2243 = vmatpush1.msra.mxu0 %v2140
        %2244 = vmatprep.subr.mxu0 0.0
        %2245 = vmatpush1.msra.mxu0 %v2141
        %2246 = vmatprep.subr.mxu0 0.0
        %2247 = vmatpush1.msra.mxu0 %v2142
        %2248 = vmatprep.subr.mxu0 0.0
        %2249 = vmatpush1.msra.mxu0 %v2143
        %2250 = vmatprep.subr.mxu0 0.0
        %2251 = vmatpush1.msra.mxu0 %v2144
        %2252 = vmatprep.subr.mxu0 0.0
        %2253 = vmatpush1.msra.mxu0 %v2145
        %2254 = vmatprep.subr.mxu0 0.0
        %2255 = vmatpush1.msra.mxu0 %v2146
        %2256 = vmatprep.subr.mxu0 0.0
        %2257 = vmatpush1.msra.mxu0 %v2147
        %2258 = vmatprep.subr.mxu0 0.0
        %2259 = vmatpush1.msra.mxu0 %v2148
        %2260 = vmatprep.subr.mxu0 0.0
        %2261 = vmatpush1.msra.mxu0 %v2149
        %2262 = vmatprep.subr.mxu0 0.0
        %2263 = vmatpush1.msra.mxu0 %v2150
        %2264 = vmatprep.subr.mxu0 0.0
        %2265 = vmatpush1.msra.mxu0 %v2151
        %2266 = vmatprep.subr.mxu0 0.0
        %2267 = vmatpush1.msra.mxu0 %v2152
        %2268 = vmatprep.subr.mxu0 0.0
        %2269 = vmatpush1.msra.mxu0 %v2153
        %2270 = vmatprep.subr.mxu0 0.0
        %2271 = vmatpush1.msra.mxu0 %v2154
        %2272 = vmatprep.subr.mxu0 0.0
        %2273 = vmatpush1.msra.mxu0 %v2155
        %2274 = vmatprep.subr.mxu0 0.0
        %2275 = vmatpush1.msra.mxu0 %v2156
        %2276 = vmatprep.mubr.f32.mxu0 %v2085
        %2277 = vmatmul.mubr.f32.gmra.mrb[0].mxu0 %v2084
        %v2278 = vpop.f32.mrb[0].mxu0
        %v2279 = vadd.f32 %v2211, %v2278
        %v2280 = vpop.f32.mrb[0].mxu0
        %2281 = vmatprep.mubr.f32.mxu0 %v2090
        %2282 = vmatmul.mubr.f32.gmra.mrb[0].mxu0 %v2089
        %v2283 = vpop.f32.mrb[0].mxu0
        %v2284 = vadd.f32 %v2211, %v2283
        %v2285 = vpop.f32.mrb[0].mxu0
        %2286 = vmatprep.mubr.f32.mxu0 %v2095
        %2287 = vmatmul.mubr.f32.gmra.mrb[0].mxu0 %v2094
        %v2288 = vpop.f32.mrb[0].mxu0
        %v2289 = vadd.f32 %v2211, %v2288
        %v2290 = vpop.f32.mrb[0].mxu0
        %2291 = vmatprep.mubr.f32.mxu0 %v2100
        %2292 = vmatmul.mubr.f32.gmra.mrb[0].mxu0 %v2099
        %v2293 = vpop.f32.mrb[0].mxu0
        %v2294 = vadd.f32 %v2211, %v2293
        %v2295 = vpop.f32.mrb[0].mxu0
        %2296 = vmatprep.mubr.f32.mxu0 %v2105
        %2297 = vmatmul.mubr.f32.gmra.mrb[0].mxu0 %v2104
        %v2298 = vpop.f32.mrb[0].mxu0
        %v2299 = vadd.f32 %v2211, %v2298
        %v2300 = vpop.f32.mrb[0].mxu0
        %2301 = vmatprep.mubr.f32.mxu0 %v2110
        %2302 = vmatmul.mubr.f32.gmra.mrb[0].mxu0 %v2109
        %v2303 = vpop.f32.mrb[0].mxu0
        %v2304 = vadd.f32 %v2211, %v2303
        %v2305 = vpop.f32.mrb[0].mxu0
        %2306 = vmatprep.mubr.f32.mxu0 %v2115
        %2307 = vmatmul.mubr.f32.gmra.mrb[0].mxu0 %v2114
        %v2308 = vpop.f32.mrb[0].mxu0
        %v2309 = vadd.f32 %v2211, %v2308
        %v2310 = vpop.f32.mrb[0].mxu0
        %2311 = vmatprep.mubr.f32.mxu0 %v2120
        %2312 = vmatmul.mubr.f32.gmra.mrb[0].mxu0 %v2119
        %v2313 = vpop.f32.mrb[0].mxu0
        %v2314 = vadd.f32 %v2211, %v2313
        %v2315 = vpop.f32.mrb[0].mxu0
        %2316 = vdwg.mxu0
        %2317 = vmatprep.subr.mxu0 0.0
        %2318 = vmatpush1.msra.mxu0 %v2157
        %2319 = vmatprep.subr.mxu0 0.0
        %2320 = vmatpush1.msra.mxu0 %v2158
        %2321 = vmatprep.subr.mxu0 0.0
        %2322 = vmatpush1.msra.mxu0 %v2159
        %2323 = vmatprep.subr.mxu0 0.0
        %2324 = vmatpush1.msra.mxu0 %v2160
        %2325 = vmatprep.subr.mxu0 0.0
        %2326 = vmatpush1.msra.mxu0 %v2161
        %2327 = vmatprep.subr.mxu0 0.0
        %2328 = vmatpush1.msra.mxu0 %v2162
        %2329 = vmatprep.subr.mxu0 0.0
        %2330 = vmatpush1.msra.mxu0 %v2163
        %2331 = vmatprep.subr.mxu0 0.0
        %2332 = vmatpush1.msra.mxu0 %v2164
        %2333 = vmatprep.subr.mxu0 0.0
        %2334 = vmatpush1.msra.mxu0 %v2165
        %2335 = vmatprep.subr.mxu0 0.0
        %2336 = vmatpush1.msra.mxu0 %v2166
        %2337 = vmatprep.subr.mxu0 0.0
        %2338 = vmatpush1.msra.mxu0 %v2167
        %2339 = vmatprep.subr.mxu0 0.0
        %2340 = vmatpush1.msra.mxu0 %v2168
        %2341 = vmatprep.subr.mxu0 0.0
        %2342 = vmatpush1.msra.mxu0 %v2169
        %2343 = vmatprep.subr.mxu0 0.0
        %2344 = vmatpush1.msra.mxu0 %v2170
        %2345 = vmatprep.subr.mxu0 0.0
        %2346 = vmatpush1.msra.mxu0 %v2171
        %2347 = vmatprep.subr.mxu0 0.0
        %2348 = vmatpush1.msra.mxu0 %v2172
        %2349 = vmatprep.subr.mxu0 0.0
        %2350 = vmatpush1.msra.mxu0 %v2173
        %2351 = vmatprep.subr.mxu0 0.0
        %2352 = vmatpush1.msra.mxu0 %v2174
        %2353 = vmatprep.subr.mxu0 0.0
        %2354 = vmatpush1.msra.mxu0 %v2175
        %2355 = vmatprep.subr.mxu0 0.0
        %2356 = vmatpush1.msra.mxu0 %v2176
        %2357 = vmatprep.subr.mxu0 0.0
        %2358 = vmatpush1.msra.mxu0 %v2177
        %2359 = vmatprep.subr.mxu0 0.0
        %2360 = vmatpush1.msra.mxu0 %v2178
        %2361 = vmatprep.subr.mxu0 0.0
        %2362 = vmatpush1.msra.mxu0 %v2179
        %2363 = vmatprep.subr.mxu0 0.0
        %2364 = vmatpush1.msra.mxu0 %v2180
        %2365 = vmatprep.subr.mxu0 0.0
        %2366 = vmatpush1.msra.mxu0 %v2181
        %2367 = vmatprep.subr.mxu0 0.0
        %2368 = vmatpush1.msra.mxu0 %v2182
        %2369 = vmatprep.subr.mxu0 0.0
        %2370 = vmatpush1.msra.mxu0 %v2183
        %2371 = vmatprep.subr.mxu0 0.0
        %2372 = vmatpush1.msra.mxu0 %v2184
        %2373 = vmatprep.subr.mxu0 0.0
        %2374 = vmatpush1.msra.mxu0 %v2185
        %2375 = vmatprep.subr.mxu0 0.0
        %2376 = vmatpush1.msra.mxu0 %v2186
        %2377 = vmatprep.subr.mxu0 0.0
        %2378 = vmatpush1.msra.mxu0 %v2187
        %2379 = vmatprep.subr.mxu0 0.0
        %2380 = vmatpush1.msra.mxu0 %v2188
        %2381 = vmatprep.mubr.f32.mxu0 %v2087
        %2382 = vmatmul.mubr.f32.gmra.mrb[0].mxu0 %v2086
        %v2383 = vpop.f32.mrb[0].mxu0
        %v2384 = vadd.f32 %v2279, %v2383
        %v2385 = vpop.f32.mrb[0].mxu0
        %2386 = vmatprep.mubr.f32.mxu0 %v2092
        %2387 = vmatmul.mubr.f32.gmra.mrb[0].mxu0 %v2091
        %v2388 = vpop.f32.mrb[0].mxu0
        %v2389 = vadd.f32 %v2284, %v2388
        %v2390 = vpop.f32.mrb[0].mxu0
        %2391 = vmatprep.mubr.f32.mxu0 %v2097
        %2392 = vmatmul.mubr.f32.gmra.mrb[0].mxu0 %v2096
        %v2393 = vpop.f32.mrb[0].mxu0
        %v2394 = vadd.f32 %v2289, %v2393
        %v2395 = vpop.f32.mrb[0].mxu0
        %2396 = vmatprep.mubr.f32.mxu0 %v2102
        %2397 = vmatmul.mubr.f32.gmra.mrb[0].mxu0 %v2101
        %v2398 = vpop.f32.mrb[0].mxu0
        %v2399 = vadd.f32 %v2294, %v2398
        %v2400 = vpop.f32.mrb[0].mxu0
        %2401 = vmatprep.mubr.f32.mxu0 %v2107
        %2402 = vmatmul.mubr.f32.gmra.mrb[0].mxu0 %v2106
        %v2403 = vpop.f32.mrb[0].mxu0
        %v2404 = vadd.f32 %v2299, %v2403
        %v2405 = vpop.f32.mrb[0].mxu0
        %2406 = vmatprep.mubr.f32.mxu0 %v2112
        %2407 = vmatmul.mubr.f32.gmra.mrb[0].mxu0 %v2111
        %v2408 = vpop.f32.mrb[0].mxu0
        %v2409 = vadd.f32 %v2304, %v2408
        %v2410 = vpop.f32.mrb[0].mxu0
        %2411 = vmatprep.mubr.f32.mxu0 %v2117
        %2412 = vmatmul.mubr.f32.gmra.mrb[0].mxu0 %v2116
        %v2413 = vpop.f32.mrb[0].mxu0
        %v2414 = vadd.f32 %v2309, %v2413
        %v2415 = vpop.f32.mrb[0].mxu0
        %2416 = vmatprep.mubr.f32.mxu0 %v2122
        %2417 = vmatmul.mubr.f32.gmra.mrb[0].mxu0 %v2121
        %v2418 = vpop.f32.mrb[0].mxu0
        %v2419 = vadd.f32 %v2314, %v2418
        %v2420 = vpop.f32.mrb[0].mxu0
        %2421 = vdwg.mxu0
        %2422 = vmatprep.subr.mxu0 0.0
        %2423 = vmatpush1.msra.mxu0 %v2189
        %2424 = vmatprep.subr.mxu0 0.0
        %2425 = vmatpush1.msra.mxu0 %v2190
        %2426 = vmatprep.subr.mxu0 0.0
        %2427 = vmatpush1.msra.mxu0 %v2191
        %2428 = vmatprep.subr.mxu0 0.0
        %2429 = vmatpush1.msra.mxu0 %v2192
        %2430 = vmatprep.subr.mxu0 0.0
        %2431 = vmatpush1.msra.mxu0 %v2193
        %2432 = vmatprep.subr.mxu0 0.0
        %2433 = vmatpush1.msra.mxu0 %v2194
        %2434 = vmatprep.subr.mxu0 0.0
        %2435 = vmatpush1.msra.mxu0 %v2195
        %2436 = vmatprep.subr.mxu0 0.0
        %2437 = vmatpush1.msra.mxu0 %v2196
        %2438 = vmatprep.subr.mxu0 0.0
        %2439 = vmatpush1.msra.mxu0 %v2197
        %2440 = vmatprep.subr.mxu0 0.0
        %2441 = vmatpush1.msra.mxu0 %v2198
        %2442 = vmatprep.subr.mxu0 0.0
        %2443 = vmatpush1.msra.mxu0 %v2199
        %2444 = vmatprep.subr.mxu0 0.0
        %2445 = vmatpush1.msra.mxu0 %v2200
        %2446 = vmatprep.subr.mxu0 0.0
        %2447 = vmatpush1.msra.mxu0 %v2201
        %2448 = vmatprep.subr.mxu0 0.0
        %2449 = vmatpush1.msra.mxu0 %v2202
        %2450 = vmatprep.subr.mxu0 0.0
        %2451 = vmatpush1.msra.mxu0 %v2203
        %2452 = vmatprep.subr.mxu0 0.0
        %2453 = vmatpush1.msra.mxu0 %v2204
        %2454 = vmatprep.subr.mxu0 0.0
        %2455 = vmatpush1.msra.mxu0 0.0
        %2456 = vmatprep.subr.mxu0 0.0
        %2457 = vmatpush1.msra.mxu0 0.0
        %2458 = vmatprep.subr.mxu0 0.0
        %2459 = vmatpush1.msra.mxu0 0.0
        %2460 = vmatprep.subr.mxu0 0.0
        %2461 = vmatpush1.msra.mxu0 0.0
        %2462 = vmatprep.subr.mxu0 0.0
        %2463 = vmatpush1.msra.mxu0 0.0
        %2464 = vmatprep.subr.mxu0 0.0
        %2465 = vmatpush1.msra.mxu0 0.0
        %2466 = vmatprep.subr.mxu0 0.0
        %2467 = vmatpush1.msra.mxu0 0.0
        %2468 = vmatprep.subr.mxu0 0.0
        %2469 = vmatpush1.msra.mxu0 0.0
        %2470 = vmatprep.subr.mxu0 0.0
        %2471 = vmatpush1.msra.mxu0 0.0
        %2472 = vmatprep.subr.mxu0 0.0
        %2473 = vmatpush1.msra.mxu0 0.0
        %2474 = vmatprep.subr.mxu0 0.0
        %2475 = vmatpush1.msra.mxu0 0.0
        %2476 = vmatprep.subr.mxu0 0.0
        %2477 = vmatpush1.msra.mxu0 0.0
        %2478 = vmatprep.subr.mxu0 0.0
        %2479 = vmatpush1.msra.mxu0 0.0
        %2480 = vmatprep.subr.mxu0 0.0
        %2481 = vmatpush1.msra.mxu0 0.0
        %2482 = vmatprep.subr.mxu0 0.0
        %2483 = vmatpush1.msra.mxu0 0.0
        %2484 = vmatprep.subr.mxu0 0.0
        %2485 = vmatpush1.msra.mxu0 0.0
        %2486 = vmatprep.mubr.f32.mxu0 0.0
        %2487 = vmatmul.mubr.f32.gmra.mrb[0].mxu0 %v2088
        %v2488 = vpop.f32.mrb[0].mxu0
        %v2489 = vadd.f32 %v2384, %v2488
        %v2490 = vpop.f32.mrb[0].mxu0
        %2491 = vmatprep.mubr.f32.mxu0 0.0
        %2492 = vmatmul.mubr.f32.gmra.mrb[0].mxu0 %v2093
        %v2493 = vpop.f32.mrb[0].mxu0
        %v2494 = vadd.f32 %v2389, %v2493
        %v2495 = vpop.f32.mrb[0].mxu0
        %2496 = vmatprep.mubr.f32.mxu0 0.0
        %2497 = vmatmul.mubr.f32.gmra.mrb[0].mxu0 %v2098
        %v2498 = vpop.f32.mrb[0].mxu0
        %v2499 = vadd.f32 %v2394, %v2498
        %v2500 = vpop.f32.mrb[0].mxu0
        %2501 = vmatprep.mubr.f32.mxu0 0.0
        %2502 = vmatmul.mubr.f32.gmra.mrb[0].mxu0 %v2103
        %v2503 = vpop.f32.mrb[0].mxu0
        %v2504 = vadd.f32 %v2399, %v2503
        %v2505 = vpop.f32.mrb[0].mxu0
        %2506 = vmatprep.mubr.f32.mxu0 0.0
        %2507 = vmatmul.mubr.f32.gmra.mrb[0].mxu0 %v2108
        %v2508 = vpop.f32.mrb[0].mxu0
        %v2509 = vadd.f32 %v2404, %v2508
        %v2510 = vpop.f32.mrb[0].mxu0
        %2511 = vmatprep.mubr.f32.mxu0 0.0
        %2512 = vmatmul.mubr.f32.gmra.mrb[0].mxu0 %v2113
        %v2513 = vpop.f32.mrb[0].mxu0
        %v2514 = vadd.f32 %v2409, %v2513
        %v2515 = vpop.f32.mrb[0].mxu0
        %2516 = vmatprep.mubr.f32.mxu0 0.0
        %2517 = vmatmul.mubr.f32.gmra.mrb[0].mxu0 %v2118
        %v2518 = vpop.f32.mrb[0].mxu0
        %v2519 = vadd.f32 %v2414, %v2518
        %v2520 = vpop.f32.mrb[0].mxu0
        %2521 = vmatprep.mubr.f32.mxu0 0.0
        %2522 = vmatmul.mubr.f32.gmra.mrb[0].mxu0 %v2123
        %v2523 = vpop.f32.mrb[0].mxu0
        %v2524 = vadd.f32 %v2419, %v2523
        %v2525 = vpop.f32.mrb[0].mxu0
        %2526 = vdwg.mxu0
        %v2527 = vmax.f32 %v2489, 0.0
        %v2528 = vmax.f32 %v2494, 0.0
        %v2529 = vmax.f32 %v2499, 0.0
        %v2530 = vmax.f32 %v2504, 0.0
        %v2531 = vmax.f32 %v2509, 0.0
        %v2532 = vmax.f32 %v2514, 0.0
        %v2533 = vmax.f32 %v2519, 0.0
        %v2534 = vmax.f32 %v2524, 0.0
        %v2535 = vlaneseq
        %v2536 = vshrl.u32 %v2535, 7
        %v2537 = vsub.s32 0, %v2536
        %v2538 = vrot.slane %v2206, %v2537
        %v2539 = vmul.f32 %v2527, %v2538
        %v2540 = vmul.f32 %v2528, %v2538
        %v2541 = vmul.f32 %v2529, %v2538
        %v2542 = vmul.f32 %v2530, %v2538
        %v2543 = vmul.f32 %v2531, %v2538
        %v2544 = vmul.f32 %v2532, %v2538
        %v2545 = vmul.f32 %v2533, %v2538
        %v2546 = vmul.f32 %v2534, %v2538
        %v2547 = vlaneseq
        %v2548 = vshrl.u32 %v2547, 7
        %v2549 = vsub.s32 0, %v2548
        %v2550 = vrot.slane %v2207, %v2549
        %v2551 = vadd.f32 %v2539, %v2550
        %v2552 = vadd.f32 %v2540, %v2550
        %v2553 = vadd.f32 %v2541, %v2550
        %v2554 = vadd.f32 %v2542, %v2550
        %v2555 = vadd.f32 %v2543, %v2550
        %v2556 = vadd.f32 %v2544, %v2550
        %v2557 = vadd.f32 %v2545, %v2550
        %v2558 = vadd.f32 %v2546, %v2550
        %v2559 = vmul.f32 %v2551, %v250
        %v2560 = vmul.f32 %v2552, %v251
        %v2561 = vmul.f32 %v2553, %v252
        %v2562 = vmul.f32 %v2554, %v253
        %v2563 = vmul.f32 %v2555, %v254
        %v2564 = vmul.f32 %v2556, %v255
        %v2565 = vmul.f32 %v2557, %v256
        %v2566 = vmul.f32 %v2558, %v257
        %2567 = vst [vmem:[#allocation2 + $0x8] sm:$0xff] %v2559
        %2568 = vst [vmem:[#allocation2 + $0x10] sm:$0xff] %v2560
        %2569 = vst [vmem:[#allocation2 + $0x18] sm:$0xff] %v2561
        %2570 = vst [vmem:[#allocation2 + $0x20] sm:$0xff] %v2562
        %2571 = vst [vmem:[#allocation2 + $0x28] sm:$0xff] %v2563
        %2572 = vst [vmem:[#allocation2 + $0x30] sm:$0xff] %v2564
        %2573 = vst [vmem:[#allocation2 + $0x38] sm:$0xff] %v2565
        %2574 = vst [vmem:[#allocation2 + $0x40] sm:$0xff] %v2566
        %v2575 = vld [vmem:[#allocation2 + $0x4] sm:$0xff]
        %v2576 = vld [vmem:[#allocation2 + $0xc] sm:$0xff]
        %v2577 = vld [vmem:[#allocation2 + $0x14] sm:$0xff]
        %v2578 = vld [vmem:[#allocation2 + $0x1c] sm:$0xff]
        %v2579 = vld [vmem:[#allocation2 + $0x24] sm:$0xff]
        %v2580 = vld [vmem:[#allocation2 + $0x2c] sm:$0xff]
        %v2581 = vld [vmem:[#allocation2 + $0x34] sm:$0xff]
        %v2582 = vld [vmem:[#allocation2 + $0x3c] sm:$0xff]
        %2583 = vst [vmem:[#allocation3] sm:$0xff] %v2575
        %2584 = vst [vmem:[#allocation3 + $0x28] sm:$0xff] %v2576
        %2585 = vst [vmem:[#allocation3 + $0x50] sm:$0xff] %v2577
        %2586 = vst [vmem:[#allocation3 + $0x78] sm:$0xff] %v2578
        %2587 = vst [vmem:[#allocation3 + $0xa0] sm:$0xff] %v2579
        %2588 = vst [vmem:[#allocation3 + $0xc8] sm:$0xff] %v2580
        %2589 = vst [vmem:[#allocation3 + $0xf0] sm:$0xff] %v2581
        %2590 = vst [vmem:[#allocation3 + $0x118] sm:$0xff] %v2582
        %v2591 = vld [vmem:[#allocation2 + $0x6] sm:$0xff]
        %v2592 = vld [vmem:[#allocation2 + $0xe] sm:$0xff]
        %v2593 = vld [vmem:[#allocation2 + $0x16] sm:$0xff]
        %v2594 = vld [vmem:[#allocation2 + $0x1e] sm:$0xff]
        %v2595 = vld [vmem:[#allocation2 + $0x26] sm:$0xff]
        %v2596 = vld [vmem:[#allocation2 + $0x2e] sm:$0xff]
        %v2597 = vld [vmem:[#allocation2 + $0x36] sm:$0xff]
        %v2598 = vld [vmem:[#allocation2 + $0x3e] sm:$0xff]
        %2599 = vst [vmem:[#allocation3 + $0x8] sm:$0xff] %v2591
        %2600 = vst [vmem:[#allocation3 + $0x30] sm:$0xff] %v2592
        %2601 = vst [vmem:[#allocation3 + $0x58] sm:$0xff] %v2593
        %2602 = vst [vmem:[#allocation3 + $0x80] sm:$0xff] %v2594
        %2603 = vst [vmem:[#allocation3 + $0xa8] sm:$0xff] %v2595
        %2604 = vst [vmem:[#allocation3 + $0xd0] sm:$0xff] %v2596
        %2605 = vst [vmem:[#allocation3 + $0xf8] sm:$0xff] %v2597
        %2606 = vst [vmem:[#allocation3 + $0x120] sm:$0xff] %v2598
        %v2607 = vld [vmem:[#allocation2 + $0x8] sm:$0xff]
        %v2608 = vld [vmem:[#allocation2 + $0x10] sm:$0xff]
        %v2609 = vld [vmem:[#allocation2 + $0x18] sm:$0xff]
        %v2610 = vld [vmem:[#allocation2 + $0x20] sm:$0xff]
        %v2611 = vld [vmem:[#allocation2 + $0x28] sm:$0xff]
        %v2612 = vld [vmem:[#allocation2 + $0x30] sm:$0xff]
        %v2613 = vld [vmem:[#allocation2 + $0x38] sm:$0xff]
        %v2614 = vld [vmem:[#allocation2 + $0x40] sm:$0xff]
        %2615 = vst [vmem:[#allocation3 + $0x10] sm:$0xff] %v2607
        %2616 = vst [vmem:[#allocation3 + $0x38] sm:$0xff] %v2608
        %2617 = vst [vmem:[#allocation3 + $0x60] sm:$0xff] %v2609
        %2618 = vst [vmem:[#allocation3 + $0x88] sm:$0xff] %v2610
        %2619 = vst [vmem:[#allocation3 + $0xb0] sm:$0xff] %v2611
        %2620 = vst [vmem:[#allocation3 + $0xd8] sm:$0xff] %v2612
        %2621 = vst [vmem:[#allocation3 + $0x100] sm:$0xff] %v2613
        %2622 = vst [vmem:[#allocation3 + $0x128] sm:$0xff] %v2614
        %v2623 = vld [vmem:[#allocation2 + $0xa] sm:$0xff]
        %v2624 = vld [vmem:[#allocation2 + $0x12] sm:$0xff]
        %v2625 = vld [vmem:[#allocation2 + $0x1a] sm:$0xff]
        %v2626 = vld [vmem:[#allocation2 + $0x22] sm:$0xff]
        %v2627 = vld [vmem:[#allocation2 + $0x2a] sm:$0xff]
        %v2628 = vld [vmem:[#allocation2 + $0x32] sm:$0xff]
        %v2629 = vld [vmem:[#allocation2 + $0x3a] sm:$0xff]
        %v2630 = vld [vmem:[#allocation2 + $0x42] sm:$0xff]
        %2631 = vst [vmem:[#allocation3 + $0x18] sm:$0xff] %v2623
        %2632 = vst [vmem:[#allocation3 + $0x40] sm:$0xff] %v2624
        %2633 = vst [vmem:[#allocation3 + $0x68] sm:$0xff] %v2625
        %2634 = vst [vmem:[#allocation3 + $0x90] sm:$0xff] %v2626
        %2635 = vst [vmem:[#allocation3 + $0xb8] sm:$0xff] %v2627
        %2636 = vst [vmem:[#allocation3 + $0xe0] sm:$0xff] %v2628
        %2637 = vst [vmem:[#allocation3 + $0x108] sm:$0xff] %v2629
        %2638 = vst [vmem:[#allocation3 + $0x130] sm:$0xff] %v2630
        %v2639 = vld [vmem:[#allocation2 + $0xc] sm:$0xff]
        %v2640 = vld [vmem:[#allocation2 + $0x14] sm:$0xff]
        %v2641 = vld [vmem:[#allocation2 + $0x1c] sm:$0xff]
        %v2642 = vld [vmem:[#allocation2 + $0x24] sm:$0xff]
        %v2643 = vld [vmem:[#allocation2 + $0x2c] sm:$0xff]
        %v2644 = vld [vmem:[#allocation2 + $0x34] sm:$0xff]
        %v2645 = vld [vmem:[#allocation2 + $0x3c] sm:$0xff]
        %v2646 = vld [vmem:[#allocation2 + $0x44] sm:$0xff]
        %2647 = vst [vmem:[#allocation3 + $0x20] sm:$0xff] %v2639
        %2648 = vst [vmem:[#allocation3 + $0x48] sm:$0xff] %v2640
        %2649 = vst [vmem:[#allocation3 + $0x70] sm:$0xff] %v2641
        %2650 = vst [vmem:[#allocation3 + $0x98] sm:$0xff] %v2642
        %2651 = vst [vmem:[#allocation3 + $0xc0] sm:$0xff] %v2643
        %2652 = vst [vmem:[#allocation3 + $0xe8] sm:$0xff] %v2644
        %2653 = vst [vmem:[#allocation3 + $0x110] sm:$0xff] %v2645
        %2654 = vst [vmem:[#allocation3 + $0x138] sm:$0xff] %v2646
        %v2655 = vld [vmem:[#allocation3] sm:$0xff]
        %v2656 = vld [vmem:[#allocation3 + $0x8] sm:$0xff]
        %v2657 = vld [vmem:[#allocation3 + $0x10] sm:$0xff]
        %v2658 = vld [vmem:[#allocation3 + $0x18] sm:$0xff]
        %v2659 = vld [vmem:[#allocation3 + $0x20] sm:$0xff]
        %v2660 = vld [vmem:[#allocation3 + $0x28] sm:$0xff]
        %v2661 = vld [vmem:[#allocation3 + $0x30] sm:$0xff]
        %v2662 = vld [vmem:[#allocation3 + $0x38] sm:$0xff]
        %v2663 = vld [vmem:[#allocation3 + $0x40] sm:$0xff]
        %v2664 = vld [vmem:[#allocation3 + $0x48] sm:$0xff]
        %v2665 = vld [vmem:[#allocation3 + $0x50] sm:$0xff]
        %v2666 = vld [vmem:[#allocation3 + $0x58] sm:$0xff]
        %v2667 = vld [vmem:[#allocation3 + $0x60] sm:$0xff]
        %v2668 = vld [vmem:[#allocation3 + $0x68] sm:$0xff]
        %v2669 = vld [vmem:[#allocation3 + $0x70] sm:$0xff]
        %v2670 = vld [vmem:[#allocation3 + $0x78] sm:$0xff]
        %v2671 = vld [vmem:[#allocation3 + $0x80] sm:$0xff]
        %v2672 = vld [vmem:[#allocation3 + $0x88] sm:$0xff]
        %v2673 = vld [vmem:[#allocation3 + $0x90] sm:$0xff]
        %v2674 = vld [vmem:[#allocation3 + $0x98] sm:$0xff]
        %v2675 = vld [vmem:[#allocation3 + $0xa0] sm:$0xff]
        %v2676 = vld [vmem:[#allocation3 + $0xa8] sm:$0xff]
        %v2677 = vld [vmem:[#allocation3 + $0xb0] sm:$0xff]
        %v2678 = vld [vmem:[#allocation3 + $0xb8] sm:$0xff]
        %v2679 = vld [vmem:[#allocation3 + $0xc0] sm:$0xff]
        %v2680 = vld [vmem:[#allocation3 + $0xc8] sm:$0xff]
        %v2681 = vld [vmem:[#allocation3 + $0xd0] sm:$0xff]
        %v2682 = vld [vmem:[#allocation3 + $0xd8] sm:$0xff]
        %v2683 = vld [vmem:[#allocation3 + $0xe0] sm:$0xff]
        %v2684 = vld [vmem:[#allocation3 + $0xe8] sm:$0xff]
        %v2685 = vld [vmem:[#allocation3 + $0xf0] sm:$0xff]
        %v2686 = vld [vmem:[#allocation3 + $0xf8] sm:$0xff]
        %v2687 = vld [vmem:[#allocation3 + $0x100] sm:$0xff]
        %v2688 = vld [vmem:[#allocation3 + $0x108] sm:$0xff]
        %v2689 = vld [vmem:[#allocation3 + $0x110] sm:$0xff]
        %v2690 = vld [vmem:[#allocation3 + $0x118] sm:$0xff]
        %v2691 = vld [vmem:[#allocation3 + $0x120] sm:$0xff]
        %v2692 = vld [vmem:[#allocation3 + $0x128] sm:$0xff]
        %v2693 = vld [vmem:[#allocation3 + $0x130] sm:$0xff]
        %v2694 = vld [vmem:[#allocation3 + $0x138] sm:$0xff]
        %s2695 = scalar_lea.vmem [#allocation9], 2560
        %v2696 = vld [vmem:[%s2695] sm:$0xff]
        %v2697 = vld [vmem:[%s2695 + $0x8] sm:$0xff]
        %v2698 = vld [vmem:[%s2695 + $0x10] sm:$0xff]
        %v2699 = vld [vmem:[%s2695 + $0x18] sm:$0xff]
        %v2700 = vld [vmem:[%s2695 + $0x20] sm:$0xff]
        %v2701 = vld [vmem:[%s2695 + $0x28] sm:$0xff]
        %v2702 = vld [vmem:[%s2695 + $0x30] sm:$0xff]
        %v2703 = vld [vmem:[%s2695 + $0x38] sm:$0xff]
        %v2704 = vld [vmem:[%s2695 + $0x40] sm:$0xff]
        %v2705 = vld [vmem:[%s2695 + $0x48] sm:$0xff]
        %v2706 = vld [vmem:[%s2695 + $0x50] sm:$0xff]
        %v2707 = vld [vmem:[%s2695 + $0x58] sm:$0xff]
        %v2708 = vld [vmem:[%s2695 + $0x60] sm:$0xff]
        %v2709 = vld [vmem:[%s2695 + $0x68] sm:$0xff]
        %v2710 = vld [vmem:[%s2695 + $0x70] sm:$0xff]
        %v2711 = vld [vmem:[%s2695 + $0x78] sm:$0xff]
        %v2712 = vld [vmem:[%s2695 + $0x80] sm:$0xff]
        %v2713 = vld [vmem:[%s2695 + $0x88] sm:$0xff]
        %v2714 = vld [vmem:[%s2695 + $0x90] sm:$0xff]
        %v2715 = vld [vmem:[%s2695 + $0x98] sm:$0xff]
        %v2716 = vld [vmem:[%s2695 + $0xa0] sm:$0xff]
        %v2717 = vld [vmem:[%s2695 + $0xa8] sm:$0xff]
        %v2718 = vld [vmem:[%s2695 + $0xb0] sm:$0xff]
        %v2719 = vld [vmem:[%s2695 + $0xb8] sm:$0xff]
        %v2720 = vld [vmem:[%s2695 + $0xc0] sm:$0xff]
        %v2721 = vld [vmem:[%s2695 + $0xc8] sm:$0xff]
        %v2722 = vld [vmem:[%s2695 + $0xd0] sm:$0xff]
        %v2723 = vld [vmem:[%s2695 + $0xd8] sm:$0xff]
        %v2724 = vld [vmem:[%s2695 + $0xe0] sm:$0xff]
        %v2725 = vld [vmem:[%s2695 + $0xe8] sm:$0xff]
        %v2726 = vld [vmem:[%s2695 + $0xf0] sm:$0xff]
        %v2727 = vld [vmem:[%s2695 + $0xf8] sm:$0xff]
        %v2728 = vld [vmem:[%s2695 + $0x100] sm:$0xff]
        %v2729 = vld [vmem:[%s2695 + $0x108] sm:$0xff]
        %v2730 = vld [vmem:[%s2695 + $0x110] sm:$0xff]
        %v2731 = vld [vmem:[%s2695 + $0x118] sm:$0xff]
        %v2732 = vld [vmem:[%s2695 + $0x120] sm:$0xff]
        %v2733 = vld [vmem:[%s2695 + $0x128] sm:$0xff]
        %v2734 = vld [vmem:[%s2695 + $0x130] sm:$0xff]
        %v2735 = vld [vmem:[%s2695 + $0x138] sm:$0xff]
        %v2736 = vld [vmem:[%s2695 + $0x140] sm:$0xff]
        %v2737 = vld [vmem:[%s2695 + $0x148] sm:$0xff]
        %v2738 = vld [vmem:[%s2695 + $0x150] sm:$0xff]
        %v2739 = vld [vmem:[%s2695 + $0x158] sm:$0xff]
        %v2740 = vld [vmem:[%s2695 + $0x160] sm:$0xff]
        %v2741 = vld [vmem:[%s2695 + $0x168] sm:$0xff]
        %v2742 = vld [vmem:[%s2695 + $0x170] sm:$0xff]
        %v2743 = vld [vmem:[%s2695 + $0x178] sm:$0xff]
        %v2744 = vld [vmem:[%s2695 + $0x180] sm:$0xff]
        %v2745 = vld [vmem:[%s2695 + $0x188] sm:$0xff]
        %v2746 = vld [vmem:[%s2695 + $0x190] sm:$0xff]
        %v2747 = vld [vmem:[%s2695 + $0x198] sm:$0xff]
        %v2748 = vld [vmem:[%s2695 + $0x1a0] sm:$0xff]
        %v2749 = vld [vmem:[%s2695 + $0x1a8] sm:$0xff]
        %v2750 = vld [vmem:[%s2695 + $0x1b0] sm:$0xff]
        %v2751 = vld [vmem:[%s2695 + $0x1b8] sm:$0xff]
        %v2752 = vld [vmem:[%s2695 + $0x1c0] sm:$0xff]
        %v2753 = vld [vmem:[%s2695 + $0x1c8] sm:$0xff]
        %v2754 = vld [vmem:[%s2695 + $0x1d0] sm:$0xff]
        %v2755 = vld [vmem:[%s2695 + $0x1d8] sm:$0xff]
        %v2756 = vld [vmem:[%s2695 + $0x1e0] sm:$0xff]
        %v2757 = vld [vmem:[%s2695 + $0x1e8] sm:$0xff]
        %v2758 = vld [vmem:[%s2695 + $0x1f0] sm:$0xff]
        %v2759 = vld [vmem:[%s2695 + $0x1f8] sm:$0xff]
        %v2760 = vld [vmem:[%s2695 + $0x200] sm:$0xff]
        %v2761 = vld [vmem:[%s2695 + $0x208] sm:$0xff]
        %v2762 = vld [vmem:[%s2695 + $0x210] sm:$0xff]
        %v2763 = vld [vmem:[%s2695 + $0x218] sm:$0xff]
        %v2764 = vld [vmem:[%s2695 + $0x220] sm:$0xff]
        %v2765 = vld [vmem:[%s2695 + $0x228] sm:$0xff]
        %v2766 = vld [vmem:[%s2695 + $0x230] sm:$0xff]
        %v2767 = vld [vmem:[%s2695 + $0x238] sm:$0xff]
        %v2768 = vld [vmem:[%s2695 + $0x240] sm:$0xff]
        %v2769 = vld [vmem:[%s2695 + $0x248] sm:$0xff]
        %v2770 = vld [vmem:[%s2695 + $0x250] sm:$0xff]
        %v2771 = vld [vmem:[%s2695 + $0x258] sm:$0xff]
        %v2772 = vld [vmem:[%s2695 + $0x260] sm:$0xff]
        %v2773 = vld [vmem:[%s2695 + $0x268] sm:$0xff]
        %v2774 = vld [vmem:[%s2695 + $0x270] sm:$0xff]
        %v2775 = vld [vmem:[%s2695 + $0x278] sm:$0xff]
        %v2776 = vld [vmem:[#allocation11 + $0xc] sm:$0x1]
        %v2777 = vld [vmem:[#allocation11 + $0xd] sm:$0x1]
        %v2778 = vld [vmem:[#allocation11 + $0xe] sm:$0x1]
        %v2779 = vlaneseq
        %v2780 = vshrl.u32 %v2779, 7
        %v2781 = vsub.s32 0, %v2780
        %v2782 = vrot.slane %v2776, %v2781
        %2783 = vmatprep.subr.mxu0 0.0
        %2784 = vmatpush1.msra.mxu0 %v2696
        %2785 = vmatprep.subr.mxu0 0.0
        %2786 = vmatpush1.msra.mxu0 %v2697
        %2787 = vmatprep.subr.mxu0 0.0
        %2788 = vmatpush1.msra.mxu0 %v2698
        %2789 = vmatprep.subr.mxu0 0.0
        %2790 = vmatpush1.msra.mxu0 %v2699
        %2791 = vmatprep.subr.mxu0 0.0
        %2792 = vmatpush1.msra.mxu0 %v2700
        %2793 = vmatprep.subr.mxu0 0.0
        %2794 = vmatpush1.msra.mxu0 %v2701
        %2795 = vmatprep.subr.mxu0 0.0
        %2796 = vmatpush1.msra.mxu0 %v2702
        %2797 = vmatprep.subr.mxu0 0.0
        %2798 = vmatpush1.msra.mxu0 %v2703
        %2799 = vmatprep.subr.mxu0 0.0
        %2800 = vmatpush1.msra.mxu0 %v2704
        %2801 = vmatprep.subr.mxu0 0.0
        %2802 = vmatpush1.msra.mxu0 %v2705
        %2803 = vmatprep.subr.mxu0 0.0
        %2804 = vmatpush1.msra.mxu0 %v2706
        %2805 = vmatprep.subr.mxu0 0.0
        %2806 = vmatpush1.msra.mxu0 %v2707
        %2807 = vmatprep.subr.mxu0 0.0
        %2808 = vmatpush1.msra.mxu0 %v2708
        %2809 = vmatprep.subr.mxu0 0.0
        %2810 = vmatpush1.msra.mxu0 %v2709
        %2811 = vmatprep.subr.mxu0 0.0
        %2812 = vmatpush1.msra.mxu0 %v2710
        %2813 = vmatprep.subr.mxu0 0.0
        %2814 = vmatpush1.msra.mxu0 %v2711
        %2815 = vmatprep.subr.mxu0 0.0
        %2816 = vmatpush1.msra.mxu0 %v2712
        %2817 = vmatprep.subr.mxu0 0.0
        %2818 = vmatpush1.msra.mxu0 %v2713
        %2819 = vmatprep.subr.mxu0 0.0
        %2820 = vmatpush1.msra.mxu0 %v2714
        %2821 = vmatprep.subr.mxu0 0.0
        %2822 = vmatpush1.msra.mxu0 %v2715
        %2823 = vmatprep.subr.mxu0 0.0
        %2824 = vmatpush1.msra.mxu0 %v2716
        %2825 = vmatprep.subr.mxu0 0.0
        %2826 = vmatpush1.msra.mxu0 %v2717
        %2827 = vmatprep.subr.mxu0 0.0
        %2828 = vmatpush1.msra.mxu0 %v2718
        %2829 = vmatprep.subr.mxu0 0.0
        %2830 = vmatpush1.msra.mxu0 %v2719
        %2831 = vmatprep.subr.mxu0 0.0
        %2832 = vmatpush1.msra.mxu0 %v2720
        %2833 = vmatprep.subr.mxu0 0.0
        %2834 = vmatpush1.msra.mxu0 %v2721
        %2835 = vmatprep.subr.mxu0 0.0
        %2836 = vmatpush1.msra.mxu0 %v2722
        %2837 = vmatprep.subr.mxu0 0.0
        %2838 = vmatpush1.msra.mxu0 %v2723
        %2839 = vmatprep.subr.mxu0 0.0
        %2840 = vmatpush1.msra.mxu0 %v2724
        %2841 = vmatprep.subr.mxu0 0.0
        %2842 = vmatpush1.msra.mxu0 %v2725
        %2843 = vmatprep.subr.mxu0 0.0
        %2844 = vmatpush1.msra.mxu0 %v2726
        %2845 = vmatprep.subr.mxu0 0.0
        %2846 = vmatpush1.msra.mxu0 %v2727
        %2847 = vmatprep.mubr.f32.mxu0 %v2656
        %2848 = vmatmul.mubr.f32.gmra.mrb[0].mxu0 %v2655
        %v2849 = vpop.f32.mrb[0].mxu0
        %v2850 = vadd.f32 %v2782, %v2849
        %v2851 = vpop.f32.mrb[0].mxu0
        %2852 = vmatprep.mubr.f32.mxu0 %v2661
        %2853 = vmatmul.mubr.f32.gmra.mrb[0].mxu0 %v2660
        %v2854 = vpop.f32.mrb[0].mxu0
        %v2855 = vadd.f32 %v2782, %v2854
        %v2856 = vpop.f32.mrb[0].mxu0
        %2857 = vmatprep.mubr.f32.mxu0 %v2666
        %2858 = vmatmul.mubr.f32.gmra.mrb[0].mxu0 %v2665
        %v2859 = vpop.f32.mrb[0].mxu0
        %v2860 = vadd.f32 %v2782, %v2859
        %v2861 = vpop.f32.mrb[0].mxu0
        %2862 = vmatprep.mubr.f32.mxu0 %v2671
        %2863 = vmatmul.mubr.f32.gmra.mrb[0].mxu0 %v2670
        %v2864 = vpop.f32.mrb[0].mxu0
        %v2865 = vadd.f32 %v2782, %v2864
        %v2866 = vpop.f32.mrb[0].mxu0
        %2867 = vmatprep.mubr.f32.mxu0 %v2676
        %2868 = vmatmul.mubr.f32.gmra.mrb[0].mxu0 %v2675
        %v2869 = vpop.f32.mrb[0].mxu0
        %v2870 = vadd.f32 %v2782, %v2869
        %v2871 = vpop.f32.mrb[0].mxu0
        %2872 = vmatprep.mubr.f32.mxu0 %v2681
        %2873 = vmatmul.mubr.f32.gmra.mrb[0].mxu0 %v2680
        %v2874 = vpop.f32.mrb[0].mxu0
        %v2875 = vadd.f32 %v2782, %v2874
        %v2876 = vpop.f32.mrb[0].mxu0
        %2877 = vmatprep.mubr.f32.mxu0 %v2686
        %2878 = vmatmul.mubr.f32.gmra.mrb[0].mxu0 %v2685
        %v2879 = vpop.f32.mrb[0].mxu0
        %v2880 = vadd.f32 %v2782, %v2879
        %v2881 = vpop.f32.mrb[0].mxu0
        %2882 = vmatprep.mubr.f32.mxu0 %v2691
        %2883 = vmatmul.mubr.f32.gmra.mrb[0].mxu0 %v2690
        %v2884 = vpop.f32.mrb[0].mxu0
        %v2885 = vadd.f32 %v2782, %v2884
        %v2886 = vpop.f32.mrb[0].mxu0
        %2887 = vdwg.mxu0
        %2888 = vmatprep.subr.mxu0 0.0
        %2889 = vmatpush1.msra.mxu0 %v2728
        %2890 = vmatprep.subr.mxu0 0.0
        %2891 = vmatpush1.msra.mxu0 %v2729
        %2892 = vmatprep.subr.mxu0 0.0
        %2893 = vmatpush1.msra.mxu0 %v2730
        %2894 = vmatprep.subr.mxu0 0.0
        %2895 = vmatpush1.msra.mxu0 %v2731
        %2896 = vmatprep.subr.mxu0 0.0
        %2897 = vmatpush1.msra.mxu0 %v2732
        %2898 = vmatprep.subr.mxu0 0.0
        %2899 = vmatpush1.msra.mxu0 %v2733
        %2900 = vmatprep.subr.mxu0 0.0
        %2901 = vmatpush1.msra.mxu0 %v2734
        %2902 = vmatprep.subr.mxu0 0.0
        %2903 = vmatpush1.msra.mxu0 %v2735
        %2904 = vmatprep.subr.mxu0 0.0
        %2905 = vmatpush1.msra.mxu0 %v2736
        %2906 = vmatprep.subr.mxu0 0.0
        %2907 = vmatpush1.msra.mxu0 %v2737
        %2908 = vmatprep.subr.mxu0 0.0
        %2909 = vmatpush1.msra.mxu0 %v2738
        %2910 = vmatprep.subr.mxu0 0.0
        %2911 = vmatpush1.msra.mxu0 %v2739
        %2912 = vmatprep.subr.mxu0 0.0
        %2913 = vmatpush1.msra.mxu0 %v2740
        %2914 = vmatprep.subr.mxu0 0.0
        %2915 = vmatpush1.msra.mxu0 %v2741
        %2916 = vmatprep.subr.mxu0 0.0
        %2917 = vmatpush1.msra.mxu0 %v2742
        %2918 = vmatprep.subr.mxu0 0.0
        %2919 = vmatpush1.msra.mxu0 %v2743
        %2920 = vmatprep.subr.mxu0 0.0
        %2921 = vmatpush1.msra.mxu0 %v2744
        %2922 = vmatprep.subr.mxu0 0.0
        %2923 = vmatpush1.msra.mxu0 %v2745
        %2924 = vmatprep.subr.mxu0 0.0
        %2925 = vmatpush1.msra.mxu0 %v2746
        %2926 = vmatprep.subr.mxu0 0.0
        %2927 = vmatpush1.msra.mxu0 %v2747
        %2928 = vmatprep.subr.mxu0 0.0
        %2929 = vmatpush1.msra.mxu0 %v2748
        %2930 = vmatprep.subr.mxu0 0.0
        %2931 = vmatpush1.msra.mxu0 %v2749
        %2932 = vmatprep.subr.mxu0 0.0
        %2933 = vmatpush1.msra.mxu0 %v2750
        %2934 = vmatprep.subr.mxu0 0.0
        %2935 = vmatpush1.msra.mxu0 %v2751
        %2936 = vmatprep.subr.mxu0 0.0
        %2937 = vmatpush1.msra.mxu0 %v2752
        %2938 = vmatprep.subr.mxu0 0.0
        %2939 = vmatpush1.msra.mxu0 %v2753
        %2940 = vmatprep.subr.mxu0 0.0
        %2941 = vmatpush1.msra.mxu0 %v2754
        %2942 = vmatprep.subr.mxu0 0.0
        %2943 = vmatpush1.msra.mxu0 %v2755
        %2944 = vmatprep.subr.mxu0 0.0
        %2945 = vmatpush1.msra.mxu0 %v2756
        %2946 = vmatprep.subr.mxu0 0.0
        %2947 = vmatpush1.msra.mxu0 %v2757
        %2948 = vmatprep.subr.mxu0 0.0
        %2949 = vmatpush1.msra.mxu0 %v2758
        %2950 = vmatprep.subr.mxu0 0.0
        %2951 = vmatpush1.msra.mxu0 %v2759
        %2952 = vmatprep.mubr.f32.mxu0 %v2658
        %2953 = vmatmul.mubr.f32.gmra.mrb[0].mxu0 %v2657
        %v2954 = vpop.f32.mrb[0].mxu0
        %v2955 = vadd.f32 %v2850, %v2954
        %v2956 = vpop.f32.mrb[0].mxu0
        %2957 = vmatprep.mubr.f32.mxu0 %v2663
        %2958 = vmatmul.mubr.f32.gmra.mrb[0].mxu0 %v2662
        %v2959 = vpop.f32.mrb[0].mxu0
        %v2960 = vadd.f32 %v2855, %v2959
        %v2961 = vpop.f32.mrb[0].mxu0
        %2962 = vmatprep.mubr.f32.mxu0 %v2668
        %2963 = vmatmul.mubr.f32.gmra.mrb[0].mxu0 %v2667
        %v2964 = vpop.f32.mrb[0].mxu0
        %v2965 = vadd.f32 %v2860, %v2964
        %v2966 = vpop.f32.mrb[0].mxu0
        %2967 = vmatprep.mubr.f32.mxu0 %v2673
        %2968 = vmatmul.mubr.f32.gmra.mrb[0].mxu0 %v2672
        %v2969 = vpop.f32.mrb[0].mxu0
        %v2970 = vadd.f32 %v2865, %v2969
        %v2971 = vpop.f32.mrb[0].mxu0
        %2972 = vmatprep.mubr.f32.mxu0 %v2678
        %2973 = vmatmul.mubr.f32.gmra.mrb[0].mxu0 %v2677
        %v2974 = vpop.f32.mrb[0].mxu0
        %v2975 = vadd.f32 %v2870, %v2974
        %v2976 = vpop.f32.mrb[0].mxu0
        %2977 = vmatprep.mubr.f32.mxu0 %v2683
        %2978 = vmatmul.mubr.f32.gmra.mrb[0].mxu0 %v2682
        %v2979 = vpop.f32.mrb[0].mxu0
        %v2980 = vadd.f32 %v2875, %v2979
        %v2981 = vpop.f32.mrb[0].mxu0
        %2982 = vmatprep.mubr.f32.mxu0 %v2688
        %2983 = vmatmul.mubr.f32.gmra.mrb[0].mxu0 %v2687
        %v2984 = vpop.f32.mrb[0].mxu0
        %v2985 = vadd.f32 %v2880, %v2984
        %v2986 = vpop.f32.mrb[0].mxu0
        %2987 = vmatprep.mubr.f32.mxu0 %v2693
        %2988 = vmatmul.mubr.f32.gmra.mrb[0].mxu0 %v2692
        %v2989 = vpop.f32.mrb[0].mxu0
        %v2990 = vadd.f32 %v2885, %v2989
        %v2991 = vpop.f32.mrb[0].mxu0
        %2992 = vdwg.mxu0
        %2993 = vmatprep.subr.mxu0 0.0
        %2994 = vmatpush1.msra.mxu0 %v2760
        %2995 = vmatprep.subr.mxu0 0.0
        %2996 = vmatpush1.msra.mxu0 %v2761
        %2997 = vmatprep.subr.mxu0 0.0
        %2998 = vmatpush1.msra.mxu0 %v2762
        %2999 = vmatprep.subr.mxu0 0.0
        %3000 = vmatpush1.msra.mxu0 %v2763
        %3001 = vmatprep.subr.mxu0 0.0
        %3002 = vmatpush1.msra.mxu0 %v2764
        %3003 = vmatprep.subr.mxu0 0.0
        %3004 = vmatpush1.msra.mxu0 %v2765
        %3005 = vmatprep.subr.mxu0 0.0
        %3006 = vmatpush1.msra.mxu0 %v2766
        %3007 = vmatprep.subr.mxu0 0.0
        %3008 = vmatpush1.msra.mxu0 %v2767
        %3009 = vmatprep.subr.mxu0 0.0
        %3010 = vmatpush1.msra.mxu0 %v2768
        %3011 = vmatprep.subr.mxu0 0.0
        %3012 = vmatpush1.msra.mxu0 %v2769
        %3013 = vmatprep.subr.mxu0 0.0
        %3014 = vmatpush1.msra.mxu0 %v2770
        %3015 = vmatprep.subr.mxu0 0.0
        %3016 = vmatpush1.msra.mxu0 %v2771
        %3017 = vmatprep.subr.mxu0 0.0
        %3018 = vmatpush1.msra.mxu0 %v2772
        %3019 = vmatprep.subr.mxu0 0.0
        %3020 = vmatpush1.msra.mxu0 %v2773
        %3021 = vmatprep.subr.mxu0 0.0
        %3022 = vmatpush1.msra.mxu0 %v2774
        %3023 = vmatprep.subr.mxu0 0.0
        %3024 = vmatpush1.msra.mxu0 %v2775
        %3025 = vmatprep.subr.mxu0 0.0
        %3026 = vmatpush1.msra.mxu0 0.0
        %3027 = vmatprep.subr.mxu0 0.0
        %3028 = vmatpush1.msra.mxu0 0.0
        %3029 = vmatprep.subr.mxu0 0.0
        %3030 = vmatpush1.msra.mxu0 0.0
        %3031 = vmatprep.subr.mxu0 0.0
        %3032 = vmatpush1.msra.mxu0 0.0
        %3033 = vmatprep.subr.mxu0 0.0
        %3034 = vmatpush1.msra.mxu0 0.0
        %3035 = vmatprep.subr.mxu0 0.0
        %3036 = vmatpush1.msra.mxu0 0.0
        %3037 = vmatprep.subr.mxu0 0.0
        %3038 = vmatpush1.msra.mxu0 0.0
        %3039 = vmatprep.subr.mxu0 0.0
        %3040 = vmatpush1.msra.mxu0 0.0
        %3041 = vmatprep.subr.mxu0 0.0
        %3042 = vmatpush1.msra.mxu0 0.0
        %3043 = vmatprep.subr.mxu0 0.0
        %3044 = vmatpush1.msra.mxu0 0.0
        %3045 = vmatprep.subr.mxu0 0.0
        %3046 = vmatpush1.msra.mxu0 0.0
        %3047 = vmatprep.subr.mxu0 0.0
        %3048 = vmatpush1.msra.mxu0 0.0
        %3049 = vmatprep.subr.mxu0 0.0
        %3050 = vmatpush1.msra.mxu0 0.0
        %3051 = vmatprep.subr.mxu0 0.0
        %3052 = vmatpush1.msra.mxu0 0.0
        %3053 = vmatprep.subr.mxu0 0.0
        %3054 = vmatpush1.msra.mxu0 0.0
        %3055 = vmatprep.subr.mxu0 0.0
        %3056 = vmatpush1.msra.mxu0 0.0
        %3057 = vmatprep.mubr.f32.mxu0 0.0
        %3058 = vmatmul.mubr.f32.gmra.mrb[0].mxu0 %v2659
        %v3059 = vpop.f32.mrb[0].mxu0
        %v3060 = vadd.f32 %v2955, %v3059
        %v3061 = vpop.f32.mrb[0].mxu0
        %3062 = vmatprep.mubr.f32.mxu0 0.0
        %3063 = vmatmul.mubr.f32.gmra.mrb[0].mxu0 %v2664
        %v3064 = vpop.f32.mrb[0].mxu0
        %v3065 = vadd.f32 %v2960, %v3064
        %v3066 = vpop.f32.mrb[0].mxu0
        %3067 = vmatprep.mubr.f32.mxu0 0.0
        %3068 = vmatmul.mubr.f32.gmra.mrb[0].mxu0 %v2669
        %v3069 = vpop.f32.mrb[0].mxu0
        %v3070 = vadd.f32 %v2965, %v3069
        %v3071 = vpop.f32.mrb[0].mxu0
        %3072 = vmatprep.mubr.f32.mxu0 0.0
        %3073 = vmatmul.mubr.f32.gmra.mrb[0].mxu0 %v2674
        %v3074 = vpop.f32.mrb[0].mxu0
        %v3075 = vadd.f32 %v2970, %v3074
        %v3076 = vpop.f32.mrb[0].mxu0
        %3077 = vmatprep.mubr.f32.mxu0 0.0
        %3078 = vmatmul.mubr.f32.gmra.mrb[0].mxu0 %v2679
        %v3079 = vpop.f32.mrb[0].mxu0
        %v3080 = vadd.f32 %v2975, %v3079
        %v3081 = vpop.f32.mrb[0].mxu0
        %3082 = vmatprep.mubr.f32.mxu0 0.0
        %3083 = vmatmul.mubr.f32.gmra.mrb[0].mxu0 %v2684
        %v3084 = vpop.f32.mrb[0].mxu0
        %v3085 = vadd.f32 %v2980, %v3084
        %v3086 = vpop.f32.mrb[0].mxu0
        %3087 = vmatprep.mubr.f32.mxu0 0.0
        %3088 = vmatmul.mubr.f32.gmra.mrb[0].mxu0 %v2689
        %v3089 = vpop.f32.mrb[0].mxu0
        %v3090 = vadd.f32 %v2985, %v3089
        %v3091 = vpop.f32.mrb[0].mxu0
        %3092 = vmatprep.mubr.f32.mxu0 0.0
        %3093 = vmatmul.mubr.f32.gmra.mrb[0].mxu0 %v2694
        %v3094 = vpop.f32.mrb[0].mxu0
        %v3095 = vadd.f32 %v2990, %v3094
        %v3096 = vpop.f32.mrb[0].mxu0
        %3097 = vdwg.mxu0
        %v3098 = vmax.f32 %v3060, 0.0
        %v3099 = vmax.f32 %v3065, 0.0
        %v3100 = vmax.f32 %v3070, 0.0
        %v3101 = vmax.f32 %v3075, 0.0
        %v3102 = vmax.f32 %v3080, 0.0
        %v3103 = vmax.f32 %v3085, 0.0
        %v3104 = vmax.f32 %v3090, 0.0
        %v3105 = vmax.f32 %v3095, 0.0
        %v3106 = vlaneseq
        %v3107 = vshrl.u32 %v3106, 7
        %v3108 = vsub.s32 0, %v3107
        %v3109 = vrot.slane %v2777, %v3108
        %v3110 = vmul.f32 %v3098, %v3109
        %v3111 = vmul.f32 %v3099, %v3109
        %v3112 = vmul.f32 %v3100, %v3109
        %v3113 = vmul.f32 %v3101, %v3109
        %v3114 = vmul.f32 %v3102, %v3109
        %v3115 = vmul.f32 %v3103, %v3109
        %v3116 = vmul.f32 %v3104, %v3109
        %v3117 = vmul.f32 %v3105, %v3109
        %v3118 = vlaneseq
        %v3119 = vshrl.u32 %v3118, 7
        %v3120 = vsub.s32 0, %v3119
        %v3121 = vrot.slane %v2778, %v3120
        %v3122 = vadd.f32 %v3110, %v3121
        %v3123 = vadd.f32 %v3111, %v3121
        %v3124 = vadd.f32 %v3112, %v3121
        %v3125 = vadd.f32 %v3113, %v3121
        %v3126 = vadd.f32 %v3114, %v3121
        %v3127 = vadd.f32 %v3115, %v3121
        %v3128 = vadd.f32 %v3116, %v3121
        %v3129 = vadd.f32 %v3117, %v3121
        %v3130 = vmul.f32 %v3122, %v250
        %v3131 = vmul.f32 %v3123, %v251
        %v3132 = vmul.f32 %v3124, %v252
        %v3133 = vmul.f32 %v3125, %v253
        %v3134 = vmul.f32 %v3126, %v254
        %v3135 = vmul.f32 %v3127, %v255
        %v3136 = vmul.f32 %v3128, %v256
        %v3137 = vmul.f32 %v3129, %v257
        %v3138 = vadd.f32 %v1988, %v3130
        %v3139 = vadd.f32 %v1989, %v3131
        %v3140 = vadd.f32 %v1990, %v3132
        %v3141 = vadd.f32 %v1991, %v3133
        %v3142 = vadd.f32 %v1992, %v3134
        %v3143 = vadd.f32 %v1993, %v3135
        %v3144 = vadd.f32 %v1994, %v3136
        %v3145 = vadd.f32 %v1995, %v3137
        %3146 = vst [vmem:[%s222] sm:$0xff] %v3138
        %3147 = vst [vmem:[%s222 + $0x8] sm:$0xff] %v3139
        %3148 = vst [vmem:[%s222 + $0x10] sm:$0xff] %v3140
        %3149 = vst [vmem:[%s222 + $0x18] sm:$0xff] %v3141
        %3150 = vst [vmem:[%s222 + $0x20] sm:$0xff] %v3142
        %3151 = vst [vmem:[%s222 + $0x28] sm:$0xff] %v3143
        %3152 = vst [vmem:[%s222 + $0x30] sm:$0xff] %v3144
        %3153 = vst [vmem:[%s222 + $0x38] sm:$0xff] %v3145
        %s3154 = sand.u32 %s102, 1
        %s3155 = scalar_lea.sflag [#allocation8], %s3154
        %s3156 = sand.u32 %s102, 1
        %s3157 = smul.addr %s3156, 64
        %s3158 = scalar_lea.vmem [#allocation12], %s3157
        // Predicated region
        $region45: #{tpu_custom_call.1} parent=31 // pred_check
          %p3159 = pneg %p112
        $region46: #{tpu_custom_call.1} parent=31 // pred_check_branch
          %3161 = sbr.rel (%p3159) target = $region48
        $region47: #{tpu_custom_call.1} parent=31 // pred_region
          %s3163 = ssub.s32 1024, 1024
          %3164 = vsyncadd %s3155, %s3163
          %s3165 = smul.addr %s26, 8
          %s3166 = smul.addr %s3165, 128
          %s3167 = scalar_lea.hbm %s4, %s3166
          %s3168 = sshll.u32 %s3158, 4
          %s3169 = int_to_ptr.vmem [resolvable:$true] %s3168
          %3174 = dma.vmem_to_hbm [thread:$0]  %s3169, 1024, %s3167, %s3155, 128, 128, 8
        $region48: #{tpu_custom_call.1} parent=31 // pred_fallthru
          _
      $region32: #{tpu_custom_call.1} parent=5 // pred_fallthru
        _
      %p3175 = scmp.le.s32.totalorder 2, %s21
      // Predicated region
      $region49: #{tpu_custom_call.1} parent=5 // pred_check
        %p3176 = pneg %p3175
      $region50: #{tpu_custom_call.1} parent=5 // pred_check_branch
        %3178 = sbr.rel (%p3176) target = $region52
      $region51: #{tpu_custom_call.1} parent=5 // pred_region
        %s3179 = ssub.s32 %s21, 2
        // Predicated region
        $region53: #{tpu_custom_call.1} parent=51 // pred_check
          %p3180 = pneg %p118
        $region54: #{tpu_custom_call.1} parent=51 // pred_check_branch
          %3182 = sbr.rel (%p3180) target = $region56
        $region55: #{tpu_custom_call.1} parent=51 // pred_region
          %s3183 = sand.u32 %s103, 1
          %s3184 = scalar_lea.sflag [#allocation8], %s3183
          %s3185 = sand.u32 %s103, 1
          %s3186 = smul.addr %s3185, 64
          %s3187 = scalar_lea.vmem [#allocation12], %s3186
          %3188 = dma.done %s3184, 1024
        $region56: #{tpu_custom_call.1} parent=51 // pred_fallthru
          _
      $region52: #{tpu_custom_call.1} parent=5 // pred_fallthru
        _
    $region6: #{tpu_custom_call.1} parent=1 // loop_footer
      %s25 = sadd.s32 1, %s21
    $region7: #{tpu_custom_call.1} parent=1 // loop_footer_branch
      %20 = sbr.rel target = $region3
    $region8: #{tpu_custom_call.1} parent=1 // loop_exit
      _
    %3189 = vsyncpa [#allocation7], 1
    %s3190 = scalar_lea.sflag [#allocation7], 1
    %3191 = vsyncpa %s3190, 1
    %3192 = vsyncpa [#allocation10], 1
    %3193 = vsyncpa [#allocation8], 1
    %s3194 = scalar_lea.sflag [#allocation8], 1
    %3195 = vsyncpa %s3194, 1

</llo_original>
